<compile_context>
chip_gen: v7x
topology: tpu7x:2x2x1
jax: 0.10.0
libtpu: 0.0.40
codegen_flags: <defaults>
</compile_context>

<pallas_src>
import functools

import jax
import jax.numpy as jnp
from jax import lax
from jax.experimental import pallas as pl
from jax.experimental.pallas import tpu as pltpu


# Fully unroll the tap loops for small kernels (e.g. K=7); keep them rolled
# for very large kernels (e.g. K=31) to bound code size / live ranges.
_UNROLL_MAX_K = 13


def _pick_vmem_limit():
    """Generation-aware scoped-VMEM budget with headroom for Mosaic scratch."""
    phys = None
    try:
        phys = getattr(pltpu.get_tpu_info(), "vmem_capacity_bytes", None)
    except Exception:
        phys = None
    if not phys:
        try:
            kind = jax.devices()[0].device_kind.lower()
            phys = (64 << 20) if "7" in kind else (128 << 20)
        except Exception:
            phys = 64 << 20
    # Keep >=16 MiB headroom; cap at 96 MiB (safe on v5e/v6e), 48 MiB on v7x.
    return min(int(phys) - (16 << 20), 96 << 20)


def _pick_channel_block(C, H, W, K, x_itemsize, budget):
    """Channel block size + (possibly padded) effective channel count."""
    Hp, Wp = H + K - 1, W + K - 1

    def tile_bytes(cb):
        # padded f32 scratch + double-buffered input block + weights/bias/out.
        return (Hp * Wp * cb * 4 + 2 * H * W * cb * x_itemsize
                + 2 * H * W * cb * x_itemsize + 4 * K * K * cb * 4)

    if C % 128 == 0:
        if C % 256 == 0 and tile_bytes(256) <= budget // 3:
            return 256, C            # bigger lane-dense blocks (v5e/v6e)
        return 128, C
    if C > 128:
        # Pad to a multiple of 128 instead of lane-masked partial stores.
        return 128, ((C + 127) // 128) * 128
    return C, C                      # tiny C: single (masked) block


def _pick_strip_rows(H, W, CB, acc_budget_bytes=128 << 10):
    """Output rows per strip so the f32 accumulator stays vreg-resident."""
    per_row = max(W * CB * 4, 1)
    hs = max(1, min(H, acc_budget_bytes // per_row))
    while H % hs:
        hs -= 1
    return hs


def _lkr_kernel(x_ref, w_ref, b_ref, o_ref, xpad_ref, *, H, W, K, HS):
    """One (batch, channel-block, H-strip) tile.

    x_ref    : (1, H, W, CB)        unpadded input tile (DMA'd once per (n,c))
    w_ref    : (K*K, CB)            merged depthwise weights, f32
    b_ref    : (1, CB)              merged bias, f32
    o_ref    : (1, HS, W, CB)       output strip
    xpad_ref : (H+K-1, W+K-1, CB)   f32 zero-padded input scratch (persistent)
    """
    CB = o_ref.shape[-1]
    pad = K // 2
    hs = pl.program_id(2)

    # One-time per (batch, c-block): zero the padded scratch and drop the
    # input tile (cast to f32 once) into its interior.  The strip axis is
    # "arbitrary", so strips of one (n, c) tile run sequentially on one core.
    @pl.when(hs == 0)
    def _():
        xpad_ref[...] = jnp.zeros_like(xpad_ref)
        xpad_ref[pad:pad + H, pad:pad + W, :] = x_ref[0].astype(jnp.float32)

    row0 = pl.multiple_of(hs * HS, HS)

    # Accumulator starts at the bias -> no epilogue bias pass.
    bias = b_ref[0].astype(jnp.float32).reshape(1, 1, CB)
    acc = jnp.broadcast_to(bias, (HS, W, CB))

    if K <= _UNROLL_MAX_K:
        w_all = w_ref[...].astype(jnp.float32)                    # (K*K, CB)
        for kw in range(K):
            # One sublane-window relayout per kw; kh slices below are free
            # leading-dim offsets.
            xkw = xpad_ref[pl.ds(row0, HS + K - 1), kw:kw + W, :]  # (HS+K-1,W,CB)
            for kh in range(K):
                acc = acc + xkw[kh:kh + HS] * w_all[kh * K + kw].reshape(1, 1, CB)
    else:
        # Large K (e.g. 31): rolled loops to bound code size / live slabs.
        xwin = xpad_ref[pl.ds(row0, HS + K - 1), :, :]             # (HS+K-1,Wp,CB)

        def kw_body(kw, a):
            xkw = lax.dynamic_slice(xwin, (0, kw, 0), (HS + K - 1, W, CB))

            def kh_body(kh, aa):
                xs = lax.dynamic_slice_in_dim(xkw, kh, HS, axis=0)
                wt = w_ref[pl.ds(kh * K + kw, 1), :].astype(jnp.float32)
                return aa + xs * wt.reshape(1, 1, CB)

            return lax.fori_loop(0, K, kh_body, a)

        acc = lax.fori_loop(0, K, kw_body, acc)

    o_ref[0] = acc.astype(o_ref.dtype)


def large_kernel_reparam(x_nchw, w_large, w_small,
                         scale_l, bias_l, scale_s, bias_s,
                         *, kernel, small_kernel):
    """x_nchw: (N, C, H, W).  w_large: (K, K, C).  w_small: (SK, SK, C)."""
    N, C, H, W = x_nchw.shape
    K, SK = kernel, small_kernel
    # Shared-center reparam requires odd kernels (PyTorch 'same' padding).
    assert K % 2 == 1 and SK % 2 == 1 and SK <= K
    off = (K - SK) // 2

    # ---- RepLK structural reparameterization (exact, done once on weights) --
    w_merged = w_large.astype(jnp.float32) * scale_l[None, None, :]
    w_merged = w_merged.at[off:off + SK, off:off + SK, :].add(
        w_small.astype(jnp.float32) * scale_s[None, None, :])
    b_merged = (bias_l + bias_s).astype(jnp.float32).reshape(1, C)

    # ---- NCHW -> NHWC (channels on lanes) -----------------------------------
    # TODO(synk): if the surrounding model can stay NHWC, drop these transposes
    #             (each is a full HBM round trip for this memory-bound block).
    x_nhwc = jnp.transpose(x_nchw, (0, 2, 3, 1))

    vmem_limit = _pick_vmem_limit()
    CB, C_eff = _pick_channel_block(C, H, W, K, x_nhwc.dtype.itemsize, vmem_limit)
    if C_eff != C:
        pad_c = C_eff - C
        x_nhwc = jnp.pad(x_nhwc, ((0, 0), (0, 0), (0, 0), (0, pad_c)))
        w_merged = jnp.pad(w_merged, ((0, 0), (0, 0), (0, pad_c)))
        b_merged = jnp.pad(b_merged, ((0, 0), (0, pad_c)))
    n_cblk = C_eff // CB

    # Flatten weights to (K*K, C): per-tap select is a free leading-dim offset.
    w_flat = w_merged.reshape(K * K, C_eff)

    HS = _pick_strip_rows(H, W, CB)
    n_strips = H // HS
    Hp, Wp = H + K - 1, W + K - 1

    kern = functools.partial(_lkr_kernel, H=H, W=W, K=K, HS=HS)

    # TODO(synk): for very large H*W the whole padded tile may not fit VMEM
    #             (esp. v7x, 64 MiB); escalate to memory_space=pl.ANY input and
    #             per-strip halo DMA so only strip+K-1 rows are resident.
    out_nhwc = pl.pallas_call(
        kern,
        out_shape=jax.ShapeDtypeStruct((N, H, W, C_eff), x_nchw.dtype),
        grid_spec=pltpu.PrefetchScalarGridSpec(
            num_scalar_prefetch=0,
            grid=(N, n_cblk, n_strips),
            in_specs=[
                # Input block index ignores the strip axis -> DMA'd once per
                # (n, c) and kept resident while all strips are computed.
                pl.BlockSpec((1, H, W, CB), lambda n, c, s: (n, 0, 0, c)),
                pl.BlockSpec((K * K, CB), lambda n, c, s: (0, c)),
                pl.BlockSpec((1, CB), lambda n, c, s: (0, c)),
            ],
            out_specs=pl.BlockSpec((1, HS, W, CB), lambda n, c, s: (n, s, 0, c)),
            scratch_shapes=[pltpu.VMEM((Hp, Wp, CB), jnp.float32)],
        ),
        compiler_params=pltpu.CompilerParams(
            # Strip axis must be "arbitrary": the padded scratch is built at
            # strip 0 and reused by later strips of the same (n, c) tile.
            dimension_semantics=("parallel", "parallel", "arbitrary"),
            vmem_limit_bytes=vmem_limit),
    )(x_nhwc, w_flat, b_merged)

    if C_eff != C:
        out_nhwc = out_nhwc[..., :C]
    return jnp.transpose(out_nhwc, (0, 3, 1, 2))   # back to NCHW


def _reference(x_nchw, w_large, w_small, scale_l, bias_l, scale_s, bias_s,
               *, kernel, small_kernel):
    """Pure-JAX reference: two depthwise convs + per-branch BN fold, summed."""
    C = x_nchw.shape[1]

    def dw_conv(x, w_hwc, k):
        w_oihw = jnp.transpose(w_hwc, (2, 0, 1))[:, None, :, :]
        return lax.conv_general_dilated(
            x, w_oihw, window_strides=(1, 1),
            padding=[(k // 2, k // 2)] * 2,
            dimension_numbers=("NCHW", "OIHW", "NCHW"),
            feature_group_count=C)

    yl = dw_conv(x_nchw, w_large, kernel)
    ys = dw_conv(x_nchw, w_small, small_kernel)
    yl = yl * scale_l[None, :, None, None] + bias_l[None, :, None, None]
    ys = ys * scale_s[None, :, None, None] + bias_s[None, :, None, None]
    return yl + ys


if __name__ == "__main__":
    N, C, H, W = 2, 4, 16, 16
    KERNEL, SMALL = 7, 5

    key = jax.random.PRNGKey(0)
    keys = jax.random.split(key, 12)

    x = jax.random.normal(keys[0], (N, C, H, W), jnp.float32)

    # Depthwise conv weights, stored HWC (kernel_h, kernel_w, channels).
    w_large = jax.random.normal(keys[1], (KERNEL, KERNEL, C), jnp.float32) * 0.1
    w_small = jax.random.normal(keys[2], (SMALL, SMALL, C), jnp.float32) * 0.1

    # BatchNorm (inference-mode) params for each branch, folded to scale/bias.
    # TODO(synk): PyTorch BN in training mode uses batch statistics; this uses
    #             running-stats (eval-mode) semantics.
    eps = 1e-5
    gamma_l = 1.0 + 0.1 * jax.random.normal(keys[3], (C,), jnp.float32)
    beta_l = 0.1 * jax.random.normal(keys[4], (C,), jnp.float32)
    mean_l = 0.1 * jax.random.normal(keys[5], (C,), jnp.float32)
    var_l = jnp.abs(jax.random.normal(keys[6], (C,), jnp.float32)) + 0.5

    gamma_s = 1.0 + 0.1 * jax.random.normal(keys[7], (C,), jnp.float32)
    beta_s = 0.1 * jax.random.normal(keys[8], (C,), jnp.float32)
    mean_s = 0.1 * jax.random.normal(keys[9], (C,), jnp.float32)
    var_s = jnp.abs(jax.random.normal(keys[10], (C,), jnp.float32)) + 0.5

    scale_l = gamma_l / jnp.sqrt(var_l + eps)
    bias_l = beta_l - mean_l * scale_l
    scale_s = gamma_s / jnp.sqrt(var_s + eps)
    bias_s = beta_s - mean_s * scale_s

    out = large_kernel_reparam(
        x, w_large, w_small, scale_l, bias_l, scale_s, bias_s,
        kernel=KERNEL, small_kernel=SMALL)
    out = jax.block_until_ready(out)

    ref = _reference(
        x, w_large, w_small, scale_l, bias_l, scale_s, bias_s,
        kernel=KERNEL, small_kernel=SMALL)

    assert out.shape == (N, C, H, W)
    assert jnp.allclose(out, ref, atol=1e-4, rtol=1e-4), (
        float(jnp.max(jnp.abs(out - ref))))

    print("KERNEL_OK")
</pallas_src>

<mosaic_0001>
module attributes {stable_mosaic.version = 11 : i64} {
  func.func @_lkr_kernel(%arg0: i32, %arg1: i32, %arg2: i32, %arg3: memref<1x16x16x4xf32, #tpu.memory_space<vmem>>, %arg4: memref<49x4xf32, #tpu.memory_space<vmem>>, %arg5: memref<1x4xf32, #tpu.memory_space<vmem>>, %arg6: memref<1x16x16x4xf32, #tpu.memory_space<vmem>>, %arg7: memref<22x22x4xf32, #tpu.memory_space<vmem>>) attributes {dimension_semantics = [#tpu.dimension_semantics<parallel>, #tpu.dimension_semantics<parallel>, #tpu.dimension_semantics<arbitrary>], iteration_bounds = array<i64: 2, 1, 1>, scalar_prefetch = 0 : i64, scratch_operands = 1 : i64, tpu.core_type = #tpu.core_type<tc>, window_params = [{transform_indices = @transform_0, window_bounds = array<i64: 1, 16, 16, 4>}, {transform_indices = @transform_1, window_bounds = array<i64: 49, 4>}, {transform_indices = @transform_2, window_bounds = array<i64: 1, 4>}, {transform_indices = @transform_3, window_bounds = array<i64: 1, 16, 16, 4>}]} {
    %c0_i32 = arith.constant 0 : i32
    %0 = arith.cmpi eq, %arg2, %c0_i32 : i32
    %1 = arith.extui %0 : i1 to i32
    %c0_i32_0 = arith.constant 0 : i32
    %2 = arith.cmpi ne, %1, %c0_i32_0 : i32
    scf.if %2 {
      %cst = arith.constant 0.000000e+00 : f32
      %371 = vector.broadcast %cst : f32 to vector<22x22x4xf32>
      %c0_16 = arith.constant 0 : index
      %c0_17 = arith.constant 0 : index
      %c0_18 = arith.constant 0 : index
      %372 = vector.load %arg7[%c0_16, %c0_17, %c0_18] : memref<22x22x4xf32, #tpu.memory_space<vmem>>, vector<22x22x4xf32>
      tpu.vector_store %arg7[%c0_16, %c0_17, %c0_18], %371 {strides = array<i32>} : memref<22x22x4xf32, #tpu.memory_space<vmem>>, vector<22x22x4xf32>,
      %c0_19 = arith.constant 0 : index
      %c0_20 = arith.constant 0 : index
      %c0_21 = arith.constant 0 : index
      %c0_22 = arith.constant 0 : index
      %373 = vector.load %arg3[%c0_19, %c0_20, %c0_21, %c0_22] : memref<1x16x16x4xf32, #tpu.memory_space<vmem>>, vector<1x16x16x4xf32>
      %374 = vector.shape_cast %373 : vector<1x16x16x4xf32> to vector<16x16x4xf32>
      %c3_23 = arith.constant 3 : index
      %c3_24 = arith.constant 3 : index
      %c0_25 = arith.constant 0 : index
      %375 = vector.load %arg7[%c3_23, %c3_24, %c0_25] : memref<22x22x4xf32, #tpu.memory_space<vmem>>, vector<16x16x4xf32>
      tpu.vector_store %arg7[%c3_23, %c3_24, %c0_25], %374 {strides = array<i32>} : memref<22x22x4xf32, #tpu.memory_space<vmem>>, vector<16x16x4xf32>,
    } else {
    }
    %c16_i32 = arith.constant 16 : i32
    %3 = arith.muli %arg2, %c16_i32 : i32
    %4 = tpu.assume_multiple %3, 16 : i32
    %c0 = arith.constant 0 : index
    %c0_1 = arith.constant 0 : index
    %5 = vector.load %arg5[%c0, %c0_1] : memref<1x4xf32, #tpu.memory_space<vmem>>, vector<1x4xf32>
    %6 = vector.shape_cast %5 : vector<1x4xf32> to vector<4xf32>
    %7 = vector.shape_cast %6 : vector<4xf32> to vector<1x1x4xf32>
    %8 = vector.shape_cast %7 : vector<1x1x4xf32> to vector<1x1x4xf32>
    %9 = vector.broadcast %8 : vector<1x1x4xf32> to vector<16x16x4xf32>
    %c0_2 = arith.constant 0 : index
    %c0_3 = arith.constant 0 : index
    %10 = vector.load %arg4[%c0_2, %c0_3] : memref<49x4xf32, #tpu.memory_space<vmem>>, vector<49x4xf32>
    %11 = arith.index_cast %4 : i32 to index
    %c0_4 = arith.constant 0 : index
    %c0_5 = arith.constant 0 : index
    %12 = vector.load %arg7[%11, %c0_4, %c0_5] : memref<22x22x4xf32, #tpu.memory_space<vmem>>, vector<22x16x4xf32>
    %13 = vector.extract_strided_slice %12 {offsets = [0, 0, 0], sizes = [16, 16, 4], strides = [1, 1, 1]} : vector<22x16x4xf32> to vector<16x16x4xf32>
    %14 = vector.extract_strided_slice %10 {offsets = [0, 0], sizes = [1, 4], strides = [1, 1]} : vector<49x4xf32> to vector<1x4xf32>
    %15 = vector.shape_cast %14 : vector<1x4xf32> to vector<4xf32>
    %16 = vector.shape_cast %15 : vector<4xf32> to vector<1x1x4xf32>
    %17 = vector.broadcast %16 : vector<1x1x4xf32> to vector<16x16x4xf32>
    %18 = arith.mulf %13, %17 : vector<16x16x4xf32>
    %19 = arith.addf %9, %18 : vector<16x16x4xf32>
    %20 = vector.extract_strided_slice %12 {offsets = [1, 0, 0], sizes = [16, 16, 4], strides = [1, 1, 1]} : vector<22x16x4xf32> to vector<16x16x4xf32>
    %21 = vector.extract_strided_slice %10 {offsets = [7, 0], sizes = [1, 4], strides = [1, 1]} : vector<49x4xf32> to vector<1x4xf32>
    %22 = vector.shape_cast %21 : vector<1x4xf32> to vector<4xf32>
    %23 = vector.shape_cast %22 : vector<4xf32> to vector<1x1x4xf32>
    %24 = vector.broadcast %23 : vector<1x1x4xf32> to vector<16x16x4xf32>
    %25 = arith.mulf %20, %24 : vector<16x16x4xf32>
    %26 = arith.addf %19, %25 : vector<16x16x4xf32>
    %27 = vector.extract_strided_slice %12 {offsets = [2, 0, 0], sizes = [16, 16, 4], strides = [1, 1, 1]} : vector<22x16x4xf32> to vector<16x16x4xf32>
    %28 = vector.extract_strided_slice %10 {offsets = [14, 0], sizes = [1, 4], strides = [1, 1]} : vector<49x4xf32> to vector<1x4xf32>
    %29 = vector.shape_cast %28 : vector<1x4xf32> to vector<4xf32>
    %30 = vector.shape_cast %29 : vector<4xf32> to vector<1x1x4xf32>
    %31 = vector.broadcast %30 : vector<1x1x4xf32> to vector<16x16x4xf32>
    %32 = arith.mulf %27, %31 : vector<16x16x4xf32>
    %33 = arith.addf %26, %32 : vector<16x16x4xf32>
    %34 = vector.extract_strided_slice %12 {offsets = [3, 0, 0], sizes = [16, 16, 4], strides = [1, 1, 1]} : vector<22x16x4xf32> to vector<16x16x4xf32>
    %35 = vector.extract_strided_slice %10 {offsets = [21, 0], sizes = [1, 4], strides = [1, 1]} : vector<49x4xf32> to vector<1x4xf32>
    %36 = vector.shape_cast %35 : vector<1x4xf32> to vector<4xf32>
    %37 = vector.shape_cast %36 : vector<4xf32> to vector<1x1x4xf32>
    %38 = vector.broadcast %37 : vector<1x1x4xf32> to vector<16x16x4xf32>
    %39 = arith.mulf %34, %38 : vector<16x16x4xf32>
    %40 = arith.addf %33, %39 : vector<16x16x4xf32>
    %41 = vector.extract_strided_slice %12 {offsets = [4, 0, 0], sizes = [16, 16, 4], strides = [1, 1, 1]} : vector<22x16x4xf32> to vector<16x16x4xf32>
    %42 = vector.extract_strided_slice %10 {offsets = [28, 0], sizes = [1, 4], strides = [1, 1]} : vector<49x4xf32> to vector<1x4xf32>
    %43 = vector.shape_cast %42 : vector<1x4xf32> to vector<4xf32>
    %44 = vector.shape_cast %43 : vector<4xf32> to vector<1x1x4xf32>
    %45 = vector.broadcast %44 : vector<1x1x4xf32> to vector<16x16x4xf32>
    %46 = arith.mulf %41, %45 : vector<16x16x4xf32>
    %47 = arith.addf %40, %46 : vector<16x16x4xf32>
    %48 = vector.extract_strided_slice %12 {offsets = [5, 0, 0], sizes = [16, 16, 4], strides = [1, 1, 1]} : vector<22x16x4xf32> to vector<16x16x4xf32>
    %49 = vector.extract_strided_slice %10 {offsets = [35, 0], sizes = [1, 4], strides = [1, 1]} : vector<49x4xf32> to vector<1x4xf32>
    %50 = vector.shape_cast %49 : vector<1x4xf32> to vector<4xf32>
    %51 = vector.shape_cast %50 : vector<4xf32> to vector<1x1x4xf32>
    %52 = vector.broadcast %51 : vector<1x1x4xf32> to vector<16x16x4xf32>
    %53 = arith.mulf %48, %52 : vector<16x16x4xf32>
    %54 = arith.addf %47, %53 : vector<16x16x4xf32>
    %55 = vector.extract_strided_slice %12 {offsets = [6, 0, 0], sizes = [16, 16, 4], strides = [1, 1, 1]} : vector<22x16x4xf32> to vector<16x16x4xf32>
    %56 = vector.extract_strided_slice %10 {offsets = [42, 0], sizes = [1, 4], strides = [1, 1]} : vector<49x4xf32> to vector<1x4xf32>
    %57 = vector.shape_cast %56 : vector<1x4xf32> to vector<4xf32>
    %58 = vector.shape_cast %57 : vector<4xf32> to vector<1x1x4xf32>
    %59 = vector.broadcast %58 : vector<1x1x4xf32> to vector<16x16x4xf32>
    %60 = arith.mulf %55, %59 : vector<16x16x4xf32>
    %61 = arith.addf %54, %60 : vector<16x16x4xf32>
    %62 = arith.index_cast %4 : i32 to index
    %c1 = arith.constant 1 : index
    %c0_6 = arith.constant 0 : index
    %63 = vector.load %arg7[%62, %c1, %c0_6] : memref<22x22x4xf32, #tpu.memory_space<vmem>>, vector<22x16x4xf32>
    %64 = vector.extract_strided_slice %63 {offsets = [0, 0, 0], sizes = [16, 16, 4], strides = [1, 1, 1]} : vector<22x16x4xf32> to vector<16x16x4xf32>
    %65 = vector.extract_strided_slice %10 {offsets = [1, 0], sizes = [1, 4], strides = [1, 1]} : vector<49x4xf32> to vector<1x4xf32>
    %66 = vector.shape_cast %65 : vector<1x4xf32> to vector<4xf32>
    %67 = vector.shape_cast %66 : vector<4xf32> to vector<1x1x4xf32>
    %68 = vector.broadcast %67 : vector<1x1x4xf32> to vector<16x16x4xf32>
    %69 = arith.mulf %64, %68 : vector<16x16x4xf32>
    %70 = arith.addf %61, %69 : vector<16x16x4xf32>
    %71 = vector.extract_strided_slice %63 {offsets = [1, 0, 0], sizes = [16, 16, 4], strides = [1, 1, 1]} : vector<22x16x4xf32> to vector<16x16x4xf32>
    %72 = vector.extract_strided_slice %10 {offsets = [8, 0], sizes = [1, 4], strides = [1, 1]} : vector<49x4xf32> to vector<1x4xf32>
    %73 = vector.shape_cast %72 : vector<1x4xf32> to vector<4xf32>
    %74 = vector.shape_cast %73 : vector<4xf32> to vector<1x1x4xf32>
    %75 = vector.broadcast %74 : vector<1x1x4xf32> to vector<16x16x4xf32>
    %76 = arith.mulf %71, %75 : vector<16x16x4xf32>
    %77 = arith.addf %70, %76 : vector<16x16x4xf32>
    %78 = vector.extract_strided_slice %63 {offsets = [2, 0, 0], sizes = [16, 16, 4], strides = [1, 1, 1]} : vector<22x16x4xf32> to vector<16x16x4xf32>
    %79 = vector.extract_strided_slice %10 {offsets = [15, 0], sizes = [1, 4], strides = [1, 1]} : vector<49x4xf32> to vector<1x4xf32>
    %80 = vector.shape_cast %79 : vector<1x4xf32> to vector<4xf32>
    %81 = vector.shape_cast %80 : vector<4xf32> to vector<1x1x4xf32>
    %82 = vector.broadcast %81 : vector<1x1x4xf32> to vector<16x16x4xf32>
    %83 = arith.mulf %78, %82 : vector<16x16x4xf32>
    %84 = arith.addf %77, %83 : vector<16x16x4xf32>
    %85 = vector.extract_strided_slice %63 {offsets = [3, 0, 0], sizes = [16, 16, 4], strides = [1, 1, 1]} : vector<22x16x4xf32> to vector<16x16x4xf32>
    %86 = vector.extract_strided_slice %10 {offsets = [22, 0], sizes = [1, 4], strides = [1, 1]} : vector<49x4xf32> to vector<1x4xf32>
    %87 = vector.shape_cast %86 : vector<1x4xf32> to vector<4xf32>
    %88 = vector.shape_cast %87 : vector<4xf32> to vector<1x1x4xf32>
    %89 = vector.broadcast %88 : vector<1x1x4xf32> to vector<16x16x4xf32>
    %90 = arith.mulf %85, %89 : vector<16x16x4xf32>
    %91 = arith.addf %84, %90 : vector<16x16x4xf32>
    %92 = vector.extract_strided_slice %63 {offsets = [4, 0, 0], sizes = [16, 16, 4], strides = [1, 1, 1]} : vector<22x16x4xf32> to vector<16x16x4xf32>
    %93 = vector.extract_strided_slice %10 {offsets = [29, 0], sizes = [1, 4], strides = [1, 1]} : vector<49x4xf32> to vector<1x4xf32>
    %94 = vector.shape_cast %93 : vector<1x4xf32> to vector<4xf32>
    %95 = vector.shape_cast %94 : vector<4xf32> to vector<1x1x4xf32>
    %96 = vector.broadcast %95 : vector<1x1x4xf32> to vector<16x16x4xf32>
    %97 = arith.mulf %92, %96 : vector<16x16x4xf32>
    %98 = arith.addf %91, %97 : vector<16x16x4xf32>
    %99 = vector.extract_strided_slice %63 {offsets = [5, 0, 0], sizes = [16, 16, 4], strides = [1, 1, 1]} : vector<22x16x4xf32> to vector<16x16x4xf32>
    %100 = vector.extract_strided_slice %10 {offsets = [36, 0], sizes = [1, 4], strides = [1, 1]} : vector<49x4xf32> to vector<1x4xf32>
    %101 = vector.shape_cast %100 : vector<1x4xf32> to vector<4xf32>
    %102 = vector.shape_cast %101 : vector<4xf32> to vector<1x1x4xf32>
    %103 = vector.broadcast %102 : vector<1x1x4xf32> to vector<16x16x4xf32>
    %104 = arith.mulf %99, %103 : vector<16x16x4xf32>
    %105 = arith.addf %98, %104 : vector<16x16x4xf32>
    %106 = vector.extract_strided_slice %63 {offsets = [6, 0, 0], sizes = [16, 16, 4], strides = [1, 1, 1]} : vector<22x16x4xf32> to vector<16x16x4xf32>
    %107 = vector.extract_strided_slice %10 {offsets = [43, 0], sizes = [1, 4], strides = [1, 1]} : vector<49x4xf32> to vector<1x4xf32>
    %108 = vector.shape_cast %107 : vector<1x4xf32> to vector<4xf32>
    %109 = vector.shape_cast %108 : vector<4xf32> to vector<1x1x4xf32>
    %110 = vector.broadcast %109 : vector<1x1x4xf32> to vector<16x16x4xf32>
    %111 = arith.mulf %106, %110 : vector<16x16x4xf32>
    %112 = arith.addf %105, %111 : vector<16x16x4xf32>
    %113 = arith.index_cast %4 : i32 to index
    %c2 = arith.constant 2 : index
    %c0_7 = arith.constant 0 : index
    %114 = vector.load %arg7[%113, %c2, %c0_7] : memref<22x22x4xf32, #tpu.memory_space<vmem>>, vector<22x16x4xf32>
    %115 = vector.extract_strided_slice %114 {offsets = [0, 0, 0], sizes = [16, 16, 4], strides = [1, 1, 1]} : vector<22x16x4xf32> to vector<16x16x4xf32>
    %116 = vector.extract_strided_slice %10 {offsets = [2, 0], sizes = [1, 4], strides = [1, 1]} : vector<49x4xf32> to vector<1x4xf32>
    %117 = vector.shape_cast %116 : vector<1x4xf32> to vector<4xf32>
    %118 = vector.shape_cast %117 : vector<4xf32> to vector<1x1x4xf32>
    %119 = vector.broadcast %118 : vector<1x1x4xf32> to vector<16x16x4xf32>
    %120 = arith.mulf %115, %119 : vector<16x16x4xf32>
    %121 = arith.addf %112, %120 : vector<16x16x4xf32>
    %122 = vector.extract_strided_slice %114 {offsets = [1, 0, 0], sizes = [16, 16, 4], strides = [1, 1, 1]} : vector<22x16x4xf32> to vector<16x16x4xf32>
    %123 = vector.extract_strided_slice %10 {offsets = [9, 0], sizes = [1, 4], strides = [1, 1]} : vector<49x4xf32> to vector<1x4xf32>
    %124 = vector.shape_cast %123 : vector<1x4xf32> to vector<4xf32>
    %125 = vector.shape_cast %124 : vector<4xf32> to vector<1x1x4xf32>
    %126 = vector.broadcast %125 : vector<1x1x4xf32> to vector<16x16x4xf32>
    %127 = arith.mulf %122, %126 : vector<16x16x4xf32>
    %128 = arith.addf %121, %127 : vector<16x16x4xf32>
    %129 = vector.extract_strided_slice %114 {offsets = [2, 0, 0], sizes = [16, 16, 4], strides = [1, 1, 1]} : vector<22x16x4xf32> to vector<16x16x4xf32>
    %130 = vector.extract_strided_slice %10 {offsets = [16, 0], sizes = [1, 4], strides = [1, 1]} : vector<49x4xf32> to vector<1x4xf32>
    %131 = vector.shape_cast %130 : vector<1x4xf32> to vector<4xf32>
    %132 = vector.shape_cast %131 : vector<4xf32> to vector<1x1x4xf32>
    %133 = vector.broadcast %132 : vector<1x1x4xf32> to vector<16x16x4xf32>
    %134 = arith.mulf %129, %133 : vector<16x16x4xf32>
    %135 = arith.addf %128, %134 : vector<16x16x4xf32>
    %136 = vector.extract_strided_slice %114 {offsets = [3, 0, 0], sizes = [16, 16, 4], strides = [1, 1, 1]} : vector<22x16x4xf32> to vector<16x16x4xf32>
    %137 = vector.extract_strided_slice %10 {offsets = [23, 0], sizes = [1, 4], strides = [1, 1]} : vector<49x4xf32> to vector<1x4xf32>
    %138 = vector.shape_cast %137 : vector<1x4xf32> to vector<4xf32>
    %139 = vector.shape_cast %138 : vector<4xf32> to vector<1x1x4xf32>
    %140 = vector.broadcast %139 : vector<1x1x4xf32> to vector<16x16x4xf32>
    %141 = arith.mulf %136, %140 : vector<16x16x4xf32>
    %142 = arith.addf %135, %141 : vector<16x16x4xf32>
    %143 = vector.extract_strided_slice %114 {offsets = [4, 0, 0], sizes = [16, 16, 4], strides = [1, 1, 1]} : vector<22x16x4xf32> to vector<16x16x4xf32>
    %144 = vector.extract_strided_slice %10 {offsets = [30, 0], sizes = [1, 4], strides = [1, 1]} : vector<49x4xf32> to vector<1x4xf32>
    %145 = vector.shape_cast %144 : vector<1x4xf32> to vector<4xf32>
    %146 = vector.shape_cast %145 : vector<4xf32> to vector<1x1x4xf32>
    %147 = vector.broadcast %146 : vector<1x1x4xf32> to vector<16x16x4xf32>
    %148 = arith.mulf %143, %147 : vector<16x16x4xf32>
    %149 = arith.addf %142, %148 : vector<16x16x4xf32>
    %150 = vector.extract_strided_slice %114 {offsets = [5, 0, 0], sizes = [16, 16, 4], strides = [1, 1, 1]} : vector<22x16x4xf32> to vector<16x16x4xf32>
    %151 = vector.extract_strided_slice %10 {offsets = [37, 0], sizes = [1, 4], strides = [1, 1]} : vector<49x4xf32> to vector<1x4xf32>
    %152 = vector.shape_cast %151 : vector<1x4xf32> to vector<4xf32>
    %153 = vector.shape_cast %152 : vector<4xf32> to vector<1x1x4xf32>
    %154 = vector.broadcast %153 : vector<1x1x4xf32> to vector<16x16x4xf32>
    %155 = arith.mulf %150, %154 : vector<16x16x4xf32>
    %156 = arith.addf %149, %155 : vector<16x16x4xf32>
    %157 = vector.extract_strided_slice %114 {offsets = [6, 0, 0], sizes = [16, 16, 4], strides = [1, 1, 1]} : vector<22x16x4xf32> to vector<16x16x4xf32>
    %158 = vector.extract_strided_slice %10 {offsets = [44, 0], sizes = [1, 4], strides = [1, 1]} : vector<49x4xf32> to vector<1x4xf32>
    %159 = vector.shape_cast %158 : vector<1x4xf32> to vector<4xf32>
    %160 = vector.shape_cast %159 : vector<4xf32> to vector<1x1x4xf32>
    %161 = vector.broadcast %160 : vector<1x1x4xf32> to vector<16x16x4xf32>
    %162 = arith.mulf %157, %161 : vector<16x16x4xf32>
    %163 = arith.addf %156, %162 : vector<16x16x4xf32>
    %164 = arith.index_cast %4 : i32 to index
    %c3 = arith.constant 3 : index
    %c0_8 = arith.constant 0 : index
    %165 = vector.load %arg7[%164, %c3, %c0_8] : memref<22x22x4xf32, #tpu.memory_space<vmem>>, vector<22x16x4xf32>
    %166 = vector.extract_strided_slice %165 {offsets = [0, 0, 0], sizes = [16, 16, 4], strides = [1, 1, 1]} : vector<22x16x4xf32> to vector<16x16x4xf32>
    %167 = vector.extract_strided_slice %10 {offsets = [3, 0], sizes = [1, 4], strides = [1, 1]} : vector<49x4xf32> to vector<1x4xf32>
    %168 = vector.shape_cast %167 : vector<1x4xf32> to vector<4xf32>
    %169 = vector.shape_cast %168 : vector<4xf32> to vector<1x1x4xf32>
    %170 = vector.broadcast %169 : vector<1x1x4xf32> to vector<16x16x4xf32>
    %171 = arith.mulf %166, %170 : vector<16x16x4xf32>
    %172 = arith.addf %163, %171 : vector<16x16x4xf32>
    %173 = vector.extract_strided_slice %165 {offsets = [1, 0, 0], sizes = [16, 16, 4], strides = [1, 1, 1]} : vector<22x16x4xf32> to vector<16x16x4xf32>
    %174 = vector.extract_strided_slice %10 {offsets = [10, 0], sizes = [1, 4], strides = [1, 1]} : vector<49x4xf32> to vector<1x4xf32>
    %175 = vector.shape_cast %174 : vector<1x4xf32> to vector<4xf32>
    %176 = vector.shape_cast %175 : vector<4xf32> to vector<1x1x4xf32>
    %177 = vector.broadcast %176 : vector<1x1x4xf32> to vector<16x16x4xf32>
    %178 = arith.mulf %173, %177 : vector<16x16x4xf32>
    %179 = arith.addf %172, %178 : vector<16x16x4xf32>
    %180 = vector.extract_strided_slice %165 {offsets = [2, 0, 0], sizes = [16, 16, 4], strides = [1, 1, 1]} : vector<22x16x4xf32> to vector<16x16x4xf32>
    %181 = vector.extract_strided_slice %10 {offsets = [17, 0], sizes = [1, 4], strides = [1, 1]} : vector<49x4xf32> to vector<1x4xf32>
    %182 = vector.shape_cast %181 : vector<1x4xf32> to vector<4xf32>
    %183 = vector.shape_cast %182 : vector<4xf32> to vector<1x1x4xf32>
    %184 = vector.broadcast %183 : vector<1x1x4xf32> to vector<16x16x4xf32>
    %185 = arith.mulf %180, %184 : vector<16x16x4xf32>
    %186 = arith.addf %179, %185 : vector<16x16x4xf32>
    %187 = vector.extract_strided_slice %165 {offsets = [3, 0, 0], sizes = [16, 16, 4], strides = [1, 1, 1]} : vector<22x16x4xf32> to vector<16x16x4xf32>
    %188 = vector.extract_strided_slice %10 {offsets = [24, 0], sizes = [1, 4], strides = [1, 1]} : vector<49x4xf32> to vector<1x4xf32>
    %189 = vector.shape_cast %188 : vector<1x4xf32> to vector<4xf32>
    %190 = vector.shape_cast %189 : vector<4xf32> to vector<1x1x4xf32>
    %191 = vector.broadcast %190 : vector<1x1x4xf32> to vector<16x16x4xf32>
    %192 = arith.mulf %187, %191 : vector<16x16x4xf32>
    %193 = arith.addf %186, %192 : vector<16x16x4xf32>
    %194 = vector.extract_strided_slice %165 {offsets = [4, 0, 0], sizes = [16, 16, 4], strides = [1, 1, 1]} : vector<22x16x4xf32> to vector<16x16x4xf32>
    %195 = vector.extract_strided_slice %10 {offsets = [31, 0], sizes = [1, 4], strides = [1, 1]} : vector<49x4xf32> to vector<1x4xf32>
    %196 = vector.shape_cast %195 : vector<1x4xf32> to vector<4xf32>
    %197 = vector.shape_cast %196 : vector<4xf32> to vector<1x1x4xf32>
    %198 = vector.broadcast %197 : vector<1x1x4xf32> to vector<16x16x4xf32>
    %199 = arith.mulf %194, %198 : vector<16x16x4xf32>
    %200 = arith.addf %193, %199 : vector<16x16x4xf32>
    %201 = vector.extract_strided_slice %165 {offsets = [5, 0, 0], sizes = [16, 16, 4], strides = [1, 1, 1]} : vector<22x16x4xf32> to vector<16x16x4xf32>
    %202 = vector.extract_strided_slice %10 {offsets = [38, 0], sizes = [1, 4], strides = [1, 1]} : vector<49x4xf32> to vector<1x4xf32>
    %203 = vector.shape_cast %202 : vector<1x4xf32> to vector<4xf32>
    %204 = vector.shape_cast %203 : vector<4xf32> to vector<1x1x4xf32>
    %205 = vector.broadcast %204 : vector<1x1x4xf32> to vector<16x16x4xf32>
    %206 = arith.mulf %201, %205 : vector<16x16x4xf32>
    %207 = arith.addf %200, %206 : vector<16x16x4xf32>
    %208 = vector.extract_strided_slice %165 {offsets = [6, 0, 0], sizes = [16, 16, 4], strides = [1, 1, 1]} : vector<22x16x4xf32> to vector<16x16x4xf32>
    %209 = vector.extract_strided_slice %10 {offsets = [45, 0], sizes = [1, 4], strides = [1, 1]} : vector<49x4xf32> to vector<1x4xf32>
    %210 = vector.shape_cast %209 : vector<1x4xf32> to vector<4xf32>
    %211 = vector.shape_cast %210 : vector<4xf32> to vector<1x1x4xf32>
    %212 = vector.broadcast %211 : vector<1x1x4xf32> to vector<16x16x4xf32>
    %213 = arith.mulf %208, %212 : vector<16x16x4xf32>
    %214 = arith.addf %207, %213 : vector<16x16x4xf32>
    %215 = arith.index_cast %4 : i32 to index
    %c4 = arith.constant 4 : index
    %c0_9 = arith.constant 0 : index
    %216 = vector.load %arg7[%215, %c4, %c0_9] : memref<22x22x4xf32, #tpu.memory_space<vmem>>, vector<22x16x4xf32>
    %217 = vector.extract_strided_slice %216 {offsets = [0, 0, 0], sizes = [16, 16, 4], strides = [1, 1, 1]} : vector<22x16x4xf32> to vector<16x16x4xf32>
    %218 = vector.extract_strided_slice %10 {offsets = [4, 0], sizes = [1, 4], strides = [1, 1]} : vector<49x4xf32> to vector<1x4xf32>
    %219 = vector.shape_cast %218 : vector<1x4xf32> to vector<4xf32>
    %220 = vector.shape_cast %219 : vector<4xf32> to vector<1x1x4xf32>
    %221 = vector.broadcast %220 : vector<1x1x4xf32> to vector<16x16x4xf32>
    %222 = arith.mulf %217, %221 : vector<16x16x4xf32>
    %223 = arith.addf %214, %222 : vector<16x16x4xf32>
    %224 = vector.extract_strided_slice %216 {offsets = [1, 0, 0], sizes = [16, 16, 4], strides = [1, 1, 1]} : vector<22x16x4xf32> to vector<16x16x4xf32>
    %225 = vector.extract_strided_slice %10 {offsets = [11, 0], sizes = [1, 4], strides = [1, 1]} : vector<49x4xf32> to vector<1x4xf32>
    %226 = vector.shape_cast %225 : vector<1x4xf32> to vector<4xf32>
    %227 = vector.shape_cast %226 : vector<4xf32> to vector<1x1x4xf32>
    %228 = vector.broadcast %227 : vector<1x1x4xf32> to vector<16x16x4xf32>
    %229 = arith.mulf %224, %228 : vector<16x16x4xf32>
    %230 = arith.addf %223, %229 : vector<16x16x4xf32>
    %231 = vector.extract_strided_slice %216 {offsets = [2, 0, 0], sizes = [16, 16, 4], strides = [1, 1, 1]} : vector<22x16x4xf32> to vector<16x16x4xf32>
    %232 = vector.extract_strided_slice %10 {offsets = [18, 0], sizes = [1, 4], strides = [1, 1]} : vector<49x4xf32> to vector<1x4xf32>
    %233 = vector.shape_cast %232 : vector<1x4xf32> to vector<4xf32>
    %234 = vector.shape_cast %233 : vector<4xf32> to vector<1x1x4xf32>
    %235 = vector.broadcast %234 : vector<1x1x4xf32> to vector<16x16x4xf32>
    %236 = arith.mulf %231, %235 : vector<16x16x4xf32>
    %237 = arith.addf %230, %236 : vector<16x16x4xf32>
    %238 = vector.extract_strided_slice %216 {offsets = [3, 0, 0], sizes = [16, 16, 4], strides = [1, 1, 1]} : vector<22x16x4xf32> to vector<16x16x4xf32>
    %239 = vector.extract_strided_slice %10 {offsets = [25, 0], sizes = [1, 4], strides = [1, 1]} : vector<49x4xf32> to vector<1x4xf32>
    %240 = vector.shape_cast %239 : vector<1x4xf32> to vector<4xf32>
    %241 = vector.shape_cast %240 : vector<4xf32> to vector<1x1x4xf32>
    %242 = vector.broadcast %241 : vector<1x1x4xf32> to vector<16x16x4xf32>
    %243 = arith.mulf %238, %242 : vector<16x16x4xf32>
    %244 = arith.addf %237, %243 : vector<16x16x4xf32>
    %245 = vector.extract_strided_slice %216 {offsets = [4, 0, 0], sizes = [16, 16, 4], strides = [1, 1, 1]} : vector<22x16x4xf32> to vector<16x16x4xf32>
    %246 = vector.extract_strided_slice %10 {offsets = [32, 0], sizes = [1, 4], strides = [1, 1]} : vector<49x4xf32> to vector<1x4xf32>
    %247 = vector.shape_cast %246 : vector<1x4xf32> to vector<4xf32>
    %248 = vector.shape_cast %247 : vector<4xf32> to vector<1x1x4xf32>
    %249 = vector.broadcast %248 : vector<1x1x4xf32> to vector<16x16x4xf32>
    %250 = arith.mulf %245, %249 : vector<16x16x4xf32>
    %251 = arith.addf %244, %250 : vector<16x16x4xf32>
    %252 = vector.extract_strided_slice %216 {offsets = [5, 0, 0], sizes = [16, 16, 4], strides = [1, 1, 1]} : vector<22x16x4xf32> to vector<16x16x4xf32>
    %253 = vector.extract_strided_slice %10 {offsets = [39, 0], sizes = [1, 4], strides = [1, 1]} : vector<49x4xf32> to vector<1x4xf32>
    %254 = vector.shape_cast %253 : vector<1x4xf32> to vector<4xf32>
    %255 = vector.shape_cast %254 : vector<4xf32> to vector<1x1x4xf32>
    %256 = vector.broadcast %255 : vector<1x1x4xf32> to vector<16x16x4xf32>
    %257 = arith.mulf %252, %256 : vector<16x16x4xf32>
    %258 = arith.addf %251, %257 : vector<16x16x4xf32>
    %259 = vector.extract_strided_slice %216 {offsets = [6, 0, 0], sizes = [16, 16, 4], strides = [1, 1, 1]} : vector<22x16x4xf32> to vector<16x16x4xf32>
    %260 = vector.extract_strided_slice %10 {offsets = [46, 0], sizes = [1, 4], strides = [1, 1]} : vector<49x4xf32> to vector<1x4xf32>
    %261 = vector.shape_cast %260 : vector<1x4xf32> to vector<4xf32>
    %262 = vector.shape_cast %261 : vector<4xf32> to vector<1x1x4xf32>
    %263 = vector.broadcast %262 : vector<1x1x4xf32> to vector<16x16x4xf32>
    %264 = arith.mulf %259, %263 : vector<16x16x4xf32>
    %265 = arith.addf %258, %264 : vector<16x16x4xf32>
    %266 = arith.index_cast %4 : i32 to index
    %c5 = arith.constant 5 : index
    %c0_10 = arith.constant 0 : index
    %267 = vector.load %arg7[%266, %c5, %c0_10] : memref<22x22x4xf32, #tpu.memory_space<vmem>>, vector<22x16x4xf32>
    %268 = vector.extract_strided_slice %267 {offsets = [0, 0, 0], sizes = [16, 16, 4], strides = [1, 1, 1]} : vector<22x16x4xf32> to vector<16x16x4xf32>
    %269 = vector.extract_strided_slice %10 {offsets = [5, 0], sizes = [1, 4], strides = [1, 1]} : vector<49x4xf32> to vector<1x4xf32>
    %270 = vector.shape_cast %269 : vector<1x4xf32> to vector<4xf32>
    %271 = vector.shape_cast %270 : vector<4xf32> to vector<1x1x4xf32>
    %272 = vector.broadcast %271 : vector<1x1x4xf32> to vector<16x16x4xf32>
    %273 = arith.mulf %268, %272 : vector<16x16x4xf32>
    %274 = arith.addf %265, %273 : vector<16x16x4xf32>
    %275 = vector.extract_strided_slice %267 {offsets = [1, 0, 0], sizes = [16, 16, 4], strides = [1, 1, 1]} : vector<22x16x4xf32> to vector<16x16x4xf32>
    %276 = vector.extract_strided_slice %10 {offsets = [12, 0], sizes = [1, 4], strides = [1, 1]} : vector<49x4xf32> to vector<1x4xf32>
    %277 = vector.shape_cast %276 : vector<1x4xf32> to vector<4xf32>
    %278 = vector.shape_cast %277 : vector<4xf32> to vector<1x1x4xf32>
    %279 = vector.broadcast %278 : vector<1x1x4xf32> to vector<16x16x4xf32>
    %280 = arith.mulf %275, %279 : vector<16x16x4xf32>
    %281 = arith.addf %274, %280 : vector<16x16x4xf32>
    %282 = vector.extract_strided_slice %267 {offsets = [2, 0, 0], sizes = [16, 16, 4], strides = [1, 1, 1]} : vector<22x16x4xf32> to vector<16x16x4xf32>
    %283 = vector.extract_strided_slice %10 {offsets = [19, 0], sizes = [1, 4], strides = [1, 1]} : vector<49x4xf32> to vector<1x4xf32>
    %284 = vector.shape_cast %283 : vector<1x4xf32> to vector<4xf32>
    %285 = vector.shape_cast %284 : vector<4xf32> to vector<1x1x4xf32>
    %286 = vector.broadcast %285 : vector<1x1x4xf32> to vector<16x16x4xf32>
    %287 = arith.mulf %282, %286 : vector<16x16x4xf32>
    %288 = arith.addf %281, %287 : vector<16x16x4xf32>
    %289 = vector.extract_strided_slice %267 {offsets = [3, 0, 0], sizes = [16, 16, 4], strides = [1, 1, 1]} : vector<22x16x4xf32> to vector<16x16x4xf32>
    %290 = vector.extract_strided_slice %10 {offsets = [26, 0], sizes = [1, 4], strides = [1, 1]} : vector<49x4xf32> to vector<1x4xf32>
    %291 = vector.shape_cast %290 : vector<1x4xf32> to vector<4xf32>
    %292 = vector.shape_cast %291 : vector<4xf32> to vector<1x1x4xf32>
    %293 = vector.broadcast %292 : vector<1x1x4xf32> to vector<16x16x4xf32>
    %294 = arith.mulf %289, %293 : vector<16x16x4xf32>
    %295 = arith.addf %288, %294 : vector<16x16x4xf32>
    %296 = vector.extract_strided_slice %267 {offsets = [4, 0, 0], sizes = [16, 16, 4], strides = [1, 1, 1]} : vector<22x16x4xf32> to vector<16x16x4xf32>
    %297 = vector.extract_strided_slice %10 {offsets = [33, 0], sizes = [1, 4], strides = [1, 1]} : vector<49x4xf32> to vector<1x4xf32>
    %298 = vector.shape_cast %297 : vector<1x4xf32> to vector<4xf32>
    %299 = vector.shape_cast %298 : vector<4xf32> to vector<1x1x4xf32>
    %300 = vector.broadcast %299 : vector<1x1x4xf32> to vector<16x16x4xf32>
    %301 = arith.mulf %296, %300 : vector<16x16x4xf32>
    %302 = arith.addf %295, %301 : vector<16x16x4xf32>
    %303 = vector.extract_strided_slice %267 {offsets = [5, 0, 0], sizes = [16, 16, 4], strides = [1, 1, 1]} : vector<22x16x4xf32> to vector<16x16x4xf32>
    %304 = vector.extract_strided_slice %10 {offsets = [40, 0], sizes = [1, 4], strides = [1, 1]} : vector<49x4xf32> to vector<1x4xf32>
    %305 = vector.shape_cast %304 : vector<1x4xf32> to vector<4xf32>
    %306 = vector.shape_cast %305 : vector<4xf32> to vector<1x1x4xf32>
    %307 = vector.broadcast %306 : vector<1x1x4xf32> to vector<16x16x4xf32>
    %308 = arith.mulf %303, %307 : vector<16x16x4xf32>
    %309 = arith.addf %302, %308 : vector<16x16x4xf32>
    %310 = vector.extract_strided_slice %267 {offsets = [6, 0, 0], sizes = [16, 16, 4], strides = [1, 1, 1]} : vector<22x16x4xf32> to vector<16x16x4xf32>
    %311 = vector.extract_strided_slice %10 {offsets = [47, 0], sizes = [1, 4], strides = [1, 1]} : vector<49x4xf32> to vector<1x4xf32>
    %312 = vector.shape_cast %311 : vector<1x4xf32> to vector<4xf32>
    %313 = vector.shape_cast %312 : vector<4xf32> to vector<1x1x4xf32>
    %314 = vector.broadcast %313 : vector<1x1x4xf32> to vector<16x16x4xf32>
    %315 = arith.mulf %310, %314 : vector<16x16x4xf32>
    %316 = arith.addf %309, %315 : vector<16x16x4xf32>
    %317 = arith.index_cast %4 : i32 to index
    %c6 = arith.constant 6 : index
    %c0_11 = arith.constant 0 : index
    %318 = vector.load %arg7[%317, %c6, %c0_11] : memref<22x22x4xf32, #tpu.memory_space<vmem>>, vector<22x16x4xf32>
    %319 = vector.extract_strided_slice %318 {offsets = [0, 0, 0], sizes = [16, 16, 4], strides = [1, 1, 1]} : vector<22x16x4xf32> to vector<16x16x4xf32>
    %320 = vector.extract_strided_slice %10 {offsets = [6, 0], sizes = [1, 4], strides = [1, 1]} : vector<49x4xf32> to vector<1x4xf32>
    %321 = vector.shape_cast %320 : vector<1x4xf32> to vector<4xf32>
    %322 = vector.shape_cast %321 : vector<4xf32> to vector<1x1x4xf32>
    %323 = vector.broadcast %322 : vector<1x1x4xf32> to vector<16x16x4xf32>
    %324 = arith.mulf %319, %323 : vector<16x16x4xf32>
    %325 = arith.addf %316, %324 : vector<16x16x4xf32>
    %326 = vector.extract_strided_slice %318 {offsets = [1, 0, 0], sizes = [16, 16, 4], strides = [1, 1, 1]} : vector<22x16x4xf32> to vector<16x16x4xf32>
    %327 = vector.extract_strided_slice %10 {offsets = [13, 0], sizes = [1, 4], strides = [1, 1]} : vector<49x4xf32> to vector<1x4xf32>
    %328 = vector.shape_cast %327 : vector<1x4xf32> to vector<4xf32>
    %329 = vector.shape_cast %328 : vector<4xf32> to vector<1x1x4xf32>
    %330 = vector.broadcast %329 : vector<1x1x4xf32> to vector<16x16x4xf32>
    %331 = arith.mulf %326, %330 : vector<16x16x4xf32>
    %332 = arith.addf %325, %331 : vector<16x16x4xf32>
    %333 = vector.extract_strided_slice %318 {offsets = [2, 0, 0], sizes = [16, 16, 4], strides = [1, 1, 1]} : vector<22x16x4xf32> to vector<16x16x4xf32>
    %334 = vector.extract_strided_slice %10 {offsets = [20, 0], sizes = [1, 4], strides = [1, 1]} : vector<49x4xf32> to vector<1x4xf32>
    %335 = vector.shape_cast %334 : vector<1x4xf32> to vector<4xf32>
    %336 = vector.shape_cast %335 : vector<4xf32> to vector<1x1x4xf32>
    %337 = vector.broadcast %336 : vector<1x1x4xf32> to vector<16x16x4xf32>
    %338 = arith.mulf %333, %337 : vector<16x16x4xf32>
    %339 = arith.addf %332, %338 : vector<16x16x4xf32>
    %340 = vector.extract_strided_slice %318 {offsets = [3, 0, 0], sizes = [16, 16, 4], strides = [1, 1, 1]} : vector<22x16x4xf32> to vector<16x16x4xf32>
    %341 = vector.extract_strided_slice %10 {offsets = [27, 0], sizes = [1, 4], strides = [1, 1]} : vector<49x4xf32> to vector<1x4xf32>
    %342 = vector.shape_cast %341 : vector<1x4xf32> to vector<4xf32>
    %343 = vector.shape_cast %342 : vector<4xf32> to vector<1x1x4xf32>
    %344 = vector.broadcast %343 : vector<1x1x4xf32> to vector<16x16x4xf32>
    %345 = arith.mulf %340, %344 : vector<16x16x4xf32>
    %346 = arith.addf %339, %345 : vector<16x16x4xf32>
    %347 = vector.extract_strided_slice %318 {offsets = [4, 0, 0], sizes = [16, 16, 4], strides = [1, 1, 1]} : vector<22x16x4xf32> to vector<16x16x4xf32>
    %348 = vector.extract_strided_slice %10 {offsets = [34, 0], sizes = [1, 4], strides = [1, 1]} : vector<49x4xf32> to vector<1x4xf32>
    %349 = vector.shape_cast %348 : vector<1x4xf32> to vector<4xf32>
    %350 = vector.shape_cast %349 : vector<4xf32> to vector<1x1x4xf32>
    %351 = vector.broadcast %350 : vector<1x1x4xf32> to vector<16x16x4xf32>
    %352 = arith.mulf %347, %351 : vector<16x16x4xf32>
    %353 = arith.addf %346, %352 : vector<16x16x4xf32>
    %354 = vector.extract_strided_slice %318 {offsets = [5, 0, 0], sizes = [16, 16, 4], strides = [1, 1, 1]} : vector<22x16x4xf32> to vector<16x16x4xf32>
    %355 = vector.extract_strided_slice %10 {offsets = [41, 0], sizes = [1, 4], strides = [1, 1]} : vector<49x4xf32> to vector<1x4xf32>
    %356 = vector.shape_cast %355 : vector<1x4xf32> to vector<4xf32>
    %357 = vector.shape_cast %356 : vector<4xf32> to vector<1x1x4xf32>
    %358 = vector.broadcast %357 : vector<1x1x4xf32> to vector<16x16x4xf32>
    %359 = arith.mulf %354, %358 : vector<16x16x4xf32>
    %360 = arith.addf %353, %359 : vector<16x16x4xf32>
    %361 = vector.extract_strided_slice %318 {offsets = [6, 0, 0], sizes = [16, 16, 4], strides = [1, 1, 1]} : vector<22x16x4xf32> to vector<16x16x4xf32>
    %362 = vector.extract_strided_slice %10 {offsets = [48, 0], sizes = [1, 4], strides = [1, 1]} : vector<49x4xf32> to vector<1x4xf32>
    %363 = vector.shape_cast %362 : vector<1x4xf32> to vector<4xf32>
    %364 = vector.shape_cast %363 : vector<4xf32> to vector<1x1x4xf32>
    %365 = vector.broadcast %364 : vector<1x1x4xf32> to vector<16x16x4xf32>
    %366 = arith.mulf %361, %365 : vector<16x16x4xf32>
    %367 = arith.addf %360, %366 : vector<16x16x4xf32>
    %c0_12 = arith.constant 0 : index
    %c0_13 = arith.constant 0 : index
    %c0_14 = arith.constant 0 : index
    %c0_15 = arith.constant 0 : index
    %368 = vector.load %arg6[%c0_12, %c0_13, %c0_14, %c0_15] : memref<1x16x16x4xf32, #tpu.memory_space<vmem>>, vector<1x16x16x4xf32>
    %369 = vector.shape_cast %368 : vector<1x16x16x4xf32> to vector<16x16x4xf32>
    %370 = vector.shape_cast %367 : vector<16x16x4xf32> to vector<1x16x16x4xf32>
    tpu.vector_store %arg6[%c0_12, %c0_13, %c0_14, %c0_15], %370 {strides = array<i32>} : memref<1x16x16x4xf32, #tpu.memory_space<vmem>>, vector<1x16x16x4xf32>,
    return
  }
  func.func @transform_0(%arg0: i32, %arg1: i32, %arg2: i32) -> (i32, i32, i32, i32) {
    %c0_i32 = arith.constant 0 : i32
    %c0_i32_0 = arith.constant 0 : i32
    %c0_i32_1 = arith.constant 0 : i32
    return %arg0, %c0_i32, %c0_i32_0, %arg1 : i32, i32, i32, i32
  }
  func.func @transform_1(%arg0: i32, %arg1: i32, %arg2: i32) -> (i32, i32) {
    %c0_i32 = arith.constant 0 : i32
    %c0_i32_0 = arith.constant 0 : i32
    return %c0_i32, %arg1 : i32, i32
  }
  func.func @transform_2(%arg0: i32, %arg1: i32, %arg2: i32) -> (i32, i32) {
    %c0_i32 = arith.constant 0 : i32
    %c0_i32_0 = arith.constant 0 : i32
    return %c0_i32, %arg1 : i32, i32
  }
  func.func @transform_3(%arg0: i32, %arg1: i32, %arg2: i32) -> (i32, i32, i32, i32) {
    %c0_i32 = arith.constant 0 : i32
    %c0_i32_0 = arith.constant 0 : i32
    return %arg0, %arg2, %c0_i32, %arg1 : i32, i32, i32, i32
  }
}

</mosaic_0001>

<llo_original>
// kernel: tpu_custom_call.1
$region0: #{tpu_custom_call.1}
  #allocation0 [shape = 'u32[]', space=smem, size = 0x4, offset = 0x4, fixed_abs, tag = 'smem constant byte address 0x4 - core index']
  #allocation1 [shape = 'u32[144,128]{1,0:T(1,128)}', space=vmem, size = 0x12000, scoped, tag = 'internal scratch']
  #allocation2 [shape = 'f32[22,22,4]{2,1,0:T(8,128)}', space=vmem, size = 0x42000, scoped, tag = 'scratch operand']
  %s0 = inlined_call_operand.hbm [shape: f32[2,16,16,4], index: 0, kind: input, shape index: {}]
  %s1 = inlined_call_operand.hbm [shape: f32[49,4], index: 1, kind: input, shape index: {}]
  %s2 = inlined_call_operand.hbm [shape: f32[1,4], index: 2, kind: input, shape index: {}]
  %s3 = inlined_call_operand.hbm [shape: f32[2,16,16,4], index: 3, kind: output, shape index: {}]
  %s4 = sld [smem:[#allocation0]]
  $region61: #{tpu_custom_call.1} parent=0
    _
  %s6 = ssub.s32 1, %s4
  %s7 = scalar_select 0, %s6, %s4
  $region1: #{tpu_custom_call.1} parent=0
    #allocation3 [shape = 'u8[262144]{0}', space=vmem, size = 0x40000, scoped, tag = 'input window, operand 0']
    #allocation4 [shape = 's32[2]{0}', space=sflag, size = 0x8, scoped, tag = 'scoped memory for tpu_custom_call.1']
    #allocation5 [shape = 's32[2]{0}', space=sflag, size = 0x8, scoped, tag = 'scoped memory for tpu_custom_call.1']
    #allocation6 [shape = 'u8[28672]{0}', space=vmem, size = 0x7000, scoped, tag = 'input window, operand 1, single buffered']
    #allocation7 [shape = 's32[1]{0}', space=sflag, size = 0x4, scoped, tag = 'scoped memory for tpu_custom_call.1']
    #allocation8 [shape = 'u8[512]{0}', space=vmem, size = 0x400, scoped, tag = 'input window, operand 2, single buffered']
    #allocation9 [shape = 'u8[262144]{0}', space=vmem, size = 0x40000, scoped, tag = 'output window, operand 0']
    %8 = vsyncpa [#allocation4], 0
    %s9 = scalar_lea.sflag [#allocation4], 1
    %10 = vsyncpa %s9, 0
    %11 = vsyncpa [#allocation7], 0
    %12 = vsyncpa [#allocation5], 0
    %s13 = scalar_lea.sflag [#allocation5], 1
    %14 = vsyncpa %s13, 0
    loop: start=0, step=1, limit=4
    $region2: #{tpu_custom_call.1} parent=1 // loop_pre_header
      _
    $region3: #{tpu_custom_call.1} parent=1 // loop_header
      %s16 = sphi 0, %s20
      %p17 = scmp.ge.s32.totalorder %s16, 4
      %s23 = sphi 0, %s42
      %s24 = sphi 0, %s38
      %s25 = sphi 0, %s34
      %s26 = sphi 0, %s23
      %s27 = sphi 0, %s24
      %s28 = sphi 0, %s25
      %s29 = sphi 0, %s26
      %s30 = sphi 0, %s27
      %s31 = sphi 0, %s28
      %s47 = sphi 0, %s49
      %s50 = sphi 0, %s47
      %s51 = sphi 0, %s50
      %s67 = sphi 0, %s51
      %s73 = sphi 0, %s75
      %s76 = sphi 0, %s73
      %s77 = sphi 0, %s76
      %s93 = sphi 0, %s77
      %s99 = sphi 0, %s101
      %s102 = sphi 0, %s99
      %s103 = sphi 0, %s102
      %s119 = sphi 0, %s103
      %s129 = sphi 0, %s131
      %s132 = sphi 0, %s129
      %s133 = sphi 0, %s132
      %s149 = sphi 0, %s133
    $region4: #{tpu_custom_call.1} parent=1 // loop_header_branch
      %19 = sbr.rel (%p17) target = $region8
    $region5: #{tpu_custom_call.1} parent=1 // loop_body
      %s21 = ssub.s32 %s16, 1
      %s22 = ssub.s32 %s16, 2
      %s32 = sadd.s32 1, %s25
      %p33 = scmp.ge.s32.totalorder %s32, 1
      %s34 = scalar_select %p33, 0, %s32
      %s35 = sadd.s32 1, %s24
      %s36 = scalar_select %p33, %s35, %s24
      %p37 = scmp.ge.s32.totalorder %s36, 1
      %s38 = scalar_select %p37, 0, %s36
      %s39 = sadd.s32 1, %s23
      %s40 = scalar_select %p37, %s39, %s23
      %p41 = scmp.ge.s32.totalorder %s40, 2
      %s42 = scalar_select %p41, 0, %s40
      %s43 = ssub.s32 %s23, %s42
      %s44 = ssub.s32 %s24, %s38
      %s45 = sor.u32 %s43, %s44
      %p46 = scmp.eq.s32.totalorder %s45, 0
      %s48 = sadd.s32 %s47, 1
      %s49 = scalar_select %p46, %s47, %s48
      %p52 = pneg %p46
      %p53 = scmp.eq.s32.totalorder %s16, 1
      %p54 = por %p52, %p53
      %p55 = scmp.ne.s32.totalorder %s47, %s50
      %p56 = scmp.eq.s32.totalorder %s16, 0
      %p57 = por %p55, %p56
      %p58 = scmp.ne.s32.totalorder %s47, %s50
      %p59 = scmp.eq.s32.totalorder %s21, 1
      %p60 = por %p58, %p59
      %p61 = scmp.ne.s32.totalorder %s50, %s51
      %p62 = scmp.eq.s32.totalorder %s21, 0
      %p63 = por %p61, %p62
      %p64 = scmp.ne.s32.totalorder %s50, %s51
      %p65 = scmp.eq.s32.totalorder %s22, 1
      %p66 = por %p64, %p65
      %p68 = scmp.ne.s32.totalorder %s51, %s67
      %p69 = scmp.eq.s32.totalorder %s22, 0
      %p70 = por %p68, %p69
      %s71 = ssub.s32 %s24, %s38
      %p72 = scmp.eq.s32.totalorder %s71, 0
      %s74 = sadd.s32 %s73, 1
      %s75 = scalar_select %p72, %s73, %s74
      %p78 = pneg %p72
      %p79 = scmp.eq.s32.totalorder %s16, 1
      %p80 = por %p78, %p79
      %p81 = scmp.ne.s32.totalorder %s73, %s76
      %p82 = scmp.eq.s32.totalorder %s16, 0
      %p83 = por %p81, %p82
      %p84 = scmp.ne.s32.totalorder %s73, %s76
      %p85 = scmp.eq.s32.totalorder %s21, 1
      %p86 = por %p84, %p85
      %p87 = scmp.ne.s32.totalorder %s76, %s77
      %p88 = scmp.eq.s32.totalorder %s21, 0
      %p89 = por %p87, %p88
      %p90 = scmp.ne.s32.totalorder %s76, %s77
      %p91 = scmp.eq.s32.totalorder %s22, 1
      %p92 = por %p90, %p91
      %p94 = scmp.ne.s32.totalorder %s77, %s93
      %p95 = scmp.eq.s32.totalorder %s22, 0
      %p96 = por %p94, %p95
      %s97 = ssub.s32 %s24, %s38
      %p98 = scmp.eq.s32.totalorder %s97, 0
      %s100 = sadd.s32 %s99, 1
      %s101 = scalar_select %p98, %s99, %s100
      %p104 = pneg %p98
      %p105 = scmp.eq.s32.totalorder %s16, 1
      %p106 = por %p104, %p105
      %p107 = scmp.ne.s32.totalorder %s99, %s102
      %p108 = scmp.eq.s32.totalorder %s16, 0
      %p109 = por %p107, %p108
      %p110 = scmp.ne.s32.totalorder %s99, %s102
      %p111 = scmp.eq.s32.totalorder %s21, 1
      %p112 = por %p110, %p111
      %p113 = scmp.ne.s32.totalorder %s102, %s103
      %p114 = scmp.eq.s32.totalorder %s21, 0
      %p115 = por %p113, %p114
      %p116 = scmp.ne.s32.totalorder %s102, %s103
      %p117 = scmp.eq.s32.totalorder %s22, 1
      %p118 = por %p116, %p117
      %p120 = scmp.ne.s32.totalorder %s103, %s119
      %p121 = scmp.eq.s32.totalorder %s22, 0
      %p122 = por %p120, %p121
      %s123 = ssub.s32 %s23, %s42
      %s124 = ssub.s32 %s25, %s34
      %s125 = sor.u32 %s123, %s124
      %s126 = ssub.s32 %s24, %s38
      %s127 = sor.u32 %s125, %s126
      %p128 = scmp.eq.s32.totalorder %s127, 0
      %s130 = sadd.s32 %s129, 1
      %s131 = scalar_select %p128, %s129, %s130
      %p134 = pneg %p128
      %p135 = scmp.eq.s32.totalorder %s16, 1
      %p136 = por %p134, %p135
      %p137 = scmp.ne.s32.totalorder %s129, %s132
      %p138 = scmp.eq.s32.totalorder %s16, 0
      %p139 = por %p137, %p138
      %p140 = scmp.ne.s32.totalorder %s129, %s132
      %p141 = scmp.eq.s32.totalorder %s21, 1
      %p142 = por %p140, %p141
      %p143 = scmp.ne.s32.totalorder %s132, %s133
      %p144 = scmp.eq.s32.totalorder %s21, 0
      %p145 = por %p143, %p144
      %p146 = scmp.ne.s32.totalorder %s132, %s133
      %p147 = scmp.eq.s32.totalorder %s22, 1
      %p148 = por %p146, %p147
      %p150 = scmp.ne.s32.totalorder %s133, %s149
      %p151 = scmp.eq.s32.totalorder %s22, 0
      %p152 = por %p150, %p151
      %p153 = scmp.le.s32.totalorder 1, %s16
      %p154 = scmp.lt.s32.totalorder %s16, 3
      %p155 = pnand %p153, %p154
      %p156 = pneg %p155
      // Predicated region
      $region9: #{tpu_custom_call.1} parent=5 // pred_check
        _
      $region10: #{tpu_custom_call.1} parent=5 // pred_check_branch
        %158 = sbr.rel (%p155) target = $region12
      $region11: #{tpu_custom_call.1} parent=5 // pred_region
        %s159 = ssub.s32 %s16, 1
        // Predicated region
        $region13: #{tpu_custom_call.1} parent=11 // pred_check
          %p160 = pneg %p89
        $region14: #{tpu_custom_call.1} parent=11 // pred_check_branch
          %162 = sbr.rel (%p160) target = $region16
        $region15: #{tpu_custom_call.1} parent=11 // pred_region
          %s164 = ssub.s32 896, 896
          %165 = vsyncadd [#allocation7], %s164
          %s166 = smul.addr %s27, 128
          %s167 = scalar_lea.hbm %s1, %s166
          %s168 = sshll.u32 [#allocation6], 4
          %s169 = int_to_ptr.vmem [resolvable:$true] %s168
          %174 = dma.hbm_to_vmem [thread:$0]  %s167, 896, %s169, [#allocation7], 128, 128, 8
        $region16: #{tpu_custom_call.1} parent=11 // pred_fallthru
          _
        // Predicated region
        $region17: #{tpu_custom_call.1} parent=11 // pred_check
          %p175 = pneg %p115
        $region18: #{tpu_custom_call.1} parent=11 // pred_check_branch
          %177 = sbr.rel (%p175) target = $region20
        $region19: #{tpu_custom_call.1} parent=11 // pred_region
          %s179 = ssub.s32 16, 16
          %180 = vsyncadd [#allocation7], %s179
          %s181 = smul.addr %s27, 16
          %s182 = scalar_lea.hbm %s2, %s181
          %s184 = sshll.u32 [#allocation8], 4
          %s185 = int_to_ptr.vmem [resolvable:$true] %s184
          %187 = dma.hbm_to_vmem [thread:$0]  %s182, 16, %s185, [#allocation7]
        $region20: #{tpu_custom_call.1} parent=11 // pred_fallthru
          _
      $region12: #{tpu_custom_call.1} parent=5 // pred_fallthru
        _
      %p188 = scmp.lt.s32.totalorder %s16, 2
      // Predicated region
      $region21: #{tpu_custom_call.1} parent=5 // pred_check
        %p189 = pneg %p188
      $region22: #{tpu_custom_call.1} parent=5 // pred_check_branch
        %191 = sbr.rel (%p189) target = $region24
      $region23: #{tpu_custom_call.1} parent=5 // pred_region
        // Predicated region
        $region25: #{tpu_custom_call.1} parent=23 // pred_check
          %p192 = pneg %p57
        $region26: #{tpu_custom_call.1} parent=23 // pred_check_branch
          %194 = sbr.rel (%p192) target = $region28
        $region27: #{tpu_custom_call.1} parent=23 // pred_region
          %s195 = sand.u32 %s47, 1
          %s196 = scalar_lea.sflag [#allocation4], %s195
          %s197 = sand.u32 %s47, 1
          %s198 = smul.addr %s197, 256
          %s199 = scalar_lea.vmem [#allocation3], %s198
          %s201 = ssub.s32 4096, 4096
          %202 = vsyncadd %s196, %s201
          %s203 = smul.addr %s23, 32
          %s204 = sadd.s32 %s24, %s203
          %s205 = smul.addr %s204, 128
          %s206 = scalar_lea.hbm %s0, %s205
          %s207 = sshll.u32 %s199, 4
          %s208 = int_to_ptr.vmem [resolvable:$true] %s207
          %213 = dma.hbm_to_vmem [thread:$0]  %s206, 4096, %s208, %s196, 128, 128, 8
        $region28: #{tpu_custom_call.1} parent=23 // pred_fallthru
          _
      $region24: #{tpu_custom_call.1} parent=5 // pred_fallthru
        _
      %p214 = scmp.le.s32.totalorder 1, %s16
      %p215 = scmp.lt.s32.totalorder %s16, 3
      %p216 = pnand %p214, %p215
      %p217 = pneg %p216
      // Predicated region
      $region29: #{tpu_custom_call.1} parent=5 // pred_check
        _
      $region30: #{tpu_custom_call.1} parent=5 // pred_check_branch
        %219 = sbr.rel (%p216) target = $region32
      $region31: #{tpu_custom_call.1} parent=5 // pred_region
        %s220 = ssub.s32 %s16, 1
        %s221 = sand.u32 %s50, 1
        %s222 = scalar_lea.sflag [#allocation4], %s221
        %s223 = sand.u32 %s50, 1
        %s224 = smul.addr %s223, 256
        %s225 = scalar_lea.vmem [#allocation3], %s224
        // Predicated region
        $region33: #{tpu_custom_call.1} parent=31 // pred_check
          %p226 = pneg %p63
        $region34: #{tpu_custom_call.1} parent=31 // pred_check_branch
          %228 = sbr.rel (%p226) target = $region36
        $region35: #{tpu_custom_call.1} parent=31 // pred_region
          %229 = dma.done %s222, 4096
        $region36: #{tpu_custom_call.1} parent=31 // pred_fallthru
          _
        // Predicated region
        $region37: #{tpu_custom_call.1} parent=31 // pred_check
          %p230 = pneg %p89
        $region38: #{tpu_custom_call.1} parent=31 // pred_check_branch
          %232 = sbr.rel (%p230) target = $region40
        $region39: #{tpu_custom_call.1} parent=31 // pred_region
          %233 = dma.done [#allocation7], 896
        $region40: #{tpu_custom_call.1} parent=31 // pred_fallthru
          _
        // Predicated region
        $region41: #{tpu_custom_call.1} parent=31 // pred_check
          %p234 = pneg %p115
        $region42: #{tpu_custom_call.1} parent=31 // pred_check_branch
          %236 = sbr.rel (%p234) target = $region44
        $region43: #{tpu_custom_call.1} parent=31 // pred_region
          %237 = dma.done [#allocation7], 16
        $region44: #{tpu_custom_call.1} parent=31 // pred_fallthru
          _
        %s238 = sand.u32 %s50, 1
        %s239 = scalar_lea.sflag [#allocation4], %s238
        %s240 = sand.u32 %s50, 1
        %s241 = smul.addr %s240, 256
        %s242 = scalar_lea.vmem [#allocation3], %s241
        %p243 = pneg %p63
        %p244 = pneg %p60
        %p245 = pneg %p89
        %p246 = pneg %p86
        %p247 = pneg %p115
        %p248 = pneg %p112
        %p249 = pneg %p145
        %p250 = pneg %p142
        %s251 = sand.u32 %s132, 1
        %s252 = scalar_lea.sflag [#allocation5], %s251
        %s253 = sand.u32 %s132, 1
        %s254 = smul.addr %s253, 256
        %s255 = scalar_lea.vmem [#allocation9], %s254
        %s256 = smul.u32 16, %s28
        %p257 = scmp.eq.s32.totalorder %s28, 0
        // Predicated region
        $region45: #{tpu_custom_call.1} parent=31 // pred_check
          %p258 = pneg %p257
        $region46: #{tpu_custom_call.1} parent=31 // pred_check_branch
          %260 = sbr.rel (%p258) target = $region48
        $region47: #{tpu_custom_call.1} parent=31 // pred_region
          %vm261 = vcmask 31744
          %262 = vst.msk [vmem:[#allocation2] sm:$0xff] %vm261, 0.0
          %263 = vst.msk [vmem:[#allocation2 + $0x8] sm:$0xff] %vm261, 0.0
          %vm264 = vcmask 29696
          %265 = vst.msk [vmem:[#allocation2 + $0x10] sm:$0x3f] %vm264, 0.0
          %266 = vst.msk [vmem:[#allocation2 + $0x18] sm:$0xff] %vm261, 0.0
          %267 = vst.msk [vmem:[#allocation2 + $0x20] sm:$0xff] %vm261, 0.0
          %268 = vst.msk [vmem:[#allocation2 + $0x28] sm:$0x3f] %vm264, 0.0
          %269 = vst.msk [vmem:[#allocation2 + $0x30] sm:$0xff] %vm261, 0.0
          %270 = vst.msk [vmem:[#allocation2 + $0x38] sm:$0xff] %vm261, 0.0
          %271 = vst.msk [vmem:[#allocation2 + $0x40] sm:$0x3f] %vm264, 0.0
          %272 = vst.msk [vmem:[#allocation2 + $0x48] sm:$0xff] %vm261, 0.0
          %273 = vst.msk [vmem:[#allocation2 + $0x50] sm:$0xff] %vm261, 0.0
          %274 = vst.msk [vmem:[#allocation2 + $0x58] sm:$0x3f] %vm264, 0.0
          %275 = vst.msk [vmem:[#allocation2 + $0x60] sm:$0xff] %vm261, 0.0
          %276 = vst.msk [vmem:[#allocation2 + $0x68] sm:$0xff] %vm261, 0.0
          %277 = vst.msk [vmem:[#allocation2 + $0x70] sm:$0x3f] %vm264, 0.0
          %278 = vst.msk [vmem:[#allocation2 + $0x78] sm:$0xff] %vm261, 0.0
          %279 = vst.msk [vmem:[#allocation2 + $0x80] sm:$0xff] %vm261, 0.0
          %280 = vst.msk [vmem:[#allocation2 + $0x88] sm:$0x3f] %vm264, 0.0
          %281 = vst.msk [vmem:[#allocation2 + $0x90] sm:$0xff] %vm261, 0.0
          %282 = vst.msk [vmem:[#allocation2 + $0x98] sm:$0xff] %vm261, 0.0
          %283 = vst.msk [vmem:[#allocation2 + $0xa0] sm:$0x3f] %vm264, 0.0
          %284 = vst.msk [vmem:[#allocation2 + $0xa8] sm:$0xff] %vm261, 0.0
          %285 = vst.msk [vmem:[#allocation2 + $0xb0] sm:$0xff] %vm261, 0.0
          %286 = vst.msk [vmem:[#allocation2 + $0xb8] sm:$0x3f] %vm264, 0.0
          %287 = vst.msk [vmem:[#allocation2 + $0xc0] sm:$0xff] %vm261, 0.0
          %288 = vst.msk [vmem:[#allocation2 + $0xc8] sm:$0xff] %vm261, 0.0
          %289 = vst.msk [vmem:[#allocation2 + $0xd0] sm:$0x3f] %vm264, 0.0
          %290 = vst.msk [vmem:[#allocation2 + $0xd8] sm:$0xff] %vm261, 0.0
          %291 = vst.msk [vmem:[#allocation2 + $0xe0] sm:$0xff] %vm261, 0.0
          %292 = vst.msk [vmem:[#allocation2 + $0xe8] sm:$0x3f] %vm264, 0.0
          %293 = vst.msk [vmem:[#allocation2 + $0xf0] sm:$0xff] %vm261, 0.0
          %294 = vst.msk [vmem:[#allocation2 + $0xf8] sm:$0xff] %vm261, 0.0
          %295 = vst.msk [vmem:[#allocation2 + $0x100] sm:$0x3f] %vm264, 0.0
          %296 = vst.msk [vmem:[#allocation2 + $0x108] sm:$0xff] %vm261, 0.0
          %297 = vst.msk [vmem:[#allocation2 + $0x110] sm:$0xff] %vm261, 0.0
          %298 = vst.msk [vmem:[#allocation2 + $0x118] sm:$0x3f] %vm264, 0.0
          %299 = vst.msk [vmem:[#allocation2 + $0x120] sm:$0xff] %vm261, 0.0
          %300 = vst.msk [vmem:[#allocation2 + $0x128] sm:$0xff] %vm261, 0.0
          %301 = vst.msk [vmem:[#allocation2 + $0x130] sm:$0x3f] %vm264, 0.0
          %302 = vst.msk [vmem:[#allocation2 + $0x138] sm:$0xff] %vm261, 0.0
          %303 = vst.msk [vmem:[#allocation2 + $0x140] sm:$0xff] %vm261, 0.0
          %304 = vst.msk [vmem:[#allocation2 + $0x148] sm:$0x3f] %vm264, 0.0
          %305 = vst.msk [vmem:[#allocation2 + $0x150] sm:$0xff] %vm261, 0.0
          %306 = vst.msk [vmem:[#allocation2 + $0x158] sm:$0xff] %vm261, 0.0
          %307 = vst.msk [vmem:[#allocation2 + $0x160] sm:$0x3f] %vm264, 0.0
          %308 = vst.msk [vmem:[#allocation2 + $0x168] sm:$0xff] %vm261, 0.0
          %309 = vst.msk [vmem:[#allocation2 + $0x170] sm:$0xff] %vm261, 0.0
          %310 = vst.msk [vmem:[#allocation2 + $0x178] sm:$0x3f] %vm264, 0.0
          %311 = vst.msk [vmem:[#allocation2 + $0x180] sm:$0xff] %vm261, 0.0
          %312 = vst.msk [vmem:[#allocation2 + $0x188] sm:$0xff] %vm261, 0.0
          %313 = vst.msk [vmem:[#allocation2 + $0x190] sm:$0x3f] %vm264, 0.0
          %314 = vst.msk [vmem:[#allocation2 + $0x198] sm:$0xff] %vm261, 0.0
          %315 = vst.msk [vmem:[#allocation2 + $0x1a0] sm:$0xff] %vm261, 0.0
          %316 = vst.msk [vmem:[#allocation2 + $0x1a8] sm:$0x3f] %vm264, 0.0
          %317 = vst.msk [vmem:[#allocation2 + $0x1b0] sm:$0xff] %vm261, 0.0
          %318 = vst.msk [vmem:[#allocation2 + $0x1b8] sm:$0xff] %vm261, 0.0
          %319 = vst.msk [vmem:[#allocation2 + $0x1c0] sm:$0x3f] %vm264, 0.0
          %320 = vst.msk [vmem:[#allocation2 + $0x1c8] sm:$0xff] %vm261, 0.0
          %321 = vst.msk [vmem:[#allocation2 + $0x1d0] sm:$0xff] %vm261, 0.0
          %322 = vst.msk [vmem:[#allocation2 + $0x1d8] sm:$0x3f] %vm264, 0.0
          %323 = vst.msk [vmem:[#allocation2 + $0x1e0] sm:$0xff] %vm261, 0.0
          %324 = vst.msk [vmem:[#allocation2 + $0x1e8] sm:$0xff] %vm261, 0.0
          %325 = vst.msk [vmem:[#allocation2 + $0x1f0] sm:$0x3f] %vm264, 0.0
          %326 = vst.msk [vmem:[#allocation2 + $0x1f8] sm:$0xff] %vm261, 0.0
          %327 = vst.msk [vmem:[#allocation2 + $0x200] sm:$0xff] %vm261, 0.0
          %328 = vst.msk [vmem:[#allocation2 + $0x208] sm:$0x3f] %vm264, 0.0
          %v329 = vld [vmem:[%s225] sm:$0xff]
          %v330 = vld [vmem:[%s225 + $0x8] sm:$0xff]
          %v331 = vld [vmem:[%s225 + $0x10] sm:$0xff]
          %v332 = vld [vmem:[%s225 + $0x18] sm:$0xff]
          %v333 = vld [vmem:[%s225 + $0x20] sm:$0xff]
          %v334 = vld [vmem:[%s225 + $0x28] sm:$0xff]
          %v335 = vld [vmem:[%s225 + $0x30] sm:$0xff]
          %v336 = vld [vmem:[%s225 + $0x38] sm:$0xff]
          %v337 = vld [vmem:[%s225 + $0x40] sm:$0xff]
          %v338 = vld [vmem:[%s225 + $0x48] sm:$0xff]
          %v339 = vld [vmem:[%s225 + $0x50] sm:$0xff]
          %v340 = vld [vmem:[%s225 + $0x58] sm:$0xff]
          %v341 = vld [vmem:[%s225 + $0x60] sm:$0xff]
          %v342 = vld [vmem:[%s225 + $0x68] sm:$0xff]
          %v343 = vld [vmem:[%s225 + $0x70] sm:$0xff]
          %v344 = vld [vmem:[%s225 + $0x78] sm:$0xff]
          %v345 = vld [vmem:[%s225 + $0x80] sm:$0xff]
          %v346 = vld [vmem:[%s225 + $0x88] sm:$0xff]
          %v347 = vld [vmem:[%s225 + $0x90] sm:$0xff]
          %v348 = vld [vmem:[%s225 + $0x98] sm:$0xff]
          %v349 = vld [vmem:[%s225 + $0xa0] sm:$0xff]
          %v350 = vld [vmem:[%s225 + $0xa8] sm:$0xff]
          %v351 = vld [vmem:[%s225 + $0xb0] sm:$0xff]
          %v352 = vld [vmem:[%s225 + $0xb8] sm:$0xff]
          %v353 = vld [vmem:[%s225 + $0xc0] sm:$0xff]
          %v354 = vld [vmem:[%s225 + $0xc8] sm:$0xff]
          %v355 = vld [vmem:[%s225 + $0xd0] sm:$0xff]
          %v356 = vld [vmem:[%s225 + $0xd8] sm:$0xff]
          %v357 = vld [vmem:[%s225 + $0xe0] sm:$0xff]
          %v358 = vld [vmem:[%s225 + $0xe8] sm:$0xff]
          %v359 = vld [vmem:[%s225 + $0xf0] sm:$0xff]
          %v360 = vld [vmem:[%s225 + $0xf8] sm:$0xff]
          %s361 = scalar_lea.vmem [#allocation2], 72
          %362 = vst.msk [vmem:[%s361 + $0x3] sm:$0xff] %vm261, %v329
          %363 = vst.msk [vmem:[%s361 + $0xb] sm:$0xff] %vm261, %v330
          %364 = vst.msk [vmem:[%s361 + $0x1b] sm:$0xff] %vm261, %v331
          %365 = vst.msk [vmem:[%s361 + $0x23] sm:$0xff] %vm261, %v332
          %366 = vst.msk [vmem:[%s361 + $0x33] sm:$0xff] %vm261, %v333
          %367 = vst.msk [vmem:[%s361 + $0x3b] sm:$0xff] %vm261, %v334
          %368 = vst.msk [vmem:[%s361 + $0x4b] sm:$0xff] %vm261, %v335
          %369 = vst.msk [vmem:[%s361 + $0x53] sm:$0xff] %vm261, %v336
          %370 = vst.msk [vmem:[%s361 + $0x63] sm:$0xff] %vm261, %v337
          %371 = vst.msk [vmem:[%s361 + $0x6b] sm:$0xff] %vm261, %v338
          %372 = vst.msk [vmem:[%s361 + $0x7b] sm:$0xff] %vm261, %v339
          %373 = vst.msk [vmem:[%s361 + $0x83] sm:$0xff] %vm261, %v340
          %374 = vst.msk [vmem:[%s361 + $0x93] sm:$0xff] %vm261, %v341
          %375 = vst.msk [vmem:[%s361 + $0x9b] sm:$0xff] %vm261, %v342
          %376 = vst.msk [vmem:[%s361 + $0xab] sm:$0xff] %vm261, %v343
          %377 = vst.msk [vmem:[%s361 + $0xb3] sm:$0xff] %vm261, %v344
          %378 = vst.msk [vmem:[%s361 + $0xc3] sm:$0xff] %vm261, %v345
          %379 = vst.msk [vmem:[%s361 + $0xcb] sm:$0xff] %vm261, %v346
          %380 = vst.msk [vmem:[%s361 + $0xdb] sm:$0xff] %vm261, %v347
          %381 = vst.msk [vmem:[%s361 + $0xe3] sm:$0xff] %vm261, %v348
          %382 = vst.msk [vmem:[%s361 + $0xf3] sm:$0xff] %vm261, %v349
          %383 = vst.msk [vmem:[%s361 + $0xfb] sm:$0xff] %vm261, %v350
          %384 = vst.msk [vmem:[%s361 + $0x10b] sm:$0xff] %vm261, %v351
          %385 = vst.msk [vmem:[%s361 + $0x113] sm:$0xff] %vm261, %v352
          %386 = vst.msk [vmem:[%s361 + $0x123] sm:$0xff] %vm261, %v353
          %387 = vst.msk [vmem:[%s361 + $0x12b] sm:$0xff] %vm261, %v354
          %388 = vst.msk [vmem:[%s361 + $0x13b] sm:$0xff] %vm261, %v355
          %389 = vst.msk [vmem:[%s361 + $0x143] sm:$0xff] %vm261, %v356
          %390 = vst.msk [vmem:[%s361 + $0x153] sm:$0xff] %vm261, %v357
          %391 = vst.msk [vmem:[%s361 + $0x15b] sm:$0xff] %vm261, %v358
          %392 = vst.msk [vmem:[%s361 + $0x16b] sm:$0xff] %vm261, %v359
          %393 = vst.msk [vmem:[%s361 + $0x173] sm:$0xff] %vm261, %v360
        $region48: #{tpu_custom_call.1} parent=31 // pred_fallthru
          _
        %s394 = smul.u32 %s28, 16
        %v395 = vld [vmem:[#allocation8] sm:$0x1]
        %v397 = vlaneseq
        %v398 = vshrl.u32 %v397, 7
        %v399 = vsub.s32 0, %v398
        %v400 = vrot.slane %v395, %v399
        %v402 = vld [vmem:[#allocation6] sm:$0xff]
        %v403 = vld [vmem:[#allocation6 + $0x8] sm:$0xff]
        %v404 = vld [vmem:[#allocation6 + $0x10] sm:$0xff]
        %v405 = vld [vmem:[#allocation6 + $0x18] sm:$0xff]
        %v406 = vld [vmem:[#allocation6 + $0x20] sm:$0xff]
        %v407 = vld [vmem:[#allocation6 + $0x28] sm:$0xff]
        %v408 = vld [vmem:[#allocation6 + $0x30] sm:$0x1]
        %s409 = smul.u32 %s394, 24
        %s410 = scalar_lea.vmem [#allocation2], %s409
        %v411 = vld [vmem:[%s410] sm:$0xff]
        %v412 = vld [vmem:[%s410 + $0x8] sm:$0xff]
        %v413 = vld [vmem:[%s410 + $0x18] sm:$0xff]
        %v414 = vld [vmem:[%s410 + $0x20] sm:$0xff]
        %v415 = vld [vmem:[%s410 + $0x30] sm:$0xff]
        %v416 = vld [vmem:[%s410 + $0x38] sm:$0xff]
        %v417 = vld [vmem:[%s410 + $0x48] sm:$0xff]
        %v418 = vld [vmem:[%s410 + $0x50] sm:$0xff]
        %v419 = vld [vmem:[%s410 + $0x60] sm:$0xff]
        %v420 = vld [vmem:[%s410 + $0x68] sm:$0xff]
        %v421 = vld [vmem:[%s410 + $0x78] sm:$0xff]
        %v422 = vld [vmem:[%s410 + $0x80] sm:$0xff]
        %v423 = vld [vmem:[%s410 + $0x90] sm:$0xff]
        %v424 = vld [vmem:[%s410 + $0x98] sm:$0xff]
        %v425 = vld [vmem:[%s410 + $0xa8] sm:$0xff]
        %v426 = vld [vmem:[%s410 + $0xb0] sm:$0xff]
        %v427 = vld [vmem:[%s410 + $0xc0] sm:$0xff]
        %v428 = vld [vmem:[%s410 + $0xc8] sm:$0xff]
        %v429 = vld [vmem:[%s410 + $0xd8] sm:$0xff]
        %v430 = vld [vmem:[%s410 + $0xe0] sm:$0xff]
        %v431 = vld [vmem:[%s410 + $0xf0] sm:$0xff]
        %v432 = vld [vmem:[%s410 + $0xf8] sm:$0xff]
        %v433 = vld [vmem:[%s410 + $0x108] sm:$0xff]
        %v434 = vld [vmem:[%s410 + $0x110] sm:$0xff]
        %v435 = vld [vmem:[%s410 + $0x120] sm:$0xff]
        %v436 = vld [vmem:[%s410 + $0x128] sm:$0xff]
        %v437 = vld [vmem:[%s410 + $0x138] sm:$0xff]
        %v438 = vld [vmem:[%s410 + $0x140] sm:$0xff]
        %v439 = vld [vmem:[%s410 + $0x150] sm:$0xff]
        %v440 = vld [vmem:[%s410 + $0x158] sm:$0xff]
        %v441 = vld [vmem:[%s410 + $0x168] sm:$0xff]
        %v442 = vld [vmem:[%s410 + $0x170] sm:$0xff]
        %v443 = vld [vmem:[%s410 + $0x180] sm:$0xff]
        %v444 = vld [vmem:[%s410 + $0x188] sm:$0xff]
        %v445 = vld [vmem:[%s410 + $0x198] sm:$0xff]
        %v446 = vld [vmem:[%s410 + $0x1a0] sm:$0xff]
        %v447 = vld [vmem:[%s410 + $0x1b0] sm:$0xff]
        %v448 = vld [vmem:[%s410 + $0x1b8] sm:$0xff]
        %v449 = vld [vmem:[%s410 + $0x1c8] sm:$0xff]
        %v450 = vld [vmem:[%s410 + $0x1d0] sm:$0xff]
        %v451 = vld [vmem:[%s410 + $0x1e0] sm:$0xff]
        %v452 = vld [vmem:[%s410 + $0x1e8] sm:$0xff]
        %v453 = vld [vmem:[%s410 + $0x1f8] sm:$0xff]
        %v454 = vld [vmem:[%s410 + $0x200] sm:$0xff]
        %v455 = vlaneseq
        %v456 = vshrl.u32 %v455, 7
        %v457 = vsub.s32 0, %v456
        %v458 = vrot.slane %v402, %v457
        %v459 = vmul.f32 %v411, %v458
        %v460 = vmul.f32 %v412, %v458
        %v461 = vmul.f32 %v413, %v458
        %v462 = vmul.f32 %v414, %v458
        %v463 = vmul.f32 %v415, %v458
        %v464 = vmul.f32 %v416, %v458
        %v465 = vmul.f32 %v417, %v458
        %v466 = vmul.f32 %v418, %v458
        %v467 = vmul.f32 %v419, %v458
        %v468 = vmul.f32 %v420, %v458
        %v469 = vmul.f32 %v421, %v458
        %v470 = vmul.f32 %v422, %v458
        %v471 = vmul.f32 %v423, %v458
        %v472 = vmul.f32 %v424, %v458
        %v473 = vmul.f32 %v425, %v458
        %v474 = vmul.f32 %v426, %v458
        %v475 = vmul.f32 %v427, %v458
        %v476 = vmul.f32 %v428, %v458
        %v477 = vmul.f32 %v429, %v458
        %v478 = vmul.f32 %v430, %v458
        %v479 = vmul.f32 %v431, %v458
        %v480 = vmul.f32 %v432, %v458
        %v481 = vmul.f32 %v433, %v458
        %v482 = vmul.f32 %v434, %v458
        %v483 = vmul.f32 %v435, %v458
        %v484 = vmul.f32 %v436, %v458
        %v485 = vmul.f32 %v437, %v458
        %v486 = vmul.f32 %v438, %v458
        %v487 = vmul.f32 %v439, %v458
        %v488 = vmul.f32 %v440, %v458
        %v489 = vmul.f32 %v441, %v458
        %v490 = vmul.f32 %v442, %v458
        %v491 = vadd.f32 %v400, %v459
        %v492 = vadd.f32 %v400, %v460
        %v493 = vadd.f32 %v400, %v461
        %v494 = vadd.f32 %v400, %v462
        %v495 = vadd.f32 %v400, %v463
        %v496 = vadd.f32 %v400, %v464
        %v497 = vadd.f32 %v400, %v465
        %v498 = vadd.f32 %v400, %v466
        %v499 = vadd.f32 %v400, %v467
        %v500 = vadd.f32 %v400, %v468
        %v501 = vadd.f32 %v400, %v469
        %v502 = vadd.f32 %v400, %v470
        %v503 = vadd.f32 %v400, %v471
        %v504 = vadd.f32 %v400, %v472
        %v505 = vadd.f32 %v400, %v473
        %v506 = vadd.f32 %v400, %v474
        %v507 = vadd.f32 %v400, %v475
        %v508 = vadd.f32 %v400, %v476
        %v509 = vadd.f32 %v400, %v477
        %v510 = vadd.f32 %v400, %v478
        %v511 = vadd.f32 %v400, %v479
        %v512 = vadd.f32 %v400, %v480
        %v513 = vadd.f32 %v400, %v481
        %v514 = vadd.f32 %v400, %v482
        %v515 = vadd.f32 %v400, %v483
        %v516 = vadd.f32 %v400, %v484
        %v517 = vadd.f32 %v400, %v485
        %v518 = vadd.f32 %v400, %v486
        %v519 = vadd.f32 %v400, %v487
        %v520 = vadd.f32 %v400, %v488
        %v521 = vadd.f32 %v400, %v489
        %v522 = vadd.f32 %v400, %v490
        %v523 = vlaneseq
        %v524 = vshrl.u32 %v523, 7
        %v525 = vsub.s32 7, %v524
        %v526 = vrot.slane %v402, %v525
        %v527 = vmul.f32 %v413, %v526
        %v528 = vmul.f32 %v414, %v526
        %v529 = vmul.f32 %v415, %v526
        %v530 = vmul.f32 %v416, %v526
        %v531 = vmul.f32 %v417, %v526
        %v532 = vmul.f32 %v418, %v526
        %v533 = vmul.f32 %v419, %v526
        %v534 = vmul.f32 %v420, %v526
        %v535 = vmul.f32 %v421, %v526
        %v536 = vmul.f32 %v422, %v526
        %v537 = vmul.f32 %v423, %v526
        %v538 = vmul.f32 %v424, %v526
        %v539 = vmul.f32 %v425, %v526
        %v540 = vmul.f32 %v426, %v526
        %v541 = vmul.f32 %v427, %v526
        %v542 = vmul.f32 %v428, %v526
        %v543 = vmul.f32 %v429, %v526
        %v544 = vmul.f32 %v430, %v526
        %v545 = vmul.f32 %v431, %v526
        %v546 = vmul.f32 %v432, %v526
        %v547 = vmul.f32 %v433, %v526
        %v548 = vmul.f32 %v434, %v526
        %v549 = vmul.f32 %v435, %v526
        %v550 = vmul.f32 %v436, %v526
        %v551 = vmul.f32 %v437, %v526
        %v552 = vmul.f32 %v438, %v526
        %v553 = vmul.f32 %v439, %v526
        %v554 = vmul.f32 %v440, %v526
        %v555 = vmul.f32 %v441, %v526
        %v556 = vmul.f32 %v442, %v526
        %v557 = vmul.f32 %v443, %v526
        %v558 = vmul.f32 %v444, %v526
        %v559 = vadd.f32 %v491, %v527
        %v560 = vadd.f32 %v492, %v528
        %v561 = vadd.f32 %v493, %v529
        %v562 = vadd.f32 %v494, %v530
        %v563 = vadd.f32 %v495, %v531
        %v564 = vadd.f32 %v496, %v532
        %v565 = vadd.f32 %v497, %v533
        %v566 = vadd.f32 %v498, %v534
        %v567 = vadd.f32 %v499, %v535
        %v568 = vadd.f32 %v500, %v536
        %v569 = vadd.f32 %v501, %v537
        %v570 = vadd.f32 %v502, %v538
        %v571 = vadd.f32 %v503, %v539
        %v572 = vadd.f32 %v504, %v540
        %v573 = vadd.f32 %v505, %v541
        %v574 = vadd.f32 %v506, %v542
        %v575 = vadd.f32 %v507, %v543
        %v576 = vadd.f32 %v508, %v544
        %v577 = vadd.f32 %v509, %v545
        %v578 = vadd.f32 %v510, %v546
        %v579 = vadd.f32 %v511, %v547
        %v580 = vadd.f32 %v512, %v548
        %v581 = vadd.f32 %v513, %v549
        %v582 = vadd.f32 %v514, %v550
        %v583 = vadd.f32 %v515, %v551
        %v584 = vadd.f32 %v516, %v552
        %v585 = vadd.f32 %v517, %v553
        %v586 = vadd.f32 %v518, %v554
        %v587 = vadd.f32 %v519, %v555
        %v588 = vadd.f32 %v520, %v556
        %v589 = vadd.f32 %v521, %v557
        %v590 = vadd.f32 %v522, %v558
        %v591 = vlaneseq
        %v592 = vshrl.u32 %v591, 7
        %v593 = vsub.s32 6, %v592
        %v594 = vrot.slane %v403, %v593
        %v595 = vmul.f32 %v415, %v594
        %v596 = vmul.f32 %v416, %v594
        %v597 = vmul.f32 %v417, %v594
        %v598 = vmul.f32 %v418, %v594
        %v599 = vmul.f32 %v419, %v594
        %v600 = vmul.f32 %v420, %v594
        %v601 = vmul.f32 %v421, %v594
        %v602 = vmul.f32 %v422, %v594
        %v603 = vmul.f32 %v423, %v594
        %v604 = vmul.f32 %v424, %v594
        %v605 = vmul.f32 %v425, %v594
        %v606 = vmul.f32 %v426, %v594
        %v607 = vmul.f32 %v427, %v594
        %v608 = vmul.f32 %v428, %v594
        %v609 = vmul.f32 %v429, %v594
        %v610 = vmul.f32 %v430, %v594
        %v611 = vmul.f32 %v431, %v594
        %v612 = vmul.f32 %v432, %v594
        %v613 = vmul.f32 %v433, %v594
        %v614 = vmul.f32 %v434, %v594
        %v615 = vmul.f32 %v435, %v594
        %v616 = vmul.f32 %v436, %v594
        %v617 = vmul.f32 %v437, %v594
        %v618 = vmul.f32 %v438, %v594
        %v619 = vmul.f32 %v439, %v594
        %v620 = vmul.f32 %v440, %v594
        %v621 = vmul.f32 %v441, %v594
        %v622 = vmul.f32 %v442, %v594
        %v623 = vmul.f32 %v443, %v594
        %v624 = vmul.f32 %v444, %v594
        %v625 = vmul.f32 %v445, %v594
        %v626 = vmul.f32 %v446, %v594
        %v627 = vadd.f32 %v559, %v595
        %v628 = vadd.f32 %v560, %v596
        %v629 = vadd.f32 %v561, %v597
        %v630 = vadd.f32 %v562, %v598
        %v631 = vadd.f32 %v563, %v599
        %v632 = vadd.f32 %v564, %v600
        %v633 = vadd.f32 %v565, %v601
        %v634 = vadd.f32 %v566, %v602
        %v635 = vadd.f32 %v567, %v603
        %v636 = vadd.f32 %v568, %v604
        %v637 = vadd.f32 %v569, %v605
        %v638 = vadd.f32 %v570, %v606
        %v639 = vadd.f32 %v571, %v607
        %v640 = vadd.f32 %v572, %v608
        %v641 = vadd.f32 %v573, %v609
        %v642 = vadd.f32 %v574, %v610
        %v643 = vadd.f32 %v575, %v611
        %v644 = vadd.f32 %v576, %v612
        %v645 = vadd.f32 %v577, %v613
        %v646 = vadd.f32 %v578, %v614
        %v647 = vadd.f32 %v579, %v615
        %v648 = vadd.f32 %v580, %v616
        %v649 = vadd.f32 %v581, %v617
        %v650 = vadd.f32 %v582, %v618
        %v651 = vadd.f32 %v583, %v619
        %v652 = vadd.f32 %v584, %v620
        %v653 = vadd.f32 %v585, %v621
        %v654 = vadd.f32 %v586, %v622
        %v655 = vadd.f32 %v587, %v623
        %v656 = vadd.f32 %v588, %v624
        %v657 = vadd.f32 %v589, %v625
        %v658 = vadd.f32 %v590, %v626
        %v659 = vlaneseq
        %v660 = vshrl.u32 %v659, 7
        %v661 = vsub.s32 5, %v660
        %v662 = vrot.slane %v404, %v661
        %v663 = vmul.f32 %v417, %v662
        %v664 = vmul.f32 %v418, %v662
        %v665 = vmul.f32 %v419, %v662
        %v666 = vmul.f32 %v420, %v662
        %v667 = vmul.f32 %v421, %v662
        %v668 = vmul.f32 %v422, %v662
        %v669 = vmul.f32 %v423, %v662
        %v670 = vmul.f32 %v424, %v662
        %v671 = vmul.f32 %v425, %v662
        %v672 = vmul.f32 %v426, %v662
        %v673 = vmul.f32 %v427, %v662
        %v674 = vmul.f32 %v428, %v662
        %v675 = vmul.f32 %v429, %v662
        %v676 = vmul.f32 %v430, %v662
        %v677 = vmul.f32 %v431, %v662
        %v678 = vmul.f32 %v432, %v662
        %v679 = vmul.f32 %v433, %v662
        %v680 = vmul.f32 %v434, %v662
        %v681 = vmul.f32 %v435, %v662
        %v682 = vmul.f32 %v436, %v662
        %v683 = vmul.f32 %v437, %v662
        %v684 = vmul.f32 %v438, %v662
        %v685 = vmul.f32 %v439, %v662
        %v686 = vmul.f32 %v440, %v662
        %v687 = vmul.f32 %v441, %v662
        %v688 = vmul.f32 %v442, %v662
        %v689 = vmul.f32 %v443, %v662
        %v690 = vmul.f32 %v444, %v662
        %v691 = vmul.f32 %v445, %v662
        %v692 = vmul.f32 %v446, %v662
        %v693 = vmul.f32 %v447, %v662
        %v694 = vmul.f32 %v448, %v662
        %v695 = vadd.f32 %v627, %v663
        %v696 = vadd.f32 %v628, %v664
        %v697 = vadd.f32 %v629, %v665
        %v698 = vadd.f32 %v630, %v666
        %v699 = vadd.f32 %v631, %v667
        %v700 = vadd.f32 %v632, %v668
        %v701 = vadd.f32 %v633, %v669
        %v702 = vadd.f32 %v634, %v670
        %v703 = vadd.f32 %v635, %v671
        %v704 = vadd.f32 %v636, %v672
        %v705 = vadd.f32 %v637, %v673
        %v706 = vadd.f32 %v638, %v674
        %v707 = vadd.f32 %v639, %v675
        %v708 = vadd.f32 %v640, %v676
        %v709 = vadd.f32 %v641, %v677
        %v710 = vadd.f32 %v642, %v678
        %v711 = vadd.f32 %v643, %v679
        %v712 = vadd.f32 %v644, %v680
        %v713 = vadd.f32 %v645, %v681
        %v714 = vadd.f32 %v646, %v682
        %v715 = vadd.f32 %v647, %v683
        %v716 = vadd.f32 %v648, %v684
        %v717 = vadd.f32 %v649, %v685
        %v718 = vadd.f32 %v650, %v686
        %v719 = vadd.f32 %v651, %v687
        %v720 = vadd.f32 %v652, %v688
        %v721 = vadd.f32 %v653, %v689
        %v722 = vadd.f32 %v654, %v690
        %v723 = vadd.f32 %v655, %v691
        %v724 = vadd.f32 %v656, %v692
        %v725 = vadd.f32 %v657, %v693
        %v726 = vadd.f32 %v658, %v694
        %v727 = vlaneseq
        %v728 = vshrl.u32 %v727, 7
        %v729 = vsub.s32 4, %v728
        %v730 = vrot.slane %v405, %v729
        %v731 = vmul.f32 %v419, %v730
        %v732 = vmul.f32 %v420, %v730
        %v733 = vmul.f32 %v421, %v730
        %v734 = vmul.f32 %v422, %v730
        %v735 = vmul.f32 %v423, %v730
        %v736 = vmul.f32 %v424, %v730
        %v737 = vmul.f32 %v425, %v730
        %v738 = vmul.f32 %v426, %v730
        %v739 = vmul.f32 %v427, %v730
        %v740 = vmul.f32 %v428, %v730
        %v741 = vmul.f32 %v429, %v730
        %v742 = vmul.f32 %v430, %v730
        %v743 = vmul.f32 %v431, %v730
        %v744 = vmul.f32 %v432, %v730
        %v745 = vmul.f32 %v433, %v730
        %v746 = vmul.f32 %v434, %v730
        %v747 = vmul.f32 %v435, %v730
        %v748 = vmul.f32 %v436, %v730
        %v749 = vmul.f32 %v437, %v730
        %v750 = vmul.f32 %v438, %v730
        %v751 = vmul.f32 %v439, %v730
        %v752 = vmul.f32 %v440, %v730
        %v753 = vmul.f32 %v441, %v730
        %v754 = vmul.f32 %v442, %v730
        %v755 = vmul.f32 %v443, %v730
        %v756 = vmul.f32 %v444, %v730
        %v757 = vmul.f32 %v445, %v730
        %v758 = vmul.f32 %v446, %v730
        %v759 = vmul.f32 %v447, %v730
        %v760 = vmul.f32 %v448, %v730
        %v761 = vmul.f32 %v449, %v730
        %v762 = vmul.f32 %v450, %v730
        %v763 = vadd.f32 %v695, %v731
        %v764 = vadd.f32 %v696, %v732
        %v765 = vadd.f32 %v697, %v733
        %v766 = vadd.f32 %v698, %v734
        %v767 = vadd.f32 %v699, %v735
        %v768 = vadd.f32 %v700, %v736
        %v769 = vadd.f32 %v701, %v737
        %v770 = vadd.f32 %v702, %v738
        %v771 = vadd.f32 %v703, %v739
        %v772 = vadd.f32 %v704, %v740
        %v773 = vadd.f32 %v705, %v741
        %v774 = vadd.f32 %v706, %v742
        %v775 = vadd.f32 %v707, %v743
        %v776 = vadd.f32 %v708, %v744
        %v777 = vadd.f32 %v709, %v745
        %v778 = vadd.f32 %v710, %v746
        %v779 = vadd.f32 %v711, %v747
        %v780 = vadd.f32 %v712, %v748
        %v781 = vadd.f32 %v713, %v749
        %v782 = vadd.f32 %v714, %v750
        %v783 = vadd.f32 %v715, %v751
        %v784 = vadd.f32 %v716, %v752
        %v785 = vadd.f32 %v717, %v753
        %v786 = vadd.f32 %v718, %v754
        %v787 = vadd.f32 %v719, %v755
        %v788 = vadd.f32 %v720, %v756
        %v789 = vadd.f32 %v721, %v757
        %v790 = vadd.f32 %v722, %v758
        %v791 = vadd.f32 %v723, %v759
        %v792 = vadd.f32 %v724, %v760
        %v793 = vadd.f32 %v725, %v761
        %v794 = vadd.f32 %v726, %v762
        %v795 = vlaneseq
        %v796 = vshrl.u32 %v795, 7
        %v797 = vsub.s32 3, %v796
        %v798 = vrot.slane %v406, %v797
        %v799 = vmul.f32 %v421, %v798
        %v800 = vmul.f32 %v422, %v798
        %v801 = vmul.f32 %v423, %v798
        %v802 = vmul.f32 %v424, %v798
        %v803 = vmul.f32 %v425, %v798
        %v804 = vmul.f32 %v426, %v798
        %v805 = vmul.f32 %v427, %v798
        %v806 = vmul.f32 %v428, %v798
        %v807 = vmul.f32 %v429, %v798
        %v808 = vmul.f32 %v430, %v798
        %v809 = vmul.f32 %v431, %v798
        %v810 = vmul.f32 %v432, %v798
        %v811 = vmul.f32 %v433, %v798
        %v812 = vmul.f32 %v434, %v798
        %v813 = vmul.f32 %v435, %v798
        %v814 = vmul.f32 %v436, %v798
        %v815 = vmul.f32 %v437, %v798
        %v816 = vmul.f32 %v438, %v798
        %v817 = vmul.f32 %v439, %v798
        %v818 = vmul.f32 %v440, %v798
        %v819 = vmul.f32 %v441, %v798
        %v820 = vmul.f32 %v442, %v798
        %v821 = vmul.f32 %v443, %v798
        %v822 = vmul.f32 %v444, %v798
        %v823 = vmul.f32 %v445, %v798
        %v824 = vmul.f32 %v446, %v798
        %v825 = vmul.f32 %v447, %v798
        %v826 = vmul.f32 %v448, %v798
        %v827 = vmul.f32 %v449, %v798
        %v828 = vmul.f32 %v450, %v798
        %v829 = vmul.f32 %v451, %v798
        %v830 = vmul.f32 %v452, %v798
        %v831 = vadd.f32 %v763, %v799
        %v832 = vadd.f32 %v764, %v800
        %v833 = vadd.f32 %v765, %v801
        %v834 = vadd.f32 %v766, %v802
        %v835 = vadd.f32 %v767, %v803
        %v836 = vadd.f32 %v768, %v804
        %v837 = vadd.f32 %v769, %v805
        %v838 = vadd.f32 %v770, %v806
        %v839 = vadd.f32 %v771, %v807
        %v840 = vadd.f32 %v772, %v808
        %v841 = vadd.f32 %v773, %v809
        %v842 = vadd.f32 %v774, %v810
        %v843 = vadd.f32 %v775, %v811
        %v844 = vadd.f32 %v776, %v812
        %v845 = vadd.f32 %v777, %v813
        %v846 = vadd.f32 %v778, %v814
        %v847 = vadd.f32 %v779, %v815
        %v848 = vadd.f32 %v780, %v816
        %v849 = vadd.f32 %v781, %v817
        %v850 = vadd.f32 %v782, %v818
        %v851 = vadd.f32 %v783, %v819
        %v852 = vadd.f32 %v784, %v820
        %v853 = vadd.f32 %v785, %v821
        %v854 = vadd.f32 %v786, %v822
        %v855 = vadd.f32 %v787, %v823
        %v856 = vadd.f32 %v788, %v824
        %v857 = vadd.f32 %v789, %v825
        %v858 = vadd.f32 %v790, %v826
        %v859 = vadd.f32 %v791, %v827
        %v860 = vadd.f32 %v792, %v828
        %v861 = vadd.f32 %v793, %v829
        %v862 = vadd.f32 %v794, %v830
        %v863 = vlaneseq
        %v864 = vshrl.u32 %v863, 7
        %v865 = vsub.s32 2, %v864
        %v866 = vrot.slane %v407, %v865
        %v867 = vmul.f32 %v423, %v866
        %v868 = vmul.f32 %v424, %v866
        %v869 = vmul.f32 %v425, %v866
        %v870 = vmul.f32 %v426, %v866
        %v871 = vmul.f32 %v427, %v866
        %v872 = vmul.f32 %v428, %v866
        %v873 = vmul.f32 %v429, %v866
        %v874 = vmul.f32 %v430, %v866
        %v875 = vmul.f32 %v431, %v866
        %v876 = vmul.f32 %v432, %v866
        %v877 = vmul.f32 %v433, %v866
        %v878 = vmul.f32 %v434, %v866
        %v879 = vmul.f32 %v435, %v866
        %v880 = vmul.f32 %v436, %v866
        %v881 = vmul.f32 %v437, %v866
        %v882 = vmul.f32 %v438, %v866
        %v883 = vmul.f32 %v439, %v866
        %v884 = vmul.f32 %v440, %v866
        %v885 = vmul.f32 %v441, %v866
        %v886 = vmul.f32 %v442, %v866
        %v887 = vmul.f32 %v443, %v866
        %v888 = vmul.f32 %v444, %v866
        %v889 = vmul.f32 %v445, %v866
        %v890 = vmul.f32 %v446, %v866
        %v891 = vmul.f32 %v447, %v866
        %v892 = vmul.f32 %v448, %v866
        %v893 = vmul.f32 %v449, %v866
        %v894 = vmul.f32 %v450, %v866
        %v895 = vmul.f32 %v451, %v866
        %v896 = vmul.f32 %v452, %v866
        %v897 = vmul.f32 %v453, %v866
        %v898 = vmul.f32 %v454, %v866
        %v899 = vadd.f32 %v831, %v867
        %v900 = vadd.f32 %v832, %v868
        %v901 = vadd.f32 %v833, %v869
        %v902 = vadd.f32 %v834, %v870
        %v903 = vadd.f32 %v835, %v871
        %v904 = vadd.f32 %v836, %v872
        %v905 = vadd.f32 %v837, %v873
        %v906 = vadd.f32 %v838, %v874
        %v907 = vadd.f32 %v839, %v875
        %v908 = vadd.f32 %v840, %v876
        %v909 = vadd.f32 %v841, %v877
        %v910 = vadd.f32 %v842, %v878
        %v911 = vadd.f32 %v843, %v879
        %v912 = vadd.f32 %v844, %v880
        %v913 = vadd.f32 %v845, %v881
        %v914 = vadd.f32 %v846, %v882
        %v915 = vadd.f32 %v847, %v883
        %v916 = vadd.f32 %v848, %v884
        %v917 = vadd.f32 %v849, %v885
        %v918 = vadd.f32 %v850, %v886
        %v919 = vadd.f32 %v851, %v887
        %v920 = vadd.f32 %v852, %v888
        %v921 = vadd.f32 %v853, %v889
        %v922 = vadd.f32 %v854, %v890
        %v923 = vadd.f32 %v855, %v891
        %v924 = vadd.f32 %v856, %v892
        %v925 = vadd.f32 %v857, %v893
        %v926 = vadd.f32 %v858, %v894
        %v927 = vadd.f32 %v859, %v895
        %v928 = vadd.f32 %v860, %v896
        %v929 = vadd.f32 %v861, %v897
        %v930 = vadd.f32 %v862, %v898
        %v931 = vld [vmem:[%s410 + $0x1] sm:$0xff]
        %v932 = vld [vmem:[%s410 + $0x9] sm:$0xff]
        %v933 = vld [vmem:[%s410 + $0x19] sm:$0xff]
        %v934 = vld [vmem:[%s410 + $0x21] sm:$0xff]
        %v935 = vld [vmem:[%s410 + $0x31] sm:$0xff]
        %v936 = vld [vmem:[%s410 + $0x39] sm:$0xff]
        %v937 = vld [vmem:[%s410 + $0x49] sm:$0xff]
        %v938 = vld [vmem:[%s410 + $0x51] sm:$0xff]
        %v939 = vld [vmem:[%s410 + $0x61] sm:$0xff]
        %v940 = vld [vmem:[%s410 + $0x69] sm:$0xff]
        %v941 = vld [vmem:[%s410 + $0x79] sm:$0xff]
        %v942 = vld [vmem:[%s410 + $0x81] sm:$0xff]
        %v943 = vld [vmem:[%s410 + $0x91] sm:$0xff]
        %v944 = vld [vmem:[%s410 + $0x99] sm:$0xff]
        %v945 = vld [vmem:[%s410 + $0xa9] sm:$0xff]
        %v946 = vld [vmem:[%s410 + $0xb1] sm:$0xff]
        %v947 = vld [vmem:[%s410 + $0xc1] sm:$0xff]
        %v948 = vld [vmem:[%s410 + $0xc9] sm:$0xff]
        %v949 = vld [vmem:[%s410 + $0xd9] sm:$0xff]
        %v950 = vld [vmem:[%s410 + $0xe1] sm:$0xff]
        %v951 = vld [vmem:[%s410 + $0xf1] sm:$0xff]
        %v952 = vld [vmem:[%s410 + $0xf9] sm:$0xff]
        %v953 = vld [vmem:[%s410 + $0x109] sm:$0xff]
        %v954 = vld [vmem:[%s410 + $0x111] sm:$0xff]
        %v955 = vld [vmem:[%s410 + $0x121] sm:$0xff]
        %v956 = vld [vmem:[%s410 + $0x129] sm:$0xff]
        %v957 = vld [vmem:[%s410 + $0x139] sm:$0xff]
        %v958 = vld [vmem:[%s410 + $0x141] sm:$0xff]
        %v959 = vld [vmem:[%s410 + $0x151] sm:$0xff]
        %v960 = vld [vmem:[%s410 + $0x159] sm:$0xff]
        %v961 = vld [vmem:[%s410 + $0x169] sm:$0xff]
        %v962 = vld [vmem:[%s410 + $0x171] sm:$0xff]
        %v963 = vld [vmem:[%s410 + $0x181] sm:$0xff]
        %v964 = vld [vmem:[%s410 + $0x189] sm:$0xff]
        %v965 = vld [vmem:[%s410 + $0x199] sm:$0xff]
        %v966 = vld [vmem:[%s410 + $0x1a1] sm:$0xff]
        %v967 = vld [vmem:[%s410 + $0x1b1] sm:$0xff]
        %v968 = vld [vmem:[%s410 + $0x1b9] sm:$0xff]
        %v969 = vld [vmem:[%s410 + $0x1c9] sm:$0xff]
        %v970 = vld [vmem:[%s410 + $0x1d1] sm:$0xff]
        %v971 = vld [vmem:[%s410 + $0x1e1] sm:$0xff]
        %v972 = vld [vmem:[%s410 + $0x1e9] sm:$0xff]
        %v973 = vld [vmem:[%s410 + $0x1f9] sm:$0xff]
        %v974 = vld [vmem:[%s410 + $0x201] sm:$0xff]
        %v975 = vlaneseq
        %v976 = vshrl.u32 %v975, 7
        %v977 = vsub.s32 1, %v976
        %v978 = vrot.slane %v402, %v977
        %v979 = vmul.f32 %v931, %v978
        %v980 = vmul.f32 %v932, %v978
        %v981 = vmul.f32 %v933, %v978
        %v982 = vmul.f32 %v934, %v978
        %v983 = vmul.f32 %v935, %v978
        %v984 = vmul.f32 %v936, %v978
        %v985 = vmul.f32 %v937, %v978
        %v986 = vmul.f32 %v938, %v978
        %v987 = vmul.f32 %v939, %v978
        %v988 = vmul.f32 %v940, %v978
        %v989 = vmul.f32 %v941, %v978
        %v990 = vmul.f32 %v942, %v978
        %v991 = vmul.f32 %v943, %v978
        %v992 = vmul.f32 %v944, %v978
        %v993 = vmul.f32 %v945, %v978
        %v994 = vmul.f32 %v946, %v978
        %v995 = vmul.f32 %v947, %v978
        %v996 = vmul.f32 %v948, %v978
        %v997 = vmul.f32 %v949, %v978
        %v998 = vmul.f32 %v950, %v978
        %v999 = vmul.f32 %v951, %v978
        %v1000 = vmul.f32 %v952, %v978
        %v1001 = vmul.f32 %v953, %v978
        %v1002 = vmul.f32 %v954, %v978
        %v1003 = vmul.f32 %v955, %v978
        %v1004 = vmul.f32 %v956, %v978
        %v1005 = vmul.f32 %v957, %v978
        %v1006 = vmul.f32 %v958, %v978
        %v1007 = vmul.f32 %v959, %v978
        %v1008 = vmul.f32 %v960, %v978
        %v1009 = vmul.f32 %v961, %v978
        %v1010 = vmul.f32 %v962, %v978
        %v1011 = vadd.f32 %v899, %v979
        %v1012 = vadd.f32 %v900, %v980
        %v1013 = vadd.f32 %v901, %v981
        %v1014 = vadd.f32 %v902, %v982
        %v1015 = vadd.f32 %v903, %v983
        %v1016 = vadd.f32 %v904, %v984
        %v1017 = vadd.f32 %v905, %v985
        %v1018 = vadd.f32 %v906, %v986
        %v1019 = vadd.f32 %v907, %v987
        %v1020 = vadd.f32 %v908, %v988
        %v1021 = vadd.f32 %v909, %v989
        %v1022 = vadd.f32 %v910, %v990
        %v1023 = vadd.f32 %v911, %v991
        %v1024 = vadd.f32 %v912, %v992
        %v1025 = vadd.f32 %v913, %v993
        %v1026 = vadd.f32 %v914, %v994
        %v1027 = vadd.f32 %v915, %v995
        %v1028 = vadd.f32 %v916, %v996
        %v1029 = vadd.f32 %v917, %v997
        %v1030 = vadd.f32 %v918, %v998
        %v1031 = vadd.f32 %v919, %v999
        %v1032 = vadd.f32 %v920, %v1000
        %v1033 = vadd.f32 %v921, %v1001
        %v1034 = vadd.f32 %v922, %v1002
        %v1035 = vadd.f32 %v923, %v1003
        %v1036 = vadd.f32 %v924, %v1004
        %v1037 = vadd.f32 %v925, %v1005
        %v1038 = vadd.f32 %v926, %v1006
        %v1039 = vadd.f32 %v927, %v1007
        %v1040 = vadd.f32 %v928, %v1008
        %v1041 = vadd.f32 %v929, %v1009
        %v1042 = vadd.f32 %v930, %v1010
        %v1043 = vlaneseq
        %v1044 = vshrl.u32 %v1043, 7
        %v1045 = vsub.s32 0, %v1044
        %v1046 = vrot.slane %v403, %v1045
        %v1047 = vmul.f32 %v933, %v1046
        %v1048 = vmul.f32 %v934, %v1046
        %v1049 = vmul.f32 %v935, %v1046
        %v1050 = vmul.f32 %v936, %v1046
        %v1051 = vmul.f32 %v937, %v1046
        %v1052 = vmul.f32 %v938, %v1046
        %v1053 = vmul.f32 %v939, %v1046
        %v1054 = vmul.f32 %v940, %v1046
        %v1055 = vmul.f32 %v941, %v1046
        %v1056 = vmul.f32 %v942, %v1046
        %v1057 = vmul.f32 %v943, %v1046
        %v1058 = vmul.f32 %v944, %v1046
        %v1059 = vmul.f32 %v945, %v1046
        %v1060 = vmul.f32 %v946, %v1046
        %v1061 = vmul.f32 %v947, %v1046
        %v1062 = vmul.f32 %v948, %v1046
        %v1063 = vmul.f32 %v949, %v1046
        %v1064 = vmul.f32 %v950, %v1046
        %v1065 = vmul.f32 %v951, %v1046
        %v1066 = vmul.f32 %v952, %v1046
        %v1067 = vmul.f32 %v953, %v1046
        %v1068 = vmul.f32 %v954, %v1046
        %v1069 = vmul.f32 %v955, %v1046
        %v1070 = vmul.f32 %v956, %v1046
        %v1071 = vmul.f32 %v957, %v1046
        %v1072 = vmul.f32 %v958, %v1046
        %v1073 = vmul.f32 %v959, %v1046
        %v1074 = vmul.f32 %v960, %v1046
        %v1075 = vmul.f32 %v961, %v1046
        %v1076 = vmul.f32 %v962, %v1046
        %v1077 = vmul.f32 %v963, %v1046
        %v1078 = vmul.f32 %v964, %v1046
        %v1079 = vadd.f32 %v1011, %v1047
        %v1080 = vadd.f32 %v1012, %v1048
        %v1081 = vadd.f32 %v1013, %v1049
        %v1082 = vadd.f32 %v1014, %v1050
        %v1083 = vadd.f32 %v1015, %v1051
        %v1084 = vadd.f32 %v1016, %v1052
        %v1085 = vadd.f32 %v1017, %v1053
        %v1086 = vadd.f32 %v1018, %v1054
        %v1087 = vadd.f32 %v1019, %v1055
        %v1088 = vadd.f32 %v1020, %v1056
        %v1089 = vadd.f32 %v1021, %v1057
        %v1090 = vadd.f32 %v1022, %v1058
        %v1091 = vadd.f32 %v1023, %v1059
        %v1092 = vadd.f32 %v1024, %v1060
        %v1093 = vadd.f32 %v1025, %v1061
        %v1094 = vadd.f32 %v1026, %v1062
        %v1095 = vadd.f32 %v1027, %v1063
        %v1096 = vadd.f32 %v1028, %v1064
        %v1097 = vadd.f32 %v1029, %v1065
        %v1098 = vadd.f32 %v1030, %v1066
        %v1099 = vadd.f32 %v1031, %v1067
        %v1100 = vadd.f32 %v1032, %v1068
        %v1101 = vadd.f32 %v1033, %v1069
        %v1102 = vadd.f32 %v1034, %v1070
        %v1103 = vadd.f32 %v1035, %v1071
        %v1104 = vadd.f32 %v1036, %v1072
        %v1105 = vadd.f32 %v1037, %v1073
        %v1106 = vadd.f32 %v1038, %v1074
        %v1107 = vadd.f32 %v1039, %v1075
        %v1108 = vadd.f32 %v1040, %v1076
        %v1109 = vadd.f32 %v1041, %v1077
        %v1110 = vadd.f32 %v1042, %v1078
        %v1111 = vlaneseq
        %v1112 = vshrl.u32 %v1111, 7
        %v1113 = vsub.s32 7, %v1112
        %v1114 = vrot.slane %v403, %v1113
        %v1115 = vmul.f32 %v935, %v1114
        %v1116 = vmul.f32 %v936, %v1114
        %v1117 = vmul.f32 %v937, %v1114
        %v1118 = vmul.f32 %v938, %v1114
        %v1119 = vmul.f32 %v939, %v1114
        %v1120 = vmul.f32 %v940, %v1114
        %v1121 = vmul.f32 %v941, %v1114
        %v1122 = vmul.f32 %v942, %v1114
        %v1123 = vmul.f32 %v943, %v1114
        %v1124 = vmul.f32 %v944, %v1114
        %v1125 = vmul.f32 %v945, %v1114
        %v1126 = vmul.f32 %v946, %v1114
        %v1127 = vmul.f32 %v947, %v1114
        %v1128 = vmul.f32 %v948, %v1114
        %v1129 = vmul.f32 %v949, %v1114
        %v1130 = vmul.f32 %v950, %v1114
        %v1131 = vmul.f32 %v951, %v1114
        %v1132 = vmul.f32 %v952, %v1114
        %v1133 = vmul.f32 %v953, %v1114
        %v1134 = vmul.f32 %v954, %v1114
        %v1135 = vmul.f32 %v955, %v1114
        %v1136 = vmul.f32 %v956, %v1114
        %v1137 = vmul.f32 %v957, %v1114
        %v1138 = vmul.f32 %v958, %v1114
        %v1139 = vmul.f32 %v959, %v1114
        %v1140 = vmul.f32 %v960, %v1114
        %v1141 = vmul.f32 %v961, %v1114
        %v1142 = vmul.f32 %v962, %v1114
        %v1143 = vmul.f32 %v963, %v1114
        %v1144 = vmul.f32 %v964, %v1114
        %v1145 = vmul.f32 %v965, %v1114
        %v1146 = vmul.f32 %v966, %v1114
        %v1147 = vadd.f32 %v1079, %v1115
        %v1148 = vadd.f32 %v1080, %v1116
        %v1149 = vadd.f32 %v1081, %v1117
        %v1150 = vadd.f32 %v1082, %v1118
        %v1151 = vadd.f32 %v1083, %v1119
        %v1152 = vadd.f32 %v1084, %v1120
        %v1153 = vadd.f32 %v1085, %v1121
        %v1154 = vadd.f32 %v1086, %v1122
        %v1155 = vadd.f32 %v1087, %v1123
        %v1156 = vadd.f32 %v1088, %v1124
        %v1157 = vadd.f32 %v1089, %v1125
        %v1158 = vadd.f32 %v1090, %v1126
        %v1159 = vadd.f32 %v1091, %v1127
        %v1160 = vadd.f32 %v1092, %v1128
        %v1161 = vadd.f32 %v1093, %v1129
        %v1162 = vadd.f32 %v1094, %v1130
        %v1163 = vadd.f32 %v1095, %v1131
        %v1164 = vadd.f32 %v1096, %v1132
        %v1165 = vadd.f32 %v1097, %v1133
        %v1166 = vadd.f32 %v1098, %v1134
        %v1167 = vadd.f32 %v1099, %v1135
        %v1168 = vadd.f32 %v1100, %v1136
        %v1169 = vadd.f32 %v1101, %v1137
        %v1170 = vadd.f32 %v1102, %v1138
        %v1171 = vadd.f32 %v1103, %v1139
        %v1172 = vadd.f32 %v1104, %v1140
        %v1173 = vadd.f32 %v1105, %v1141
        %v1174 = vadd.f32 %v1106, %v1142
        %v1175 = vadd.f32 %v1107, %v1143
        %v1176 = vadd.f32 %v1108, %v1144
        %v1177 = vadd.f32 %v1109, %v1145
        %v1178 = vadd.f32 %v1110, %v1146
        %v1179 = vlaneseq
        %v1180 = vshrl.u32 %v1179, 7
        %v1181 = vsub.s32 6, %v1180
        %v1182 = vrot.slane %v404, %v1181
        %v1183 = vmul.f32 %v937, %v1182
        %v1184 = vmul.f32 %v938, %v1182
        %v1185 = vmul.f32 %v939, %v1182
        %v1186 = vmul.f32 %v940, %v1182
        %v1187 = vmul.f32 %v941, %v1182
        %v1188 = vmul.f32 %v942, %v1182
        %v1189 = vmul.f32 %v943, %v1182
        %v1190 = vmul.f32 %v944, %v1182
        %v1191 = vmul.f32 %v945, %v1182
        %v1192 = vmul.f32 %v946, %v1182
        %v1193 = vmul.f32 %v947, %v1182
        %v1194 = vmul.f32 %v948, %v1182
        %v1195 = vmul.f32 %v949, %v1182
        %v1196 = vmul.f32 %v950, %v1182
        %v1197 = vmul.f32 %v951, %v1182
        %v1198 = vmul.f32 %v952, %v1182
        %v1199 = vmul.f32 %v953, %v1182
        %v1200 = vmul.f32 %v954, %v1182
        %v1201 = vmul.f32 %v955, %v1182
        %v1202 = vmul.f32 %v956, %v1182
        %v1203 = vmul.f32 %v957, %v1182
        %v1204 = vmul.f32 %v958, %v1182
        %v1205 = vmul.f32 %v959, %v1182
        %v1206 = vmul.f32 %v960, %v1182
        %v1207 = vmul.f32 %v961, %v1182
        %v1208 = vmul.f32 %v962, %v1182
        %v1209 = vmul.f32 %v963, %v1182
        %v1210 = vmul.f32 %v964, %v1182
        %v1211 = vmul.f32 %v965, %v1182
        %v1212 = vmul.f32 %v966, %v1182
        %v1213 = vmul.f32 %v967, %v1182
        %v1214 = vmul.f32 %v968, %v1182
        %v1215 = vadd.f32 %v1147, %v1183
        %v1216 = vadd.f32 %v1148, %v1184
        %v1217 = vadd.f32 %v1149, %v1185
        %v1218 = vadd.f32 %v1150, %v1186
        %v1219 = vadd.f32 %v1151, %v1187
        %v1220 = vadd.f32 %v1152, %v1188
        %v1221 = vadd.f32 %v1153, %v1189
        %v1222 = vadd.f32 %v1154, %v1190
        %v1223 = vadd.f32 %v1155, %v1191
        %v1224 = vadd.f32 %v1156, %v1192
        %v1225 = vadd.f32 %v1157, %v1193
        %v1226 = vadd.f32 %v1158, %v1194
        %v1227 = vadd.f32 %v1159, %v1195
        %v1228 = vadd.f32 %v1160, %v1196
        %v1229 = vadd.f32 %v1161, %v1197
        %v1230 = vadd.f32 %v1162, %v1198
        %v1231 = vadd.f32 %v1163, %v1199
        %v1232 = vadd.f32 %v1164, %v1200
        %v1233 = vadd.f32 %v1165, %v1201
        %v1234 = vadd.f32 %v1166, %v1202
        %v1235 = vadd.f32 %v1167, %v1203
        %v1236 = vadd.f32 %v1168, %v1204
        %v1237 = vadd.f32 %v1169, %v1205
        %v1238 = vadd.f32 %v1170, %v1206
        %v1239 = vadd.f32 %v1171, %v1207
        %v1240 = vadd.f32 %v1172, %v1208
        %v1241 = vadd.f32 %v1173, %v1209
        %v1242 = vadd.f32 %v1174, %v1210
        %v1243 = vadd.f32 %v1175, %v1211
        %v1244 = vadd.f32 %v1176, %v1212
        %v1245 = vadd.f32 %v1177, %v1213
        %v1246 = vadd.f32 %v1178, %v1214
        %v1247 = vlaneseq
        %v1248 = vshrl.u32 %v1247, 7
        %v1249 = vsub.s32 5, %v1248
        %v1250 = vrot.slane %v405, %v1249
        %v1251 = vmul.f32 %v939, %v1250
        %v1252 = vmul.f32 %v940, %v1250
        %v1253 = vmul.f32 %v941, %v1250
        %v1254 = vmul.f32 %v942, %v1250
        %v1255 = vmul.f32 %v943, %v1250
        %v1256 = vmul.f32 %v944, %v1250
        %v1257 = vmul.f32 %v945, %v1250
        %v1258 = vmul.f32 %v946, %v1250
        %v1259 = vmul.f32 %v947, %v1250
        %v1260 = vmul.f32 %v948, %v1250
        %v1261 = vmul.f32 %v949, %v1250
        %v1262 = vmul.f32 %v950, %v1250
        %v1263 = vmul.f32 %v951, %v1250
        %v1264 = vmul.f32 %v952, %v1250
        %v1265 = vmul.f32 %v953, %v1250
        %v1266 = vmul.f32 %v954, %v1250
        %v1267 = vmul.f32 %v955, %v1250
        %v1268 = vmul.f32 %v956, %v1250
        %v1269 = vmul.f32 %v957, %v1250
        %v1270 = vmul.f32 %v958, %v1250
        %v1271 = vmul.f32 %v959, %v1250
        %v1272 = vmul.f32 %v960, %v1250
        %v1273 = vmul.f32 %v961, %v1250
        %v1274 = vmul.f32 %v962, %v1250
        %v1275 = vmul.f32 %v963, %v1250
        %v1276 = vmul.f32 %v964, %v1250
        %v1277 = vmul.f32 %v965, %v1250
        %v1278 = vmul.f32 %v966, %v1250
        %v1279 = vmul.f32 %v967, %v1250
        %v1280 = vmul.f32 %v968, %v1250
        %v1281 = vmul.f32 %v969, %v1250
        %v1282 = vmul.f32 %v970, %v1250
        %v1283 = vadd.f32 %v1215, %v1251
        %v1284 = vadd.f32 %v1216, %v1252
        %v1285 = vadd.f32 %v1217, %v1253
        %v1286 = vadd.f32 %v1218, %v1254
        %v1287 = vadd.f32 %v1219, %v1255
        %v1288 = vadd.f32 %v1220, %v1256
        %v1289 = vadd.f32 %v1221, %v1257
        %v1290 = vadd.f32 %v1222, %v1258
        %v1291 = vadd.f32 %v1223, %v1259
        %v1292 = vadd.f32 %v1224, %v1260
        %v1293 = vadd.f32 %v1225, %v1261
        %v1294 = vadd.f32 %v1226, %v1262
        %v1295 = vadd.f32 %v1227, %v1263
        %v1296 = vadd.f32 %v1228, %v1264
        %v1297 = vadd.f32 %v1229, %v1265
        %v1298 = vadd.f32 %v1230, %v1266
        %v1299 = vadd.f32 %v1231, %v1267
        %v1300 = vadd.f32 %v1232, %v1268
        %v1301 = vadd.f32 %v1233, %v1269
        %v1302 = vadd.f32 %v1234, %v1270
        %v1303 = vadd.f32 %v1235, %v1271
        %v1304 = vadd.f32 %v1236, %v1272
        %v1305 = vadd.f32 %v1237, %v1273
        %v1306 = vadd.f32 %v1238, %v1274
        %v1307 = vadd.f32 %v1239, %v1275
        %v1308 = vadd.f32 %v1240, %v1276
        %v1309 = vadd.f32 %v1241, %v1277
        %v1310 = vadd.f32 %v1242, %v1278
        %v1311 = vadd.f32 %v1243, %v1279
        %v1312 = vadd.f32 %v1244, %v1280
        %v1313 = vadd.f32 %v1245, %v1281
        %v1314 = vadd.f32 %v1246, %v1282
        %v1315 = vlaneseq
        %v1316 = vshrl.u32 %v1315, 7
        %v1317 = vsub.s32 4, %v1316
        %v1318 = vrot.slane %v406, %v1317
        %v1319 = vmul.f32 %v941, %v1318
        %v1320 = vmul.f32 %v942, %v1318
        %v1321 = vmul.f32 %v943, %v1318
        %v1322 = vmul.f32 %v944, %v1318
        %v1323 = vmul.f32 %v945, %v1318
        %v1324 = vmul.f32 %v946, %v1318
        %v1325 = vmul.f32 %v947, %v1318
        %v1326 = vmul.f32 %v948, %v1318
        %v1327 = vmul.f32 %v949, %v1318
        %v1328 = vmul.f32 %v950, %v1318
        %v1329 = vmul.f32 %v951, %v1318
        %v1330 = vmul.f32 %v952, %v1318
        %v1331 = vmul.f32 %v953, %v1318
        %v1332 = vmul.f32 %v954, %v1318
        %v1333 = vmul.f32 %v955, %v1318
        %v1334 = vmul.f32 %v956, %v1318
        %v1335 = vmul.f32 %v957, %v1318
        %v1336 = vmul.f32 %v958, %v1318
        %v1337 = vmul.f32 %v959, %v1318
        %v1338 = vmul.f32 %v960, %v1318
        %v1339 = vmul.f32 %v961, %v1318
        %v1340 = vmul.f32 %v962, %v1318
        %v1341 = vmul.f32 %v963, %v1318
        %v1342 = vmul.f32 %v964, %v1318
        %v1343 = vmul.f32 %v965, %v1318
        %v1344 = vmul.f32 %v966, %v1318
        %v1345 = vmul.f32 %v967, %v1318
        %v1346 = vmul.f32 %v968, %v1318
        %v1347 = vmul.f32 %v969, %v1318
        %v1348 = vmul.f32 %v970, %v1318
        %v1349 = vmul.f32 %v971, %v1318
        %v1350 = vmul.f32 %v972, %v1318
        %v1351 = vadd.f32 %v1283, %v1319
        %v1352 = vadd.f32 %v1284, %v1320
        %v1353 = vadd.f32 %v1285, %v1321
        %v1354 = vadd.f32 %v1286, %v1322
        %v1355 = vadd.f32 %v1287, %v1323
        %v1356 = vadd.f32 %v1288, %v1324
        %v1357 = vadd.f32 %v1289, %v1325
        %v1358 = vadd.f32 %v1290, %v1326
        %v1359 = vadd.f32 %v1291, %v1327
        %v1360 = vadd.f32 %v1292, %v1328
        %v1361 = vadd.f32 %v1293, %v1329
        %v1362 = vadd.f32 %v1294, %v1330
        %v1363 = vadd.f32 %v1295, %v1331
        %v1364 = vadd.f32 %v1296, %v1332
        %v1365 = vadd.f32 %v1297, %v1333
        %v1366 = vadd.f32 %v1298, %v1334
        %v1367 = vadd.f32 %v1299, %v1335
        %v1368 = vadd.f32 %v1300, %v1336
        %v1369 = vadd.f32 %v1301, %v1337
        %v1370 = vadd.f32 %v1302, %v1338
        %v1371 = vadd.f32 %v1303, %v1339
        %v1372 = vadd.f32 %v1304, %v1340
        %v1373 = vadd.f32 %v1305, %v1341
        %v1374 = vadd.f32 %v1306, %v1342
        %v1375 = vadd.f32 %v1307, %v1343
        %v1376 = vadd.f32 %v1308, %v1344
        %v1377 = vadd.f32 %v1309, %v1345
        %v1378 = vadd.f32 %v1310, %v1346
        %v1379 = vadd.f32 %v1311, %v1347
        %v1380 = vadd.f32 %v1312, %v1348
        %v1381 = vadd.f32 %v1313, %v1349
        %v1382 = vadd.f32 %v1314, %v1350
        %v1383 = vlaneseq
        %v1384 = vshrl.u32 %v1383, 7
        %v1385 = vsub.s32 3, %v1384
        %v1386 = vrot.slane %v407, %v1385
        %v1387 = vmul.f32 %v943, %v1386
        %v1388 = vmul.f32 %v944, %v1386
        %v1389 = vmul.f32 %v945, %v1386
        %v1390 = vmul.f32 %v946, %v1386
        %v1391 = vmul.f32 %v947, %v1386
        %v1392 = vmul.f32 %v948, %v1386
        %v1393 = vmul.f32 %v949, %v1386
        %v1394 = vmul.f32 %v950, %v1386
        %v1395 = vmul.f32 %v951, %v1386
        %v1396 = vmul.f32 %v952, %v1386
        %v1397 = vmul.f32 %v953, %v1386
        %v1398 = vmul.f32 %v954, %v1386
        %v1399 = vmul.f32 %v955, %v1386
        %v1400 = vmul.f32 %v956, %v1386
        %v1401 = vmul.f32 %v957, %v1386
        %v1402 = vmul.f32 %v958, %v1386
        %v1403 = vmul.f32 %v959, %v1386
        %v1404 = vmul.f32 %v960, %v1386
        %v1405 = vmul.f32 %v961, %v1386
        %v1406 = vmul.f32 %v962, %v1386
        %v1407 = vmul.f32 %v963, %v1386
        %v1408 = vmul.f32 %v964, %v1386
        %v1409 = vmul.f32 %v965, %v1386
        %v1410 = vmul.f32 %v966, %v1386
        %v1411 = vmul.f32 %v967, %v1386
        %v1412 = vmul.f32 %v968, %v1386
        %v1413 = vmul.f32 %v969, %v1386
        %v1414 = vmul.f32 %v970, %v1386
        %v1415 = vmul.f32 %v971, %v1386
        %v1416 = vmul.f32 %v972, %v1386
        %v1417 = vmul.f32 %v973, %v1386
        %v1418 = vmul.f32 %v974, %v1386
        %v1419 = vadd.f32 %v1351, %v1387
        %v1420 = vadd.f32 %v1352, %v1388
        %v1421 = vadd.f32 %v1353, %v1389
        %v1422 = vadd.f32 %v1354, %v1390
        %v1423 = vadd.f32 %v1355, %v1391
        %v1424 = vadd.f32 %v1356, %v1392
        %v1425 = vadd.f32 %v1357, %v1393
        %v1426 = vadd.f32 %v1358, %v1394
        %v1427 = vadd.f32 %v1359, %v1395
        %v1428 = vadd.f32 %v1360, %v1396
        %v1429 = vadd.f32 %v1361, %v1397
        %v1430 = vadd.f32 %v1362, %v1398
        %v1431 = vadd.f32 %v1363, %v1399
        %v1432 = vadd.f32 %v1364, %v1400
        %v1433 = vadd.f32 %v1365, %v1401
        %v1434 = vadd.f32 %v1366, %v1402
        %v1435 = vadd.f32 %v1367, %v1403
        %v1436 = vadd.f32 %v1368, %v1404
        %v1437 = vadd.f32 %v1369, %v1405
        %v1438 = vadd.f32 %v1370, %v1406
        %v1439 = vadd.f32 %v1371, %v1407
        %v1440 = vadd.f32 %v1372, %v1408
        %v1441 = vadd.f32 %v1373, %v1409
        %v1442 = vadd.f32 %v1374, %v1410
        %v1443 = vadd.f32 %v1375, %v1411
        %v1444 = vadd.f32 %v1376, %v1412
        %v1445 = vadd.f32 %v1377, %v1413
        %v1446 = vadd.f32 %v1378, %v1414
        %v1447 = vadd.f32 %v1379, %v1415
        %v1448 = vadd.f32 %v1380, %v1416
        %v1449 = vadd.f32 %v1381, %v1417
        %v1450 = vadd.f32 %v1382, %v1418
        %v1451 = vld [vmem:[%s410 + $0x2] sm:$0xff]
        %v1452 = vld [vmem:[%s410 + $0xa] sm:$0xff]
        %v1453 = vld [vmem:[%s410 + $0x1a] sm:$0xff]
        %v1454 = vld [vmem:[%s410 + $0x22] sm:$0xff]
        %v1455 = vld [vmem:[%s410 + $0x32] sm:$0xff]
        %v1456 = vld [vmem:[%s410 + $0x3a] sm:$0xff]
        %v1457 = vld [vmem:[%s410 + $0x4a] sm:$0xff]
        %v1458 = vld [vmem:[%s410 + $0x52] sm:$0xff]
        %v1459 = vld [vmem:[%s410 + $0x62] sm:$0xff]
        %v1460 = vld [vmem:[%s410 + $0x6a] sm:$0xff]
        %v1461 = vld [vmem:[%s410 + $0x7a] sm:$0xff]
        %v1462 = vld [vmem:[%s410 + $0x82] sm:$0xff]
        %v1463 = vld [vmem:[%s410 + $0x92] sm:$0xff]
        %v1464 = vld [vmem:[%s410 + $0x9a] sm:$0xff]
        %v1465 = vld [vmem:[%s410 + $0xaa] sm:$0xff]
        %v1466 = vld [vmem:[%s410 + $0xb2] sm:$0xff]
        %v1467 = vld [vmem:[%s410 + $0xc2] sm:$0xff]
        %v1468 = vld [vmem:[%s410 + $0xca] sm:$0xff]
        %v1469 = vld [vmem:[%s410 + $0xda] sm:$0xff]
        %v1470 = vld [vmem:[%s410 + $0xe2] sm:$0xff]
        %v1471 = vld [vmem:[%s410 + $0xf2] sm:$0xff]
        %v1472 = vld [vmem:[%s410 + $0xfa] sm:$0xff]
        %v1473 = vld [vmem:[%s410 + $0x10a] sm:$0xff]
        %v1474 = vld [vmem:[%s410 + $0x112] sm:$0xff]
        %v1475 = vld [vmem:[%s410 + $0x122] sm:$0xff]
        %v1476 = vld [vmem:[%s410 + $0x12a] sm:$0xff]
        %v1477 = vld [vmem:[%s410 + $0x13a] sm:$0xff]
        %v1478 = vld [vmem:[%s410 + $0x142] sm:$0xff]
        %v1479 = vld [vmem:[%s410 + $0x152] sm:$0xff]
        %v1480 = vld [vmem:[%s410 + $0x15a] sm:$0xff]
        %v1481 = vld [vmem:[%s410 + $0x16a] sm:$0xff]
        %v1482 = vld [vmem:[%s410 + $0x172] sm:$0xff]
        %v1483 = vld [vmem:[%s410 + $0x182] sm:$0xff]
        %v1484 = vld [vmem:[%s410 + $0x18a] sm:$0xff]
        %v1485 = vld [vmem:[%s410 + $0x19a] sm:$0xff]
        %v1486 = vld [vmem:[%s410 + $0x1a2] sm:$0xff]
        %v1487 = vld [vmem:[%s410 + $0x1b2] sm:$0xff]
        %v1488 = vld [vmem:[%s410 + $0x1ba] sm:$0xff]
        %v1489 = vld [vmem:[%s410 + $0x1ca] sm:$0xff]
        %v1490 = vld [vmem:[%s410 + $0x1d2] sm:$0xff]
        %v1491 = vld [vmem:[%s410 + $0x1e2] sm:$0xff]
        %v1492 = vld [vmem:[%s410 + $0x1ea] sm:$0xff]
        %v1493 = vld [vmem:[%s410 + $0x1fa] sm:$0xff]
        %v1494 = vld [vmem:[%s410 + $0x202] sm:$0xff]
        %v1495 = vlaneseq
        %v1496 = vshrl.u32 %v1495, 7
        %v1497 = vsub.s32 2, %v1496
        %v1498 = vrot.slane %v402, %v1497
        %v1499 = vmul.f32 %v1451, %v1498
        %v1500 = vmul.f32 %v1452, %v1498
        %v1501 = vmul.f32 %v1453, %v1498
        %v1502 = vmul.f32 %v1454, %v1498
        %v1503 = vmul.f32 %v1455, %v1498
        %v1504 = vmul.f32 %v1456, %v1498
        %v1505 = vmul.f32 %v1457, %v1498
        %v1506 = vmul.f32 %v1458, %v1498
        %v1507 = vmul.f32 %v1459, %v1498
        %v1508 = vmul.f32 %v1460, %v1498
        %v1509 = vmul.f32 %v1461, %v1498
        %v1510 = vmul.f32 %v1462, %v1498
        %v1511 = vmul.f32 %v1463, %v1498
        %v1512 = vmul.f32 %v1464, %v1498
        %v1513 = vmul.f32 %v1465, %v1498
        %v1514 = vmul.f32 %v1466, %v1498
        %v1515 = vmul.f32 %v1467, %v1498
        %v1516 = vmul.f32 %v1468, %v1498
        %v1517 = vmul.f32 %v1469, %v1498
        %v1518 = vmul.f32 %v1470, %v1498
        %v1519 = vmul.f32 %v1471, %v1498
        %v1520 = vmul.f32 %v1472, %v1498
        %v1521 = vmul.f32 %v1473, %v1498
        %v1522 = vmul.f32 %v1474, %v1498
        %v1523 = vmul.f32 %v1475, %v1498
        %v1524 = vmul.f32 %v1476, %v1498
        %v1525 = vmul.f32 %v1477, %v1498
        %v1526 = vmul.f32 %v1478, %v1498
        %v1527 = vmul.f32 %v1479, %v1498
        %v1528 = vmul.f32 %v1480, %v1498
        %v1529 = vmul.f32 %v1481, %v1498
        %v1530 = vmul.f32 %v1482, %v1498
        %v1531 = vadd.f32 %v1419, %v1499
        %v1532 = vadd.f32 %v1420, %v1500
        %v1533 = vadd.f32 %v1421, %v1501
        %v1534 = vadd.f32 %v1422, %v1502
        %v1535 = vadd.f32 %v1423, %v1503
        %v1536 = vadd.f32 %v1424, %v1504
        %v1537 = vadd.f32 %v1425, %v1505
        %v1538 = vadd.f32 %v1426, %v1506
        %v1539 = vadd.f32 %v1427, %v1507
        %v1540 = vadd.f32 %v1428, %v1508
        %v1541 = vadd.f32 %v1429, %v1509
        %v1542 = vadd.f32 %v1430, %v1510
        %v1543 = vadd.f32 %v1431, %v1511
        %v1544 = vadd.f32 %v1432, %v1512
        %v1545 = vadd.f32 %v1433, %v1513
        %v1546 = vadd.f32 %v1434, %v1514
        %v1547 = vadd.f32 %v1435, %v1515
        %v1548 = vadd.f32 %v1436, %v1516
        %v1549 = vadd.f32 %v1437, %v1517
        %v1550 = vadd.f32 %v1438, %v1518
        %v1551 = vadd.f32 %v1439, %v1519
        %v1552 = vadd.f32 %v1440, %v1520
        %v1553 = vadd.f32 %v1441, %v1521
        %v1554 = vadd.f32 %v1442, %v1522
        %v1555 = vadd.f32 %v1443, %v1523
        %v1556 = vadd.f32 %v1444, %v1524
        %v1557 = vadd.f32 %v1445, %v1525
        %v1558 = vadd.f32 %v1446, %v1526
        %v1559 = vadd.f32 %v1447, %v1527
        %v1560 = vadd.f32 %v1448, %v1528
        %v1561 = vadd.f32 %v1449, %v1529
        %v1562 = vadd.f32 %v1450, %v1530
        %v1563 = vlaneseq
        %v1564 = vshrl.u32 %v1563, 7
        %v1565 = vsub.s32 1, %v1564
        %v1566 = vrot.slane %v403, %v1565
        %v1567 = vmul.f32 %v1453, %v1566
        %v1568 = vmul.f32 %v1454, %v1566
        %v1569 = vmul.f32 %v1455, %v1566
        %v1570 = vmul.f32 %v1456, %v1566
        %v1571 = vmul.f32 %v1457, %v1566
        %v1572 = vmul.f32 %v1458, %v1566
        %v1573 = vmul.f32 %v1459, %v1566
        %v1574 = vmul.f32 %v1460, %v1566
        %v1575 = vmul.f32 %v1461, %v1566
        %v1576 = vmul.f32 %v1462, %v1566
        %v1577 = vmul.f32 %v1463, %v1566
        %v1578 = vmul.f32 %v1464, %v1566
        %v1579 = vmul.f32 %v1465, %v1566
        %v1580 = vmul.f32 %v1466, %v1566
        %v1581 = vmul.f32 %v1467, %v1566
        %v1582 = vmul.f32 %v1468, %v1566
        %v1583 = vmul.f32 %v1469, %v1566
        %v1584 = vmul.f32 %v1470, %v1566
        %v1585 = vmul.f32 %v1471, %v1566
        %v1586 = vmul.f32 %v1472, %v1566
        %v1587 = vmul.f32 %v1473, %v1566
        %v1588 = vmul.f32 %v1474, %v1566
        %v1589 = vmul.f32 %v1475, %v1566
        %v1590 = vmul.f32 %v1476, %v1566
        %v1591 = vmul.f32 %v1477, %v1566
        %v1592 = vmul.f32 %v1478, %v1566
        %v1593 = vmul.f32 %v1479, %v1566
        %v1594 = vmul.f32 %v1480, %v1566
        %v1595 = vmul.f32 %v1481, %v1566
        %v1596 = vmul.f32 %v1482, %v1566
        %v1597 = vmul.f32 %v1483, %v1566
        %v1598 = vmul.f32 %v1484, %v1566
        %v1599 = vadd.f32 %v1531, %v1567
        %v1600 = vadd.f32 %v1532, %v1568
        %v1601 = vadd.f32 %v1533, %v1569
        %v1602 = vadd.f32 %v1534, %v1570
        %v1603 = vadd.f32 %v1535, %v1571
        %v1604 = vadd.f32 %v1536, %v1572
        %v1605 = vadd.f32 %v1537, %v1573
        %v1606 = vadd.f32 %v1538, %v1574
        %v1607 = vadd.f32 %v1539, %v1575
        %v1608 = vadd.f32 %v1540, %v1576
        %v1609 = vadd.f32 %v1541, %v1577
        %v1610 = vadd.f32 %v1542, %v1578
        %v1611 = vadd.f32 %v1543, %v1579
        %v1612 = vadd.f32 %v1544, %v1580
        %v1613 = vadd.f32 %v1545, %v1581
        %v1614 = vadd.f32 %v1546, %v1582
        %v1615 = vadd.f32 %v1547, %v1583
        %v1616 = vadd.f32 %v1548, %v1584
        %v1617 = vadd.f32 %v1549, %v1585
        %v1618 = vadd.f32 %v1550, %v1586
        %v1619 = vadd.f32 %v1551, %v1587
        %v1620 = vadd.f32 %v1552, %v1588
        %v1621 = vadd.f32 %v1553, %v1589
        %v1622 = vadd.f32 %v1554, %v1590
        %v1623 = vadd.f32 %v1555, %v1591
        %v1624 = vadd.f32 %v1556, %v1592
        %v1625 = vadd.f32 %v1557, %v1593
        %v1626 = vadd.f32 %v1558, %v1594
        %v1627 = vadd.f32 %v1559, %v1595
        %v1628 = vadd.f32 %v1560, %v1596
        %v1629 = vadd.f32 %v1561, %v1597
        %v1630 = vadd.f32 %v1562, %v1598
        %v1631 = vlaneseq
        %v1632 = vshrl.u32 %v1631, 7
        %v1633 = vsub.s32 0, %v1632
        %v1634 = vrot.slane %v404, %v1633
        %v1635 = vmul.f32 %v1455, %v1634
        %v1636 = vmul.f32 %v1456, %v1634
        %v1637 = vmul.f32 %v1457, %v1634
        %v1638 = vmul.f32 %v1458, %v1634
        %v1639 = vmul.f32 %v1459, %v1634
        %v1640 = vmul.f32 %v1460, %v1634
        %v1641 = vmul.f32 %v1461, %v1634
        %v1642 = vmul.f32 %v1462, %v1634
        %v1643 = vmul.f32 %v1463, %v1634
        %v1644 = vmul.f32 %v1464, %v1634
        %v1645 = vmul.f32 %v1465, %v1634
        %v1646 = vmul.f32 %v1466, %v1634
        %v1647 = vmul.f32 %v1467, %v1634
        %v1648 = vmul.f32 %v1468, %v1634
        %v1649 = vmul.f32 %v1469, %v1634
        %v1650 = vmul.f32 %v1470, %v1634
        %v1651 = vmul.f32 %v1471, %v1634
        %v1652 = vmul.f32 %v1472, %v1634
        %v1653 = vmul.f32 %v1473, %v1634
        %v1654 = vmul.f32 %v1474, %v1634
        %v1655 = vmul.f32 %v1475, %v1634
        %v1656 = vmul.f32 %v1476, %v1634
        %v1657 = vmul.f32 %v1477, %v1634
        %v1658 = vmul.f32 %v1478, %v1634
        %v1659 = vmul.f32 %v1479, %v1634
        %v1660 = vmul.f32 %v1480, %v1634
        %v1661 = vmul.f32 %v1481, %v1634
        %v1662 = vmul.f32 %v1482, %v1634
        %v1663 = vmul.f32 %v1483, %v1634
        %v1664 = vmul.f32 %v1484, %v1634
        %v1665 = vmul.f32 %v1485, %v1634
        %v1666 = vmul.f32 %v1486, %v1634
        %v1667 = vadd.f32 %v1599, %v1635
        %v1668 = vadd.f32 %v1600, %v1636
        %v1669 = vadd.f32 %v1601, %v1637
        %v1670 = vadd.f32 %v1602, %v1638
        %v1671 = vadd.f32 %v1603, %v1639
        %v1672 = vadd.f32 %v1604, %v1640
        %v1673 = vadd.f32 %v1605, %v1641
        %v1674 = vadd.f32 %v1606, %v1642
        %v1675 = vadd.f32 %v1607, %v1643
        %v1676 = vadd.f32 %v1608, %v1644
        %v1677 = vadd.f32 %v1609, %v1645
        %v1678 = vadd.f32 %v1610, %v1646
        %v1679 = vadd.f32 %v1611, %v1647
        %v1680 = vadd.f32 %v1612, %v1648
        %v1681 = vadd.f32 %v1613, %v1649
        %v1682 = vadd.f32 %v1614, %v1650
        %v1683 = vadd.f32 %v1615, %v1651
        %v1684 = vadd.f32 %v1616, %v1652
        %v1685 = vadd.f32 %v1617, %v1653
        %v1686 = vadd.f32 %v1618, %v1654
        %v1687 = vadd.f32 %v1619, %v1655
        %v1688 = vadd.f32 %v1620, %v1656
        %v1689 = vadd.f32 %v1621, %v1657
        %v1690 = vadd.f32 %v1622, %v1658
        %v1691 = vadd.f32 %v1623, %v1659
        %v1692 = vadd.f32 %v1624, %v1660
        %v1693 = vadd.f32 %v1625, %v1661
        %v1694 = vadd.f32 %v1626, %v1662
        %v1695 = vadd.f32 %v1627, %v1663
        %v1696 = vadd.f32 %v1628, %v1664
        %v1697 = vadd.f32 %v1629, %v1665
        %v1698 = vadd.f32 %v1630, %v1666
        %v1699 = vlaneseq
        %v1700 = vshrl.u32 %v1699, 7
        %v1701 = vsub.s32 7, %v1700
        %v1702 = vrot.slane %v404, %v1701
        %v1703 = vmul.f32 %v1457, %v1702
        %v1704 = vmul.f32 %v1458, %v1702
        %v1705 = vmul.f32 %v1459, %v1702
        %v1706 = vmul.f32 %v1460, %v1702
        %v1707 = vmul.f32 %v1461, %v1702
        %v1708 = vmul.f32 %v1462, %v1702
        %v1709 = vmul.f32 %v1463, %v1702
        %v1710 = vmul.f32 %v1464, %v1702
        %v1711 = vmul.f32 %v1465, %v1702
        %v1712 = vmul.f32 %v1466, %v1702
        %v1713 = vmul.f32 %v1467, %v1702
        %v1714 = vmul.f32 %v1468, %v1702
        %v1715 = vmul.f32 %v1469, %v1702
        %v1716 = vmul.f32 %v1470, %v1702
        %v1717 = vmul.f32 %v1471, %v1702
        %v1718 = vmul.f32 %v1472, %v1702
        %v1719 = vmul.f32 %v1473, %v1702
        %v1720 = vmul.f32 %v1474, %v1702
        %v1721 = vmul.f32 %v1475, %v1702
        %v1722 = vmul.f32 %v1476, %v1702
        %v1723 = vmul.f32 %v1477, %v1702
        %v1724 = vmul.f32 %v1478, %v1702
        %v1725 = vmul.f32 %v1479, %v1702
        %v1726 = vmul.f32 %v1480, %v1702
        %v1727 = vmul.f32 %v1481, %v1702
        %v1728 = vmul.f32 %v1482, %v1702
        %v1729 = vmul.f32 %v1483, %v1702
        %v1730 = vmul.f32 %v1484, %v1702
        %v1731 = vmul.f32 %v1485, %v1702
        %v1732 = vmul.f32 %v1486, %v1702
        %v1733 = vmul.f32 %v1487, %v1702
        %v1734 = vmul.f32 %v1488, %v1702
        %v1735 = vadd.f32 %v1667, %v1703
        %v1736 = vadd.f32 %v1668, %v1704
        %v1737 = vadd.f32 %v1669, %v1705
        %v1738 = vadd.f32 %v1670, %v1706
        %v1739 = vadd.f32 %v1671, %v1707
        %v1740 = vadd.f32 %v1672, %v1708
        %v1741 = vadd.f32 %v1673, %v1709
        %v1742 = vadd.f32 %v1674, %v1710
        %v1743 = vadd.f32 %v1675, %v1711
        %v1744 = vadd.f32 %v1676, %v1712
        %v1745 = vadd.f32 %v1677, %v1713
        %v1746 = vadd.f32 %v1678, %v1714
        %v1747 = vadd.f32 %v1679, %v1715
        %v1748 = vadd.f32 %v1680, %v1716
        %v1749 = vadd.f32 %v1681, %v1717
        %v1750 = vadd.f32 %v1682, %v1718
        %v1751 = vadd.f32 %v1683, %v1719
        %v1752 = vadd.f32 %v1684, %v1720
        %v1753 = vadd.f32 %v1685, %v1721
        %v1754 = vadd.f32 %v1686, %v1722
        %v1755 = vadd.f32 %v1687, %v1723
        %v1756 = vadd.f32 %v1688, %v1724
        %v1757 = vadd.f32 %v1689, %v1725
        %v1758 = vadd.f32 %v1690, %v1726
        %v1759 = vadd.f32 %v1691, %v1727
        %v1760 = vadd.f32 %v1692, %v1728
        %v1761 = vadd.f32 %v1693, %v1729
        %v1762 = vadd.f32 %v1694, %v1730
        %v1763 = vadd.f32 %v1695, %v1731
        %v1764 = vadd.f32 %v1696, %v1732
        %v1765 = vadd.f32 %v1697, %v1733
        %v1766 = vadd.f32 %v1698, %v1734
        %v1767 = vlaneseq
        %v1768 = vshrl.u32 %v1767, 7
        %v1769 = vsub.s32 6, %v1768
        %v1770 = vrot.slane %v405, %v1769
        %v1771 = vmul.f32 %v1459, %v1770
        %v1772 = vmul.f32 %v1460, %v1770
        %v1773 = vmul.f32 %v1461, %v1770
        %v1774 = vmul.f32 %v1462, %v1770
        %v1775 = vmul.f32 %v1463, %v1770
        %v1776 = vmul.f32 %v1464, %v1770
        %v1777 = vmul.f32 %v1465, %v1770
        %v1778 = vmul.f32 %v1466, %v1770
        %v1779 = vmul.f32 %v1467, %v1770
        %v1780 = vmul.f32 %v1468, %v1770
        %v1781 = vmul.f32 %v1469, %v1770
        %v1782 = vmul.f32 %v1470, %v1770
        %v1783 = vmul.f32 %v1471, %v1770
        %v1784 = vmul.f32 %v1472, %v1770
        %v1785 = vmul.f32 %v1473, %v1770
        %v1786 = vmul.f32 %v1474, %v1770
        %v1787 = vmul.f32 %v1475, %v1770
        %v1788 = vmul.f32 %v1476, %v1770
        %v1789 = vmul.f32 %v1477, %v1770
        %v1790 = vmul.f32 %v1478, %v1770
        %v1791 = vmul.f32 %v1479, %v1770
        %v1792 = vmul.f32 %v1480, %v1770
        %v1793 = vmul.f32 %v1481, %v1770
        %v1794 = vmul.f32 %v1482, %v1770
        %v1795 = vmul.f32 %v1483, %v1770
        %v1796 = vmul.f32 %v1484, %v1770
        %v1797 = vmul.f32 %v1485, %v1770
        %v1798 = vmul.f32 %v1486, %v1770
        %v1799 = vmul.f32 %v1487, %v1770
        %v1800 = vmul.f32 %v1488, %v1770
        %v1801 = vmul.f32 %v1489, %v1770
        %v1802 = vmul.f32 %v1490, %v1770
        %v1803 = vadd.f32 %v1735, %v1771
        %v1804 = vadd.f32 %v1736, %v1772
        %v1805 = vadd.f32 %v1737, %v1773
        %v1806 = vadd.f32 %v1738, %v1774
        %v1807 = vadd.f32 %v1739, %v1775
        %v1808 = vadd.f32 %v1740, %v1776
        %v1809 = vadd.f32 %v1741, %v1777
        %v1810 = vadd.f32 %v1742, %v1778
        %v1811 = vadd.f32 %v1743, %v1779
        %v1812 = vadd.f32 %v1744, %v1780
        %v1813 = vadd.f32 %v1745, %v1781
        %v1814 = vadd.f32 %v1746, %v1782
        %v1815 = vadd.f32 %v1747, %v1783
        %v1816 = vadd.f32 %v1748, %v1784
        %v1817 = vadd.f32 %v1749, %v1785
        %v1818 = vadd.f32 %v1750, %v1786
        %v1819 = vadd.f32 %v1751, %v1787
        %v1820 = vadd.f32 %v1752, %v1788
        %v1821 = vadd.f32 %v1753, %v1789
        %v1822 = vadd.f32 %v1754, %v1790
        %v1823 = vadd.f32 %v1755, %v1791
        %v1824 = vadd.f32 %v1756, %v1792
        %v1825 = vadd.f32 %v1757, %v1793
        %v1826 = vadd.f32 %v1758, %v1794
        %v1827 = vadd.f32 %v1759, %v1795
        %v1828 = vadd.f32 %v1760, %v1796
        %v1829 = vadd.f32 %v1761, %v1797
        %v1830 = vadd.f32 %v1762, %v1798
        %v1831 = vadd.f32 %v1763, %v1799
        %v1832 = vadd.f32 %v1764, %v1800
        %v1833 = vadd.f32 %v1765, %v1801
        %v1834 = vadd.f32 %v1766, %v1802
        %v1835 = vlaneseq
        %v1836 = vshrl.u32 %v1835, 7
        %v1837 = vsub.s32 5, %v1836
        %v1838 = vrot.slane %v406, %v1837
        %v1839 = vmul.f32 %v1461, %v1838
        %v1840 = vmul.f32 %v1462, %v1838
        %v1841 = vmul.f32 %v1463, %v1838
        %v1842 = vmul.f32 %v1464, %v1838
        %v1843 = vmul.f32 %v1465, %v1838
        %v1844 = vmul.f32 %v1466, %v1838
        %v1845 = vmul.f32 %v1467, %v1838
        %v1846 = vmul.f32 %v1468, %v1838
        %v1847 = vmul.f32 %v1469, %v1838
        %v1848 = vmul.f32 %v1470, %v1838
        %v1849 = vmul.f32 %v1471, %v1838
        %v1850 = vmul.f32 %v1472, %v1838
        %v1851 = vmul.f32 %v1473, %v1838
        %v1852 = vmul.f32 %v1474, %v1838
        %v1853 = vmul.f32 %v1475, %v1838
        %v1854 = vmul.f32 %v1476, %v1838
        %v1855 = vmul.f32 %v1477, %v1838
        %v1856 = vmul.f32 %v1478, %v1838
        %v1857 = vmul.f32 %v1479, %v1838
        %v1858 = vmul.f32 %v1480, %v1838
        %v1859 = vmul.f32 %v1481, %v1838
        %v1860 = vmul.f32 %v1482, %v1838
        %v1861 = vmul.f32 %v1483, %v1838
        %v1862 = vmul.f32 %v1484, %v1838
        %v1863 = vmul.f32 %v1485, %v1838
        %v1864 = vmul.f32 %v1486, %v1838
        %v1865 = vmul.f32 %v1487, %v1838
        %v1866 = vmul.f32 %v1488, %v1838
        %v1867 = vmul.f32 %v1489, %v1838
        %v1868 = vmul.f32 %v1490, %v1838
        %v1869 = vmul.f32 %v1491, %v1838
        %v1870 = vmul.f32 %v1492, %v1838
        %v1871 = vadd.f32 %v1803, %v1839
        %v1872 = vadd.f32 %v1804, %v1840
        %v1873 = vadd.f32 %v1805, %v1841
        %v1874 = vadd.f32 %v1806, %v1842
        %v1875 = vadd.f32 %v1807, %v1843
        %v1876 = vadd.f32 %v1808, %v1844
        %v1877 = vadd.f32 %v1809, %v1845
        %v1878 = vadd.f32 %v1810, %v1846
        %v1879 = vadd.f32 %v1811, %v1847
        %v1880 = vadd.f32 %v1812, %v1848
        %v1881 = vadd.f32 %v1813, %v1849
        %v1882 = vadd.f32 %v1814, %v1850
        %v1883 = vadd.f32 %v1815, %v1851
        %v1884 = vadd.f32 %v1816, %v1852
        %v1885 = vadd.f32 %v1817, %v1853
        %v1886 = vadd.f32 %v1818, %v1854
        %v1887 = vadd.f32 %v1819, %v1855
        %v1888 = vadd.f32 %v1820, %v1856
        %v1889 = vadd.f32 %v1821, %v1857
        %v1890 = vadd.f32 %v1822, %v1858
        %v1891 = vadd.f32 %v1823, %v1859
        %v1892 = vadd.f32 %v1824, %v1860
        %v1893 = vadd.f32 %v1825, %v1861
        %v1894 = vadd.f32 %v1826, %v1862
        %v1895 = vadd.f32 %v1827, %v1863
        %v1896 = vadd.f32 %v1828, %v1864
        %v1897 = vadd.f32 %v1829, %v1865
        %v1898 = vadd.f32 %v1830, %v1866
        %v1899 = vadd.f32 %v1831, %v1867
        %v1900 = vadd.f32 %v1832, %v1868
        %v1901 = vadd.f32 %v1833, %v1869
        %v1902 = vadd.f32 %v1834, %v1870
        %v1903 = vlaneseq
        %v1904 = vshrl.u32 %v1903, 7
        %v1905 = vsub.s32 4, %v1904
        %v1906 = vrot.slane %v407, %v1905
        %v1907 = vmul.f32 %v1463, %v1906
        %v1908 = vmul.f32 %v1464, %v1906
        %v1909 = vmul.f32 %v1465, %v1906
        %v1910 = vmul.f32 %v1466, %v1906
        %v1911 = vmul.f32 %v1467, %v1906
        %v1912 = vmul.f32 %v1468, %v1906
        %v1913 = vmul.f32 %v1469, %v1906
        %v1914 = vmul.f32 %v1470, %v1906
        %v1915 = vmul.f32 %v1471, %v1906
        %v1916 = vmul.f32 %v1472, %v1906
        %v1917 = vmul.f32 %v1473, %v1906
        %v1918 = vmul.f32 %v1474, %v1906
        %v1919 = vmul.f32 %v1475, %v1906
        %v1920 = vmul.f32 %v1476, %v1906
        %v1921 = vmul.f32 %v1477, %v1906
        %v1922 = vmul.f32 %v1478, %v1906
        %v1923 = vmul.f32 %v1479, %v1906
        %v1924 = vmul.f32 %v1480, %v1906
        %v1925 = vmul.f32 %v1481, %v1906
        %v1926 = vmul.f32 %v1482, %v1906
        %v1927 = vmul.f32 %v1483, %v1906
        %v1928 = vmul.f32 %v1484, %v1906
        %v1929 = vmul.f32 %v1485, %v1906
        %v1930 = vmul.f32 %v1486, %v1906
        %v1931 = vmul.f32 %v1487, %v1906
        %v1932 = vmul.f32 %v1488, %v1906
        %v1933 = vmul.f32 %v1489, %v1906
        %v1934 = vmul.f32 %v1490, %v1906
        %v1935 = vmul.f32 %v1491, %v1906
        %v1936 = vmul.f32 %v1492, %v1906
        %v1937 = vmul.f32 %v1493, %v1906
        %v1938 = vmul.f32 %v1494, %v1906
        %v1939 = vadd.f32 %v1871, %v1907
        %v1940 = vadd.f32 %v1872, %v1908
        %v1941 = vadd.f32 %v1873, %v1909
        %v1942 = vadd.f32 %v1874, %v1910
        %v1943 = vadd.f32 %v1875, %v1911
        %v1944 = vadd.f32 %v1876, %v1912
        %v1945 = vadd.f32 %v1877, %v1913
        %v1946 = vadd.f32 %v1878, %v1914
        %v1947 = vadd.f32 %v1879, %v1915
        %v1948 = vadd.f32 %v1880, %v1916
        %v1949 = vadd.f32 %v1881, %v1917
        %v1950 = vadd.f32 %v1882, %v1918
        %v1951 = vadd.f32 %v1883, %v1919
        %v1952 = vadd.f32 %v1884, %v1920
        %v1953 = vadd.f32 %v1885, %v1921
        %v1954 = vadd.f32 %v1886, %v1922
        %v1955 = vadd.f32 %v1887, %v1923
        %v1956 = vadd.f32 %v1888, %v1924
        %v1957 = vadd.f32 %v1889, %v1925
        %v1958 = vadd.f32 %v1890, %v1926
        %v1959 = vadd.f32 %v1891, %v1927
        %v1960 = vadd.f32 %v1892, %v1928
        %v1961 = vadd.f32 %v1893, %v1929
        %v1962 = vadd.f32 %v1894, %v1930
        %v1963 = vadd.f32 %v1895, %v1931
        %v1964 = vadd.f32 %v1896, %v1932
        %v1965 = vadd.f32 %v1897, %v1933
        %v1966 = vadd.f32 %v1898, %v1934
        %v1967 = vadd.f32 %v1899, %v1935
        %v1968 = vadd.f32 %v1900, %v1936
        %v1969 = vadd.f32 %v1901, %v1937
        %v1970 = vadd.f32 %v1902, %v1938
        %v1971 = vld [vmem:[%s410 + $0x3] sm:$0xff]
        %v1972 = vld [vmem:[%s410 + $0xb] sm:$0xff]
        %v1973 = vld [vmem:[%s410 + $0x1b] sm:$0xff]
        %v1974 = vld [vmem:[%s410 + $0x23] sm:$0xff]
        %v1975 = vld [vmem:[%s410 + $0x33] sm:$0xff]
        %v1976 = vld [vmem:[%s410 + $0x3b] sm:$0xff]
        %v1977 = vld [vmem:[%s410 + $0x4b] sm:$0xff]
        %v1978 = vld [vmem:[%s410 + $0x53] sm:$0xff]
        %v1979 = vld [vmem:[%s410 + $0x63] sm:$0xff]
        %v1980 = vld [vmem:[%s410 + $0x6b] sm:$0xff]
        %v1981 = vld [vmem:[%s410 + $0x7b] sm:$0xff]
        %v1982 = vld [vmem:[%s410 + $0x83] sm:$0xff]
        %v1983 = vld [vmem:[%s410 + $0x93] sm:$0xff]
        %v1984 = vld [vmem:[%s410 + $0x9b] sm:$0xff]
        %v1985 = vld [vmem:[%s410 + $0xab] sm:$0xff]
        %v1986 = vld [vmem:[%s410 + $0xb3] sm:$0xff]
        %v1987 = vld [vmem:[%s410 + $0xc3] sm:$0xff]
        %v1988 = vld [vmem:[%s410 + $0xcb] sm:$0xff]
        %v1989 = vld [vmem:[%s410 + $0xdb] sm:$0xff]
        %v1990 = vld [vmem:[%s410 + $0xe3] sm:$0xff]
        %v1991 = vld [vmem:[%s410 + $0xf3] sm:$0xff]
        %v1992 = vld [vmem:[%s410 + $0xfb] sm:$0xff]
        %v1993 = vld [vmem:[%s410 + $0x10b] sm:$0xff]
        %v1994 = vld [vmem:[%s410 + $0x113] sm:$0xff]
        %v1995 = vld [vmem:[%s410 + $0x123] sm:$0xff]
        %v1996 = vld [vmem:[%s410 + $0x12b] sm:$0xff]
        %v1997 = vld [vmem:[%s410 + $0x13b] sm:$0xff]
        %v1998 = vld [vmem:[%s410 + $0x143] sm:$0xff]
        %v1999 = vld [vmem:[%s410 + $0x153] sm:$0xff]
        %v2000 = vld [vmem:[%s410 + $0x15b] sm:$0xff]
        %v2001 = vld [vmem:[%s410 + $0x16b] sm:$0xff]
        %v2002 = vld [vmem:[%s410 + $0x173] sm:$0xff]
        %v2003 = vld [vmem:[%s410 + $0x183] sm:$0xff]
        %v2004 = vld [vmem:[%s410 + $0x18b] sm:$0xff]
        %v2005 = vld [vmem:[%s410 + $0x19b] sm:$0xff]
        %v2006 = vld [vmem:[%s410 + $0x1a3] sm:$0xff]
        %v2007 = vld [vmem:[%s410 + $0x1b3] sm:$0xff]
        %v2008 = vld [vmem:[%s410 + $0x1bb] sm:$0xff]
        %v2009 = vld [vmem:[%s410 + $0x1cb] sm:$0xff]
        %v2010 = vld [vmem:[%s410 + $0x1d3] sm:$0xff]
        %v2011 = vld [vmem:[%s410 + $0x1e3] sm:$0xff]
        %v2012 = vld [vmem:[%s410 + $0x1eb] sm:$0xff]
        %v2013 = vld [vmem:[%s410 + $0x1fb] sm:$0xff]
        %v2014 = vld [vmem:[%s410 + $0x203] sm:$0xff]
        %v2015 = vlaneseq
        %v2016 = vshrl.u32 %v2015, 7
        %v2017 = vsub.s32 3, %v2016
        %v2018 = vrot.slane %v402, %v2017
        %v2019 = vmul.f32 %v1971, %v2018
        %v2020 = vmul.f32 %v1972, %v2018
        %v2021 = vmul.f32 %v1973, %v2018
        %v2022 = vmul.f32 %v1974, %v2018
        %v2023 = vmul.f32 %v1975, %v2018
        %v2024 = vmul.f32 %v1976, %v2018
        %v2025 = vmul.f32 %v1977, %v2018
        %v2026 = vmul.f32 %v1978, %v2018
        %v2027 = vmul.f32 %v1979, %v2018
        %v2028 = vmul.f32 %v1980, %v2018
        %v2029 = vmul.f32 %v1981, %v2018
        %v2030 = vmul.f32 %v1982, %v2018
        %v2031 = vmul.f32 %v1983, %v2018
        %v2032 = vmul.f32 %v1984, %v2018
        %v2033 = vmul.f32 %v1985, %v2018
        %v2034 = vmul.f32 %v1986, %v2018
        %v2035 = vmul.f32 %v1987, %v2018
        %v2036 = vmul.f32 %v1988, %v2018
        %v2037 = vmul.f32 %v1989, %v2018
        %v2038 = vmul.f32 %v1990, %v2018
        %v2039 = vmul.f32 %v1991, %v2018
        %v2040 = vmul.f32 %v1992, %v2018
        %v2041 = vmul.f32 %v1993, %v2018
        %v2042 = vmul.f32 %v1994, %v2018
        %v2043 = vmul.f32 %v1995, %v2018
        %v2044 = vmul.f32 %v1996, %v2018
        %v2045 = vmul.f32 %v1997, %v2018
        %v2046 = vmul.f32 %v1998, %v2018
        %v2047 = vmul.f32 %v1999, %v2018
        %v2048 = vmul.f32 %v2000, %v2018
        %v2049 = vmul.f32 %v2001, %v2018
        %v2050 = vmul.f32 %v2002, %v2018
        %v2051 = vadd.f32 %v1939, %v2019
        %v2052 = vadd.f32 %v1940, %v2020
        %v2053 = vadd.f32 %v1941, %v2021
        %v2054 = vadd.f32 %v1942, %v2022
        %v2055 = vadd.f32 %v1943, %v2023
        %v2056 = vadd.f32 %v1944, %v2024
        %v2057 = vadd.f32 %v1945, %v2025
        %v2058 = vadd.f32 %v1946, %v2026
        %v2059 = vadd.f32 %v1947, %v2027
        %v2060 = vadd.f32 %v1948, %v2028
        %v2061 = vadd.f32 %v1949, %v2029
        %v2062 = vadd.f32 %v1950, %v2030
        %v2063 = vadd.f32 %v1951, %v2031
        %v2064 = vadd.f32 %v1952, %v2032
        %v2065 = vadd.f32 %v1953, %v2033
        %v2066 = vadd.f32 %v1954, %v2034
        %v2067 = vadd.f32 %v1955, %v2035
        %v2068 = vadd.f32 %v1956, %v2036
        %v2069 = vadd.f32 %v1957, %v2037
        %v2070 = vadd.f32 %v1958, %v2038
        %v2071 = vadd.f32 %v1959, %v2039
        %v2072 = vadd.f32 %v1960, %v2040
        %v2073 = vadd.f32 %v1961, %v2041
        %v2074 = vadd.f32 %v1962, %v2042
        %v2075 = vadd.f32 %v1963, %v2043
        %v2076 = vadd.f32 %v1964, %v2044
        %v2077 = vadd.f32 %v1965, %v2045
        %v2078 = vadd.f32 %v1966, %v2046
        %v2079 = vadd.f32 %v1967, %v2047
        %v2080 = vadd.f32 %v1968, %v2048
        %v2081 = vadd.f32 %v1969, %v2049
        %v2082 = vadd.f32 %v1970, %v2050
        %v2083 = vlaneseq
        %v2084 = vshrl.u32 %v2083, 7
        %v2085 = vsub.s32 2, %v2084
        %v2086 = vrot.slane %v403, %v2085
        %v2087 = vmul.f32 %v1973, %v2086
        %v2088 = vmul.f32 %v1974, %v2086
        %v2089 = vmul.f32 %v1975, %v2086
        %v2090 = vmul.f32 %v1976, %v2086
        %v2091 = vmul.f32 %v1977, %v2086
        %v2092 = vmul.f32 %v1978, %v2086
        %v2093 = vmul.f32 %v1979, %v2086
        %v2094 = vmul.f32 %v1980, %v2086
        %v2095 = vmul.f32 %v1981, %v2086
        %v2096 = vmul.f32 %v1982, %v2086
        %v2097 = vmul.f32 %v1983, %v2086
        %v2098 = vmul.f32 %v1984, %v2086
        %v2099 = vmul.f32 %v1985, %v2086
        %v2100 = vmul.f32 %v1986, %v2086
        %v2101 = vmul.f32 %v1987, %v2086
        %v2102 = vmul.f32 %v1988, %v2086
        %v2103 = vmul.f32 %v1989, %v2086
        %v2104 = vmul.f32 %v1990, %v2086
        %v2105 = vmul.f32 %v1991, %v2086
        %v2106 = vmul.f32 %v1992, %v2086
        %v2107 = vmul.f32 %v1993, %v2086
        %v2108 = vmul.f32 %v1994, %v2086
        %v2109 = vmul.f32 %v1995, %v2086
        %v2110 = vmul.f32 %v1996, %v2086
        %v2111 = vmul.f32 %v1997, %v2086
        %v2112 = vmul.f32 %v1998, %v2086
        %v2113 = vmul.f32 %v1999, %v2086
        %v2114 = vmul.f32 %v2000, %v2086
        %v2115 = vmul.f32 %v2001, %v2086
        %v2116 = vmul.f32 %v2002, %v2086
        %v2117 = vmul.f32 %v2003, %v2086
        %v2118 = vmul.f32 %v2004, %v2086
        %v2119 = vadd.f32 %v2051, %v2087
        %v2120 = vadd.f32 %v2052, %v2088
        %v2121 = vadd.f32 %v2053, %v2089
        %v2122 = vadd.f32 %v2054, %v2090
        %v2123 = vadd.f32 %v2055, %v2091
        %v2124 = vadd.f32 %v2056, %v2092
        %v2125 = vadd.f32 %v2057, %v2093
        %v2126 = vadd.f32 %v2058, %v2094
        %v2127 = vadd.f32 %v2059, %v2095
        %v2128 = vadd.f32 %v2060, %v2096
        %v2129 = vadd.f32 %v2061, %v2097
        %v2130 = vadd.f32 %v2062, %v2098
        %v2131 = vadd.f32 %v2063, %v2099
        %v2132 = vadd.f32 %v2064, %v2100
        %v2133 = vadd.f32 %v2065, %v2101
        %v2134 = vadd.f32 %v2066, %v2102
        %v2135 = vadd.f32 %v2067, %v2103
        %v2136 = vadd.f32 %v2068, %v2104
        %v2137 = vadd.f32 %v2069, %v2105
        %v2138 = vadd.f32 %v2070, %v2106
        %v2139 = vadd.f32 %v2071, %v2107
        %v2140 = vadd.f32 %v2072, %v2108
        %v2141 = vadd.f32 %v2073, %v2109
        %v2142 = vadd.f32 %v2074, %v2110
        %v2143 = vadd.f32 %v2075, %v2111
        %v2144 = vadd.f32 %v2076, %v2112
        %v2145 = vadd.f32 %v2077, %v2113
        %v2146 = vadd.f32 %v2078, %v2114
        %v2147 = vadd.f32 %v2079, %v2115
        %v2148 = vadd.f32 %v2080, %v2116
        %v2149 = vadd.f32 %v2081, %v2117
        %v2150 = vadd.f32 %v2082, %v2118
        %v2151 = vlaneseq
        %v2152 = vshrl.u32 %v2151, 7
        %v2153 = vsub.s32 1, %v2152
        %v2154 = vrot.slane %v404, %v2153
        %v2155 = vmul.f32 %v1975, %v2154
        %v2156 = vmul.f32 %v1976, %v2154
        %v2157 = vmul.f32 %v1977, %v2154
        %v2158 = vmul.f32 %v1978, %v2154
        %v2159 = vmul.f32 %v1979, %v2154
        %v2160 = vmul.f32 %v1980, %v2154
        %v2161 = vmul.f32 %v1981, %v2154
        %v2162 = vmul.f32 %v1982, %v2154
        %v2163 = vmul.f32 %v1983, %v2154
        %v2164 = vmul.f32 %v1984, %v2154
        %v2165 = vmul.f32 %v1985, %v2154
        %v2166 = vmul.f32 %v1986, %v2154
        %v2167 = vmul.f32 %v1987, %v2154
        %v2168 = vmul.f32 %v1988, %v2154
        %v2169 = vmul.f32 %v1989, %v2154
        %v2170 = vmul.f32 %v1990, %v2154
        %v2171 = vmul.f32 %v1991, %v2154
        %v2172 = vmul.f32 %v1992, %v2154
        %v2173 = vmul.f32 %v1993, %v2154
        %v2174 = vmul.f32 %v1994, %v2154
        %v2175 = vmul.f32 %v1995, %v2154
        %v2176 = vmul.f32 %v1996, %v2154
        %v2177 = vmul.f32 %v1997, %v2154
        %v2178 = vmul.f32 %v1998, %v2154
        %v2179 = vmul.f32 %v1999, %v2154
        %v2180 = vmul.f32 %v2000, %v2154
        %v2181 = vmul.f32 %v2001, %v2154
        %v2182 = vmul.f32 %v2002, %v2154
        %v2183 = vmul.f32 %v2003, %v2154
        %v2184 = vmul.f32 %v2004, %v2154
        %v2185 = vmul.f32 %v2005, %v2154
        %v2186 = vmul.f32 %v2006, %v2154
        %v2187 = vadd.f32 %v2119, %v2155
        %v2188 = vadd.f32 %v2120, %v2156
        %v2189 = vadd.f32 %v2121, %v2157
        %v2190 = vadd.f32 %v2122, %v2158
        %v2191 = vadd.f32 %v2123, %v2159
        %v2192 = vadd.f32 %v2124, %v2160
        %v2193 = vadd.f32 %v2125, %v2161
        %v2194 = vadd.f32 %v2126, %v2162
        %v2195 = vadd.f32 %v2127, %v2163
        %v2196 = vadd.f32 %v2128, %v2164
        %v2197 = vadd.f32 %v2129, %v2165
        %v2198 = vadd.f32 %v2130, %v2166
        %v2199 = vadd.f32 %v2131, %v2167
        %v2200 = vadd.f32 %v2132, %v2168
        %v2201 = vadd.f32 %v2133, %v2169
        %v2202 = vadd.f32 %v2134, %v2170
        %v2203 = vadd.f32 %v2135, %v2171
        %v2204 = vadd.f32 %v2136, %v2172
        %v2205 = vadd.f32 %v2137, %v2173
        %v2206 = vadd.f32 %v2138, %v2174
        %v2207 = vadd.f32 %v2139, %v2175
        %v2208 = vadd.f32 %v2140, %v2176
        %v2209 = vadd.f32 %v2141, %v2177
        %v2210 = vadd.f32 %v2142, %v2178
        %v2211 = vadd.f32 %v2143, %v2179
        %v2212 = vadd.f32 %v2144, %v2180
        %v2213 = vadd.f32 %v2145, %v2181
        %v2214 = vadd.f32 %v2146, %v2182
        %v2215 = vadd.f32 %v2147, %v2183
        %v2216 = vadd.f32 %v2148, %v2184
        %v2217 = vadd.f32 %v2149, %v2185
        %v2218 = vadd.f32 %v2150, %v2186
        %v2219 = vlaneseq
        %v2220 = vshrl.u32 %v2219, 7
        %v2221 = vsub.s32 0, %v2220
        %v2222 = vrot.slane %v405, %v2221
        %v2223 = vmul.f32 %v1977, %v2222
        %v2224 = vmul.f32 %v1978, %v2222
        %v2225 = vmul.f32 %v1979, %v2222
        %v2226 = vmul.f32 %v1980, %v2222
        %v2227 = vmul.f32 %v1981, %v2222
        %v2228 = vmul.f32 %v1982, %v2222
        %v2229 = vmul.f32 %v1983, %v2222
        %v2230 = vmul.f32 %v1984, %v2222
        %v2231 = vmul.f32 %v1985, %v2222
        %v2232 = vmul.f32 %v1986, %v2222
        %v2233 = vmul.f32 %v1987, %v2222
        %v2234 = vmul.f32 %v1988, %v2222
        %v2235 = vmul.f32 %v1989, %v2222
        %v2236 = vmul.f32 %v1990, %v2222
        %v2237 = vmul.f32 %v1991, %v2222
        %v2238 = vmul.f32 %v1992, %v2222
        %v2239 = vmul.f32 %v1993, %v2222
        %v2240 = vmul.f32 %v1994, %v2222
        %v2241 = vmul.f32 %v1995, %v2222
        %v2242 = vmul.f32 %v1996, %v2222
        %v2243 = vmul.f32 %v1997, %v2222
        %v2244 = vmul.f32 %v1998, %v2222
        %v2245 = vmul.f32 %v1999, %v2222
        %v2246 = vmul.f32 %v2000, %v2222
        %v2247 = vmul.f32 %v2001, %v2222
        %v2248 = vmul.f32 %v2002, %v2222
        %v2249 = vmul.f32 %v2003, %v2222
        %v2250 = vmul.f32 %v2004, %v2222
        %v2251 = vmul.f32 %v2005, %v2222
        %v2252 = vmul.f32 %v2006, %v2222
        %v2253 = vmul.f32 %v2007, %v2222
        %v2254 = vmul.f32 %v2008, %v2222
        %v2255 = vadd.f32 %v2187, %v2223
        %v2256 = vadd.f32 %v2188, %v2224
        %v2257 = vadd.f32 %v2189, %v2225
        %v2258 = vadd.f32 %v2190, %v2226
        %v2259 = vadd.f32 %v2191, %v2227
        %v2260 = vadd.f32 %v2192, %v2228
        %v2261 = vadd.f32 %v2193, %v2229
        %v2262 = vadd.f32 %v2194, %v2230
        %v2263 = vadd.f32 %v2195, %v2231
        %v2264 = vadd.f32 %v2196, %v2232
        %v2265 = vadd.f32 %v2197, %v2233
        %v2266 = vadd.f32 %v2198, %v2234
        %v2267 = vadd.f32 %v2199, %v2235
        %v2268 = vadd.f32 %v2200, %v2236
        %v2269 = vadd.f32 %v2201, %v2237
        %v2270 = vadd.f32 %v2202, %v2238
        %v2271 = vadd.f32 %v2203, %v2239
        %v2272 = vadd.f32 %v2204, %v2240
        %v2273 = vadd.f32 %v2205, %v2241
        %v2274 = vadd.f32 %v2206, %v2242
        %v2275 = vadd.f32 %v2207, %v2243
        %v2276 = vadd.f32 %v2208, %v2244
        %v2277 = vadd.f32 %v2209, %v2245
        %v2278 = vadd.f32 %v2210, %v2246
        %v2279 = vadd.f32 %v2211, %v2247
        %v2280 = vadd.f32 %v2212, %v2248
        %v2281 = vadd.f32 %v2213, %v2249
        %v2282 = vadd.f32 %v2214, %v2250
        %v2283 = vadd.f32 %v2215, %v2251
        %v2284 = vadd.f32 %v2216, %v2252
        %v2285 = vadd.f32 %v2217, %v2253
        %v2286 = vadd.f32 %v2218, %v2254
        %v2287 = vlaneseq
        %v2288 = vshrl.u32 %v2287, 7
        %v2289 = vsub.s32 7, %v2288
        %v2290 = vrot.slane %v405, %v2289
        %v2291 = vmul.f32 %v1979, %v2290
        %v2292 = vmul.f32 %v1980, %v2290
        %v2293 = vmul.f32 %v1981, %v2290
        %v2294 = vmul.f32 %v1982, %v2290
        %v2295 = vmul.f32 %v1983, %v2290
        %v2296 = vmul.f32 %v1984, %v2290
        %v2297 = vmul.f32 %v1985, %v2290
        %v2298 = vmul.f32 %v1986, %v2290
        %v2299 = vmul.f32 %v1987, %v2290
        %v2300 = vmul.f32 %v1988, %v2290
        %v2301 = vmul.f32 %v1989, %v2290
        %v2302 = vmul.f32 %v1990, %v2290
        %v2303 = vmul.f32 %v1991, %v2290
        %v2304 = vmul.f32 %v1992, %v2290
        %v2305 = vmul.f32 %v1993, %v2290
        %v2306 = vmul.f32 %v1994, %v2290
        %v2307 = vmul.f32 %v1995, %v2290
        %v2308 = vmul.f32 %v1996, %v2290
        %v2309 = vmul.f32 %v1997, %v2290
        %v2310 = vmul.f32 %v1998, %v2290
        %v2311 = vmul.f32 %v1999, %v2290
        %v2312 = vmul.f32 %v2000, %v2290
        %v2313 = vmul.f32 %v2001, %v2290
        %v2314 = vmul.f32 %v2002, %v2290
        %v2315 = vmul.f32 %v2003, %v2290
        %v2316 = vmul.f32 %v2004, %v2290
        %v2317 = vmul.f32 %v2005, %v2290
        %v2318 = vmul.f32 %v2006, %v2290
        %v2319 = vmul.f32 %v2007, %v2290
        %v2320 = vmul.f32 %v2008, %v2290
        %v2321 = vmul.f32 %v2009, %v2290
        %v2322 = vmul.f32 %v2010, %v2290
        %v2323 = vadd.f32 %v2255, %v2291
        %v2324 = vadd.f32 %v2256, %v2292
        %v2325 = vadd.f32 %v2257, %v2293
        %v2326 = vadd.f32 %v2258, %v2294
        %v2327 = vadd.f32 %v2259, %v2295
        %v2328 = vadd.f32 %v2260, %v2296
        %v2329 = vadd.f32 %v2261, %v2297
        %v2330 = vadd.f32 %v2262, %v2298
        %v2331 = vadd.f32 %v2263, %v2299
        %v2332 = vadd.f32 %v2264, %v2300
        %v2333 = vadd.f32 %v2265, %v2301
        %v2334 = vadd.f32 %v2266, %v2302
        %v2335 = vadd.f32 %v2267, %v2303
        %v2336 = vadd.f32 %v2268, %v2304
        %v2337 = vadd.f32 %v2269, %v2305
        %v2338 = vadd.f32 %v2270, %v2306
        %v2339 = vadd.f32 %v2271, %v2307
        %v2340 = vadd.f32 %v2272, %v2308
        %v2341 = vadd.f32 %v2273, %v2309
        %v2342 = vadd.f32 %v2274, %v2310
        %v2343 = vadd.f32 %v2275, %v2311
        %v2344 = vadd.f32 %v2276, %v2312
        %v2345 = vadd.f32 %v2277, %v2313
        %v2346 = vadd.f32 %v2278, %v2314
        %v2347 = vadd.f32 %v2279, %v2315
        %v2348 = vadd.f32 %v2280, %v2316
        %v2349 = vadd.f32 %v2281, %v2317
        %v2350 = vadd.f32 %v2282, %v2318
        %v2351 = vadd.f32 %v2283, %v2319
        %v2352 = vadd.f32 %v2284, %v2320
        %v2353 = vadd.f32 %v2285, %v2321
        %v2354 = vadd.f32 %v2286, %v2322
        %v2355 = vlaneseq
        %v2356 = vshrl.u32 %v2355, 7
        %v2357 = vsub.s32 6, %v2356
        %v2358 = vrot.slane %v406, %v2357
        %v2359 = vmul.f32 %v1981, %v2358
        %v2360 = vmul.f32 %v1982, %v2358
        %v2361 = vmul.f32 %v1983, %v2358
        %v2362 = vmul.f32 %v1984, %v2358
        %v2363 = vmul.f32 %v1985, %v2358
        %v2364 = vmul.f32 %v1986, %v2358
        %v2365 = vmul.f32 %v1987, %v2358
        %v2366 = vmul.f32 %v1988, %v2358
        %v2367 = vmul.f32 %v1989, %v2358
        %v2368 = vmul.f32 %v1990, %v2358
        %v2369 = vmul.f32 %v1991, %v2358
        %v2370 = vmul.f32 %v1992, %v2358
        %v2371 = vmul.f32 %v1993, %v2358
        %v2372 = vmul.f32 %v1994, %v2358
        %v2373 = vmul.f32 %v1995, %v2358
        %v2374 = vmul.f32 %v1996, %v2358
        %v2375 = vmul.f32 %v1997, %v2358
        %v2376 = vmul.f32 %v1998, %v2358
        %v2377 = vmul.f32 %v1999, %v2358
        %v2378 = vmul.f32 %v2000, %v2358
        %v2379 = vmul.f32 %v2001, %v2358
        %v2380 = vmul.f32 %v2002, %v2358
        %v2381 = vmul.f32 %v2003, %v2358
        %v2382 = vmul.f32 %v2004, %v2358
        %v2383 = vmul.f32 %v2005, %v2358
        %v2384 = vmul.f32 %v2006, %v2358
        %v2385 = vmul.f32 %v2007, %v2358
        %v2386 = vmul.f32 %v2008, %v2358
        %v2387 = vmul.f32 %v2009, %v2358
        %v2388 = vmul.f32 %v2010, %v2358
        %v2389 = vmul.f32 %v2011, %v2358
        %v2390 = vmul.f32 %v2012, %v2358
        %v2391 = vadd.f32 %v2323, %v2359
        %v2392 = vadd.f32 %v2324, %v2360
        %v2393 = vadd.f32 %v2325, %v2361
        %v2394 = vadd.f32 %v2326, %v2362
        %v2395 = vadd.f32 %v2327, %v2363
        %v2396 = vadd.f32 %v2328, %v2364
        %v2397 = vadd.f32 %v2329, %v2365
        %v2398 = vadd.f32 %v2330, %v2366
        %v2399 = vadd.f32 %v2331, %v2367
        %v2400 = vadd.f32 %v2332, %v2368
        %v2401 = vadd.f32 %v2333, %v2369
        %v2402 = vadd.f32 %v2334, %v2370
        %v2403 = vadd.f32 %v2335, %v2371
        %v2404 = vadd.f32 %v2336, %v2372
        %v2405 = vadd.f32 %v2337, %v2373
        %v2406 = vadd.f32 %v2338, %v2374
        %v2407 = vadd.f32 %v2339, %v2375
        %v2408 = vadd.f32 %v2340, %v2376
        %v2409 = vadd.f32 %v2341, %v2377
        %v2410 = vadd.f32 %v2342, %v2378
        %v2411 = vadd.f32 %v2343, %v2379
        %v2412 = vadd.f32 %v2344, %v2380
        %v2413 = vadd.f32 %v2345, %v2381
        %v2414 = vadd.f32 %v2346, %v2382
        %v2415 = vadd.f32 %v2347, %v2383
        %v2416 = vadd.f32 %v2348, %v2384
        %v2417 = vadd.f32 %v2349, %v2385
        %v2418 = vadd.f32 %v2350, %v2386
        %v2419 = vadd.f32 %v2351, %v2387
        %v2420 = vadd.f32 %v2352, %v2388
        %v2421 = vadd.f32 %v2353, %v2389
        %v2422 = vadd.f32 %v2354, %v2390
        %v2423 = vlaneseq
        %v2424 = vshrl.u32 %v2423, 7
        %v2425 = vsub.s32 5, %v2424
        %v2426 = vrot.slane %v407, %v2425
        %v2427 = vmul.f32 %v1983, %v2426
        %v2428 = vmul.f32 %v1984, %v2426
        %v2429 = vmul.f32 %v1985, %v2426
        %v2430 = vmul.f32 %v1986, %v2426
        %v2431 = vmul.f32 %v1987, %v2426
        %v2432 = vmul.f32 %v1988, %v2426
        %v2433 = vmul.f32 %v1989, %v2426
        %v2434 = vmul.f32 %v1990, %v2426
        %v2435 = vmul.f32 %v1991, %v2426
        %v2436 = vmul.f32 %v1992, %v2426
        %v2437 = vmul.f32 %v1993, %v2426
        %v2438 = vmul.f32 %v1994, %v2426
        %v2439 = vmul.f32 %v1995, %v2426
        %v2440 = vmul.f32 %v1996, %v2426
        %v2441 = vmul.f32 %v1997, %v2426
        %v2442 = vmul.f32 %v1998, %v2426
        %v2443 = vmul.f32 %v1999, %v2426
        %v2444 = vmul.f32 %v2000, %v2426
        %v2445 = vmul.f32 %v2001, %v2426
        %v2446 = vmul.f32 %v2002, %v2426
        %v2447 = vmul.f32 %v2003, %v2426
        %v2448 = vmul.f32 %v2004, %v2426
        %v2449 = vmul.f32 %v2005, %v2426
        %v2450 = vmul.f32 %v2006, %v2426
        %v2451 = vmul.f32 %v2007, %v2426
        %v2452 = vmul.f32 %v2008, %v2426
        %v2453 = vmul.f32 %v2009, %v2426
        %v2454 = vmul.f32 %v2010, %v2426
        %v2455 = vmul.f32 %v2011, %v2426
        %v2456 = vmul.f32 %v2012, %v2426
        %v2457 = vmul.f32 %v2013, %v2426
        %v2458 = vmul.f32 %v2014, %v2426
        %v2459 = vadd.f32 %v2391, %v2427
        %v2460 = vadd.f32 %v2392, %v2428
        %v2461 = vadd.f32 %v2393, %v2429
        %v2462 = vadd.f32 %v2394, %v2430
        %v2463 = vadd.f32 %v2395, %v2431
        %v2464 = vadd.f32 %v2396, %v2432
        %v2465 = vadd.f32 %v2397, %v2433
        %v2466 = vadd.f32 %v2398, %v2434
        %v2467 = vadd.f32 %v2399, %v2435
        %v2468 = vadd.f32 %v2400, %v2436
        %v2469 = vadd.f32 %v2401, %v2437
        %v2470 = vadd.f32 %v2402, %v2438
        %v2471 = vadd.f32 %v2403, %v2439
        %v2472 = vadd.f32 %v2404, %v2440
        %v2473 = vadd.f32 %v2405, %v2441
        %v2474 = vadd.f32 %v2406, %v2442
        %v2475 = vadd.f32 %v2407, %v2443
        %v2476 = vadd.f32 %v2408, %v2444
        %v2477 = vadd.f32 %v2409, %v2445
        %v2478 = vadd.f32 %v2410, %v2446
        %v2479 = vadd.f32 %v2411, %v2447
        %v2480 = vadd.f32 %v2412, %v2448
        %v2481 = vadd.f32 %v2413, %v2449
        %v2482 = vadd.f32 %v2414, %v2450
        %v2483 = vadd.f32 %v2415, %v2451
        %v2484 = vadd.f32 %v2416, %v2452
        %v2485 = vadd.f32 %v2417, %v2453
        %v2486 = vadd.f32 %v2418, %v2454
        %v2487 = vadd.f32 %v2419, %v2455
        %v2488 = vadd.f32 %v2420, %v2456
        %v2489 = vadd.f32 %v2421, %v2457
        %v2490 = vadd.f32 %v2422, %v2458
        %v2491 = vld [vmem:[%s410 + $0x4] sm:$0xff]
        %v2492 = vld [vmem:[%s410 + $0xc] sm:$0xff]
        %v2493 = vld [vmem:[%s410 + $0x1c] sm:$0xff]
        %v2494 = vld [vmem:[%s410 + $0x24] sm:$0xff]
        %v2495 = vld [vmem:[%s410 + $0x34] sm:$0xff]
        %v2496 = vld [vmem:[%s410 + $0x3c] sm:$0xff]
        %v2497 = vld [vmem:[%s410 + $0x4c] sm:$0xff]
        %v2498 = vld [vmem:[%s410 + $0x54] sm:$0xff]
        %v2499 = vld [vmem:[%s410 + $0x64] sm:$0xff]
        %v2500 = vld [vmem:[%s410 + $0x6c] sm:$0xff]
        %v2501 = vld [vmem:[%s410 + $0x7c] sm:$0xff]
        %v2502 = vld [vmem:[%s410 + $0x84] sm:$0xff]
        %v2503 = vld [vmem:[%s410 + $0x94] sm:$0xff]
        %v2504 = vld [vmem:[%s410 + $0x9c] sm:$0xff]
        %v2505 = vld [vmem:[%s410 + $0xac] sm:$0xff]
        %v2506 = vld [vmem:[%s410 + $0xb4] sm:$0xff]
        %v2507 = vld [vmem:[%s410 + $0xc4] sm:$0xff]
        %v2508 = vld [vmem:[%s410 + $0xcc] sm:$0xff]
        %v2509 = vld [vmem:[%s410 + $0xdc] sm:$0xff]
        %v2510 = vld [vmem:[%s410 + $0xe4] sm:$0xff]
        %v2511 = vld [vmem:[%s410 + $0xf4] sm:$0xff]
        %v2512 = vld [vmem:[%s410 + $0xfc] sm:$0xff]
        %v2513 = vld [vmem:[%s410 + $0x10c] sm:$0xff]
        %v2514 = vld [vmem:[%s410 + $0x114] sm:$0xff]
        %v2515 = vld [vmem:[%s410 + $0x124] sm:$0xff]
        %v2516 = vld [vmem:[%s410 + $0x12c] sm:$0xff]
        %v2517 = vld [vmem:[%s410 + $0x13c] sm:$0xff]
        %v2518 = vld [vmem:[%s410 + $0x144] sm:$0xff]
        %v2519 = vld [vmem:[%s410 + $0x154] sm:$0xff]
        %v2520 = vld [vmem:[%s410 + $0x15c] sm:$0xff]
        %v2521 = vld [vmem:[%s410 + $0x16c] sm:$0xff]
        %v2522 = vld [vmem:[%s410 + $0x174] sm:$0xff]
        %v2523 = vld [vmem:[%s410 + $0x184] sm:$0xff]
        %v2524 = vld [vmem:[%s410 + $0x18c] sm:$0xff]
        %v2525 = vld [vmem:[%s410 + $0x19c] sm:$0xff]
        %v2526 = vld [vmem:[%s410 + $0x1a4] sm:$0xff]
        %v2527 = vld [vmem:[%s410 + $0x1b4] sm:$0xff]
        %v2528 = vld [vmem:[%s410 + $0x1bc] sm:$0xff]
        %v2529 = vld [vmem:[%s410 + $0x1cc] sm:$0xff]
        %v2530 = vld [vmem:[%s410 + $0x1d4] sm:$0xff]
        %v2531 = vld [vmem:[%s410 + $0x1e4] sm:$0xff]
        %v2532 = vld [vmem:[%s410 + $0x1ec] sm:$0xff]
        %v2533 = vld [vmem:[%s410 + $0x1fc] sm:$0xff]
        %v2534 = vld [vmem:[%s410 + $0x204] sm:$0xff]
        %v2535 = vlaneseq
        %v2536 = vshrl.u32 %v2535, 7
        %v2537 = vsub.s32 4, %v2536
        %v2538 = vrot.slane %v402, %v2537
        %v2539 = vmul.f32 %v2491, %v2538
        %v2540 = vmul.f32 %v2492, %v2538
        %v2541 = vmul.f32 %v2493, %v2538
        %v2542 = vmul.f32 %v2494, %v2538
        %v2543 = vmul.f32 %v2495, %v2538
        %v2544 = vmul.f32 %v2496, %v2538
        %v2545 = vmul.f32 %v2497, %v2538
        %v2546 = vmul.f32 %v2498, %v2538
        %v2547 = vmul.f32 %v2499, %v2538
        %v2548 = vmul.f32 %v2500, %v2538
        %v2549 = vmul.f32 %v2501, %v2538
        %v2550 = vmul.f32 %v2502, %v2538
        %v2551 = vmul.f32 %v2503, %v2538
        %v2552 = vmul.f32 %v2504, %v2538
        %v2553 = vmul.f32 %v2505, %v2538
        %v2554 = vmul.f32 %v2506, %v2538
        %v2555 = vmul.f32 %v2507, %v2538
        %v2556 = vmul.f32 %v2508, %v2538
        %v2557 = vmul.f32 %v2509, %v2538
        %v2558 = vmul.f32 %v2510, %v2538
        %v2559 = vmul.f32 %v2511, %v2538
        %v2560 = vmul.f32 %v2512, %v2538
        %v2561 = vmul.f32 %v2513, %v2538
        %v2562 = vmul.f32 %v2514, %v2538
        %v2563 = vmul.f32 %v2515, %v2538
        %v2564 = vmul.f32 %v2516, %v2538
        %v2565 = vmul.f32 %v2517, %v2538
        %v2566 = vmul.f32 %v2518, %v2538
        %v2567 = vmul.f32 %v2519, %v2538
        %v2568 = vmul.f32 %v2520, %v2538
        %v2569 = vmul.f32 %v2521, %v2538
        %v2570 = vmul.f32 %v2522, %v2538
        %v2571 = vadd.f32 %v2459, %v2539
        %v2572 = vadd.f32 %v2460, %v2540
        %v2573 = vadd.f32 %v2461, %v2541
        %v2574 = vadd.f32 %v2462, %v2542
        %v2575 = vadd.f32 %v2463, %v2543
        %v2576 = vadd.f32 %v2464, %v2544
        %v2577 = vadd.f32 %v2465, %v2545
        %v2578 = vadd.f32 %v2466, %v2546
        %v2579 = vadd.f32 %v2467, %v2547
        %v2580 = vadd.f32 %v2468, %v2548
        %v2581 = vadd.f32 %v2469, %v2549
        %v2582 = vadd.f32 %v2470, %v2550
        %v2583 = vadd.f32 %v2471, %v2551
        %v2584 = vadd.f32 %v2472, %v2552
        %v2585 = vadd.f32 %v2473, %v2553
        %v2586 = vadd.f32 %v2474, %v2554
        %v2587 = vadd.f32 %v2475, %v2555
        %v2588 = vadd.f32 %v2476, %v2556
        %v2589 = vadd.f32 %v2477, %v2557
        %v2590 = vadd.f32 %v2478, %v2558
        %v2591 = vadd.f32 %v2479, %v2559
        %v2592 = vadd.f32 %v2480, %v2560
        %v2593 = vadd.f32 %v2481, %v2561
        %v2594 = vadd.f32 %v2482, %v2562
        %v2595 = vadd.f32 %v2483, %v2563
        %v2596 = vadd.f32 %v2484, %v2564
        %v2597 = vadd.f32 %v2485, %v2565
        %v2598 = vadd.f32 %v2486, %v2566
        %v2599 = vadd.f32 %v2487, %v2567
        %v2600 = vadd.f32 %v2488, %v2568
        %v2601 = vadd.f32 %v2489, %v2569
        %v2602 = vadd.f32 %v2490, %v2570
        %v2603 = vlaneseq
        %v2604 = vshrl.u32 %v2603, 7
        %v2605 = vsub.s32 3, %v2604
        %v2606 = vrot.slane %v403, %v2605
        %v2607 = vmul.f32 %v2493, %v2606
        %v2608 = vmul.f32 %v2494, %v2606
        %v2609 = vmul.f32 %v2495, %v2606
        %v2610 = vmul.f32 %v2496, %v2606
        %v2611 = vmul.f32 %v2497, %v2606
        %v2612 = vmul.f32 %v2498, %v2606
        %v2613 = vmul.f32 %v2499, %v2606
        %v2614 = vmul.f32 %v2500, %v2606
        %v2615 = vmul.f32 %v2501, %v2606
        %v2616 = vmul.f32 %v2502, %v2606
        %v2617 = vmul.f32 %v2503, %v2606
        %v2618 = vmul.f32 %v2504, %v2606
        %v2619 = vmul.f32 %v2505, %v2606
        %v2620 = vmul.f32 %v2506, %v2606
        %v2621 = vmul.f32 %v2507, %v2606
        %v2622 = vmul.f32 %v2508, %v2606
        %v2623 = vmul.f32 %v2509, %v2606
        %v2624 = vmul.f32 %v2510, %v2606
        %v2625 = vmul.f32 %v2511, %v2606
        %v2626 = vmul.f32 %v2512, %v2606
        %v2627 = vmul.f32 %v2513, %v2606
        %v2628 = vmul.f32 %v2514, %v2606
        %v2629 = vmul.f32 %v2515, %v2606
        %v2630 = vmul.f32 %v2516, %v2606
        %v2631 = vmul.f32 %v2517, %v2606
        %v2632 = vmul.f32 %v2518, %v2606
        %v2633 = vmul.f32 %v2519, %v2606
        %v2634 = vmul.f32 %v2520, %v2606
        %v2635 = vmul.f32 %v2521, %v2606
        %v2636 = vmul.f32 %v2522, %v2606
        %v2637 = vmul.f32 %v2523, %v2606
        %v2638 = vmul.f32 %v2524, %v2606
        %v2639 = vadd.f32 %v2571, %v2607
        %v2640 = vadd.f32 %v2572, %v2608
        %v2641 = vadd.f32 %v2573, %v2609
        %v2642 = vadd.f32 %v2574, %v2610
        %v2643 = vadd.f32 %v2575, %v2611
        %v2644 = vadd.f32 %v2576, %v2612
        %v2645 = vadd.f32 %v2577, %v2613
        %v2646 = vadd.f32 %v2578, %v2614
        %v2647 = vadd.f32 %v2579, %v2615
        %v2648 = vadd.f32 %v2580, %v2616
        %v2649 = vadd.f32 %v2581, %v2617
        %v2650 = vadd.f32 %v2582, %v2618
        %v2651 = vadd.f32 %v2583, %v2619
        %v2652 = vadd.f32 %v2584, %v2620
        %v2653 = vadd.f32 %v2585, %v2621
        %v2654 = vadd.f32 %v2586, %v2622
        %v2655 = vadd.f32 %v2587, %v2623
        %v2656 = vadd.f32 %v2588, %v2624
        %v2657 = vadd.f32 %v2589, %v2625
        %v2658 = vadd.f32 %v2590, %v2626
        %v2659 = vadd.f32 %v2591, %v2627
        %v2660 = vadd.f32 %v2592, %v2628
        %v2661 = vadd.f32 %v2593, %v2629
        %v2662 = vadd.f32 %v2594, %v2630
        %v2663 = vadd.f32 %v2595, %v2631
        %v2664 = vadd.f32 %v2596, %v2632
        %v2665 = vadd.f32 %v2597, %v2633
        %v2666 = vadd.f32 %v2598, %v2634
        %v2667 = vadd.f32 %v2599, %v2635
        %v2668 = vadd.f32 %v2600, %v2636
        %v2669 = vadd.f32 %v2601, %v2637
        %v2670 = vadd.f32 %v2602, %v2638
        %v2671 = vlaneseq
        %v2672 = vshrl.u32 %v2671, 7
        %v2673 = vsub.s32 2, %v2672
        %v2674 = vrot.slane %v404, %v2673
        %v2675 = vmul.f32 %v2495, %v2674
        %v2676 = vmul.f32 %v2496, %v2674
        %v2677 = vmul.f32 %v2497, %v2674
        %v2678 = vmul.f32 %v2498, %v2674
        %v2679 = vmul.f32 %v2499, %v2674
        %v2680 = vmul.f32 %v2500, %v2674
        %v2681 = vmul.f32 %v2501, %v2674
        %v2682 = vmul.f32 %v2502, %v2674
        %v2683 = vmul.f32 %v2503, %v2674
        %v2684 = vmul.f32 %v2504, %v2674
        %v2685 = vmul.f32 %v2505, %v2674
        %v2686 = vmul.f32 %v2506, %v2674
        %v2687 = vmul.f32 %v2507, %v2674
        %v2688 = vmul.f32 %v2508, %v2674
        %v2689 = vmul.f32 %v2509, %v2674
        %v2690 = vmul.f32 %v2510, %v2674
        %v2691 = vmul.f32 %v2511, %v2674
        %v2692 = vmul.f32 %v2512, %v2674
        %v2693 = vmul.f32 %v2513, %v2674
        %v2694 = vmul.f32 %v2514, %v2674
        %v2695 = vmul.f32 %v2515, %v2674
        %v2696 = vmul.f32 %v2516, %v2674
        %v2697 = vmul.f32 %v2517, %v2674
        %v2698 = vmul.f32 %v2518, %v2674
        %v2699 = vmul.f32 %v2519, %v2674
        %v2700 = vmul.f32 %v2520, %v2674
        %v2701 = vmul.f32 %v2521, %v2674
        %v2702 = vmul.f32 %v2522, %v2674
        %v2703 = vmul.f32 %v2523, %v2674
        %v2704 = vmul.f32 %v2524, %v2674
        %v2705 = vmul.f32 %v2525, %v2674
        %v2706 = vmul.f32 %v2526, %v2674
        %v2707 = vadd.f32 %v2639, %v2675
        %v2708 = vadd.f32 %v2640, %v2676
        %v2709 = vadd.f32 %v2641, %v2677
        %v2710 = vadd.f32 %v2642, %v2678
        %v2711 = vadd.f32 %v2643, %v2679
        %v2712 = vadd.f32 %v2644, %v2680
        %v2713 = vadd.f32 %v2645, %v2681
        %v2714 = vadd.f32 %v2646, %v2682
        %v2715 = vadd.f32 %v2647, %v2683
        %v2716 = vadd.f32 %v2648, %v2684
        %v2717 = vadd.f32 %v2649, %v2685
        %v2718 = vadd.f32 %v2650, %v2686
        %v2719 = vadd.f32 %v2651, %v2687
        %v2720 = vadd.f32 %v2652, %v2688
        %v2721 = vadd.f32 %v2653, %v2689
        %v2722 = vadd.f32 %v2654, %v2690
        %v2723 = vadd.f32 %v2655, %v2691
        %v2724 = vadd.f32 %v2656, %v2692
        %v2725 = vadd.f32 %v2657, %v2693
        %v2726 = vadd.f32 %v2658, %v2694
        %v2727 = vadd.f32 %v2659, %v2695
        %v2728 = vadd.f32 %v2660, %v2696
        %v2729 = vadd.f32 %v2661, %v2697
        %v2730 = vadd.f32 %v2662, %v2698
        %v2731 = vadd.f32 %v2663, %v2699
        %v2732 = vadd.f32 %v2664, %v2700
        %v2733 = vadd.f32 %v2665, %v2701
        %v2734 = vadd.f32 %v2666, %v2702
        %v2735 = vadd.f32 %v2667, %v2703
        %v2736 = vadd.f32 %v2668, %v2704
        %v2737 = vadd.f32 %v2669, %v2705
        %v2738 = vadd.f32 %v2670, %v2706
        %v2739 = vlaneseq
        %v2740 = vshrl.u32 %v2739, 7
        %v2741 = vsub.s32 1, %v2740
        %v2742 = vrot.slane %v405, %v2741
        %v2743 = vmul.f32 %v2497, %v2742
        %v2744 = vmul.f32 %v2498, %v2742
        %v2745 = vmul.f32 %v2499, %v2742
        %v2746 = vmul.f32 %v2500, %v2742
        %v2747 = vmul.f32 %v2501, %v2742
        %v2748 = vmul.f32 %v2502, %v2742
        %v2749 = vmul.f32 %v2503, %v2742
        %v2750 = vmul.f32 %v2504, %v2742
        %v2751 = vmul.f32 %v2505, %v2742
        %v2752 = vmul.f32 %v2506, %v2742
        %v2753 = vmul.f32 %v2507, %v2742
        %v2754 = vmul.f32 %v2508, %v2742
        %v2755 = vmul.f32 %v2509, %v2742
        %v2756 = vmul.f32 %v2510, %v2742
        %v2757 = vmul.f32 %v2511, %v2742
        %v2758 = vmul.f32 %v2512, %v2742
        %v2759 = vmul.f32 %v2513, %v2742
        %v2760 = vmul.f32 %v2514, %v2742
        %v2761 = vmul.f32 %v2515, %v2742
        %v2762 = vmul.f32 %v2516, %v2742
        %v2763 = vmul.f32 %v2517, %v2742
        %v2764 = vmul.f32 %v2518, %v2742
        %v2765 = vmul.f32 %v2519, %v2742
        %v2766 = vmul.f32 %v2520, %v2742
        %v2767 = vmul.f32 %v2521, %v2742
        %v2768 = vmul.f32 %v2522, %v2742
        %v2769 = vmul.f32 %v2523, %v2742
        %v2770 = vmul.f32 %v2524, %v2742
        %v2771 = vmul.f32 %v2525, %v2742
        %v2772 = vmul.f32 %v2526, %v2742
        %v2773 = vmul.f32 %v2527, %v2742
        %v2774 = vmul.f32 %v2528, %v2742
        %v2775 = vadd.f32 %v2707, %v2743
        %v2776 = vadd.f32 %v2708, %v2744
        %v2777 = vadd.f32 %v2709, %v2745
        %v2778 = vadd.f32 %v2710, %v2746
        %v2779 = vadd.f32 %v2711, %v2747
        %v2780 = vadd.f32 %v2712, %v2748
        %v2781 = vadd.f32 %v2713, %v2749
        %v2782 = vadd.f32 %v2714, %v2750
        %v2783 = vadd.f32 %v2715, %v2751
        %v2784 = vadd.f32 %v2716, %v2752
        %v2785 = vadd.f32 %v2717, %v2753
        %v2786 = vadd.f32 %v2718, %v2754
        %v2787 = vadd.f32 %v2719, %v2755
        %v2788 = vadd.f32 %v2720, %v2756
        %v2789 = vadd.f32 %v2721, %v2757
        %v2790 = vadd.f32 %v2722, %v2758
        %v2791 = vadd.f32 %v2723, %v2759
        %v2792 = vadd.f32 %v2724, %v2760
        %v2793 = vadd.f32 %v2725, %v2761
        %v2794 = vadd.f32 %v2726, %v2762
        %v2795 = vadd.f32 %v2727, %v2763
        %v2796 = vadd.f32 %v2728, %v2764
        %v2797 = vadd.f32 %v2729, %v2765
        %v2798 = vadd.f32 %v2730, %v2766
        %v2799 = vadd.f32 %v2731, %v2767
        %v2800 = vadd.f32 %v2732, %v2768
        %v2801 = vadd.f32 %v2733, %v2769
        %v2802 = vadd.f32 %v2734, %v2770
        %v2803 = vadd.f32 %v2735, %v2771
        %v2804 = vadd.f32 %v2736, %v2772
        %v2805 = vadd.f32 %v2737, %v2773
        %v2806 = vadd.f32 %v2738, %v2774
        %v2807 = vlaneseq
        %v2808 = vshrl.u32 %v2807, 7
        %v2809 = vsub.s32 0, %v2808
        %v2810 = vrot.slane %v406, %v2809
        %v2811 = vmul.f32 %v2499, %v2810
        %v2812 = vmul.f32 %v2500, %v2810
        %v2813 = vmul.f32 %v2501, %v2810
        %v2814 = vmul.f32 %v2502, %v2810
        %v2815 = vmul.f32 %v2503, %v2810
        %v2816 = vmul.f32 %v2504, %v2810
        %v2817 = vmul.f32 %v2505, %v2810
        %v2818 = vmul.f32 %v2506, %v2810
        %v2819 = vmul.f32 %v2507, %v2810
        %v2820 = vmul.f32 %v2508, %v2810
        %v2821 = vmul.f32 %v2509, %v2810
        %v2822 = vmul.f32 %v2510, %v2810
        %v2823 = vmul.f32 %v2511, %v2810
        %v2824 = vmul.f32 %v2512, %v2810
        %v2825 = vmul.f32 %v2513, %v2810
        %v2826 = vmul.f32 %v2514, %v2810
        %v2827 = vmul.f32 %v2515, %v2810
        %v2828 = vmul.f32 %v2516, %v2810
        %v2829 = vmul.f32 %v2517, %v2810
        %v2830 = vmul.f32 %v2518, %v2810
        %v2831 = vmul.f32 %v2519, %v2810
        %v2832 = vmul.f32 %v2520, %v2810
        %v2833 = vmul.f32 %v2521, %v2810
        %v2834 = vmul.f32 %v2522, %v2810
        %v2835 = vmul.f32 %v2523, %v2810
        %v2836 = vmul.f32 %v2524, %v2810
        %v2837 = vmul.f32 %v2525, %v2810
        %v2838 = vmul.f32 %v2526, %v2810
        %v2839 = vmul.f32 %v2527, %v2810
        %v2840 = vmul.f32 %v2528, %v2810
        %v2841 = vmul.f32 %v2529, %v2810
        %v2842 = vmul.f32 %v2530, %v2810
        %v2843 = vadd.f32 %v2775, %v2811
        %v2844 = vadd.f32 %v2776, %v2812
        %v2845 = vadd.f32 %v2777, %v2813
        %v2846 = vadd.f32 %v2778, %v2814
        %v2847 = vadd.f32 %v2779, %v2815
        %v2848 = vadd.f32 %v2780, %v2816
        %v2849 = vadd.f32 %v2781, %v2817
        %v2850 = vadd.f32 %v2782, %v2818
        %v2851 = vadd.f32 %v2783, %v2819
        %v2852 = vadd.f32 %v2784, %v2820
        %v2853 = vadd.f32 %v2785, %v2821
        %v2854 = vadd.f32 %v2786, %v2822
        %v2855 = vadd.f32 %v2787, %v2823
        %v2856 = vadd.f32 %v2788, %v2824
        %v2857 = vadd.f32 %v2789, %v2825
        %v2858 = vadd.f32 %v2790, %v2826
        %v2859 = vadd.f32 %v2791, %v2827
        %v2860 = vadd.f32 %v2792, %v2828
        %v2861 = vadd.f32 %v2793, %v2829
        %v2862 = vadd.f32 %v2794, %v2830
        %v2863 = vadd.f32 %v2795, %v2831
        %v2864 = vadd.f32 %v2796, %v2832
        %v2865 = vadd.f32 %v2797, %v2833
        %v2866 = vadd.f32 %v2798, %v2834
        %v2867 = vadd.f32 %v2799, %v2835
        %v2868 = vadd.f32 %v2800, %v2836
        %v2869 = vadd.f32 %v2801, %v2837
        %v2870 = vadd.f32 %v2802, %v2838
        %v2871 = vadd.f32 %v2803, %v2839
        %v2872 = vadd.f32 %v2804, %v2840
        %v2873 = vadd.f32 %v2805, %v2841
        %v2874 = vadd.f32 %v2806, %v2842
        %v2875 = vlaneseq
        %v2876 = vshrl.u32 %v2875, 7
        %v2877 = vsub.s32 7, %v2876
        %v2878 = vrot.slane %v406, %v2877
        %v2879 = vmul.f32 %v2501, %v2878
        %v2880 = vmul.f32 %v2502, %v2878
        %v2881 = vmul.f32 %v2503, %v2878
        %v2882 = vmul.f32 %v2504, %v2878
        %v2883 = vmul.f32 %v2505, %v2878
        %v2884 = vmul.f32 %v2506, %v2878
        %v2885 = vmul.f32 %v2507, %v2878
        %v2886 = vmul.f32 %v2508, %v2878
        %v2887 = vmul.f32 %v2509, %v2878
        %v2888 = vmul.f32 %v2510, %v2878
        %v2889 = vmul.f32 %v2511, %v2878
        %v2890 = vmul.f32 %v2512, %v2878
        %v2891 = vmul.f32 %v2513, %v2878
        %v2892 = vmul.f32 %v2514, %v2878
        %v2893 = vmul.f32 %v2515, %v2878
        %v2894 = vmul.f32 %v2516, %v2878
        %v2895 = vmul.f32 %v2517, %v2878
        %v2896 = vmul.f32 %v2518, %v2878
        %v2897 = vmul.f32 %v2519, %v2878
        %v2898 = vmul.f32 %v2520, %v2878
        %v2899 = vmul.f32 %v2521, %v2878
        %v2900 = vmul.f32 %v2522, %v2878
        %v2901 = vmul.f32 %v2523, %v2878
        %v2902 = vmul.f32 %v2524, %v2878
        %v2903 = vmul.f32 %v2525, %v2878
        %v2904 = vmul.f32 %v2526, %v2878
        %v2905 = vmul.f32 %v2527, %v2878
        %v2906 = vmul.f32 %v2528, %v2878
        %v2907 = vmul.f32 %v2529, %v2878
        %v2908 = vmul.f32 %v2530, %v2878
        %v2909 = vmul.f32 %v2531, %v2878
        %v2910 = vmul.f32 %v2532, %v2878
        %v2911 = vadd.f32 %v2843, %v2879
        %v2912 = vadd.f32 %v2844, %v2880
        %v2913 = vadd.f32 %v2845, %v2881
        %v2914 = vadd.f32 %v2846, %v2882
        %v2915 = vadd.f32 %v2847, %v2883
        %v2916 = vadd.f32 %v2848, %v2884
        %v2917 = vadd.f32 %v2849, %v2885
        %v2918 = vadd.f32 %v2850, %v2886
        %v2919 = vadd.f32 %v2851, %v2887
        %v2920 = vadd.f32 %v2852, %v2888
        %v2921 = vadd.f32 %v2853, %v2889
        %v2922 = vadd.f32 %v2854, %v2890
        %v2923 = vadd.f32 %v2855, %v2891
        %v2924 = vadd.f32 %v2856, %v2892
        %v2925 = vadd.f32 %v2857, %v2893
        %v2926 = vadd.f32 %v2858, %v2894
        %v2927 = vadd.f32 %v2859, %v2895
        %v2928 = vadd.f32 %v2860, %v2896
        %v2929 = vadd.f32 %v2861, %v2897
        %v2930 = vadd.f32 %v2862, %v2898
        %v2931 = vadd.f32 %v2863, %v2899
        %v2932 = vadd.f32 %v2864, %v2900
        %v2933 = vadd.f32 %v2865, %v2901
        %v2934 = vadd.f32 %v2866, %v2902
        %v2935 = vadd.f32 %v2867, %v2903
        %v2936 = vadd.f32 %v2868, %v2904
        %v2937 = vadd.f32 %v2869, %v2905
        %v2938 = vadd.f32 %v2870, %v2906
        %v2939 = vadd.f32 %v2871, %v2907
        %v2940 = vadd.f32 %v2872, %v2908
        %v2941 = vadd.f32 %v2873, %v2909
        %v2942 = vadd.f32 %v2874, %v2910
        %v2943 = vlaneseq
        %v2944 = vshrl.u32 %v2943, 7
        %v2945 = vsub.s32 6, %v2944
        %v2946 = vrot.slane %v407, %v2945
        %v2947 = vmul.f32 %v2503, %v2946
        %v2948 = vmul.f32 %v2504, %v2946
        %v2949 = vmul.f32 %v2505, %v2946
        %v2950 = vmul.f32 %v2506, %v2946
        %v2951 = vmul.f32 %v2507, %v2946
        %v2952 = vmul.f32 %v2508, %v2946
        %v2953 = vmul.f32 %v2509, %v2946
        %v2954 = vmul.f32 %v2510, %v2946
        %v2955 = vmul.f32 %v2511, %v2946
        %v2956 = vmul.f32 %v2512, %v2946
        %v2957 = vmul.f32 %v2513, %v2946
        %v2958 = vmul.f32 %v2514, %v2946
        %v2959 = vmul.f32 %v2515, %v2946
        %v2960 = vmul.f32 %v2516, %v2946
        %v2961 = vmul.f32 %v2517, %v2946
        %v2962 = vmul.f32 %v2518, %v2946
        %v2963 = vmul.f32 %v2519, %v2946
        %v2964 = vmul.f32 %v2520, %v2946
        %v2965 = vmul.f32 %v2521, %v2946
        %v2966 = vmul.f32 %v2522, %v2946
        %v2967 = vmul.f32 %v2523, %v2946
        %v2968 = vmul.f32 %v2524, %v2946
        %v2969 = vmul.f32 %v2525, %v2946
        %v2970 = vmul.f32 %v2526, %v2946
        %v2971 = vmul.f32 %v2527, %v2946
        %v2972 = vmul.f32 %v2528, %v2946
        %v2973 = vmul.f32 %v2529, %v2946
        %v2974 = vmul.f32 %v2530, %v2946
        %v2975 = vmul.f32 %v2531, %v2946
        %v2976 = vmul.f32 %v2532, %v2946
        %v2977 = vmul.f32 %v2533, %v2946
        %v2978 = vmul.f32 %v2534, %v2946
        %v2979 = vadd.f32 %v2911, %v2947
        %v2980 = vadd.f32 %v2912, %v2948
        %v2981 = vadd.f32 %v2913, %v2949
        %v2982 = vadd.f32 %v2914, %v2950
        %v2983 = vadd.f32 %v2915, %v2951
        %v2984 = vadd.f32 %v2916, %v2952
        %v2985 = vadd.f32 %v2917, %v2953
        %v2986 = vadd.f32 %v2918, %v2954
        %v2987 = vadd.f32 %v2919, %v2955
        %v2988 = vadd.f32 %v2920, %v2956
        %v2989 = vadd.f32 %v2921, %v2957
        %v2990 = vadd.f32 %v2922, %v2958
        %v2991 = vadd.f32 %v2923, %v2959
        %v2992 = vadd.f32 %v2924, %v2960
        %v2993 = vadd.f32 %v2925, %v2961
        %v2994 = vadd.f32 %v2926, %v2962
        %v2995 = vadd.f32 %v2927, %v2963
        %v2996 = vadd.f32 %v2928, %v2964
        %v2997 = vadd.f32 %v2929, %v2965
        %v2998 = vadd.f32 %v2930, %v2966
        %v2999 = vadd.f32 %v2931, %v2967
        %v3000 = vadd.f32 %v2932, %v2968
        %v3001 = vadd.f32 %v2933, %v2969
        %v3002 = vadd.f32 %v2934, %v2970
        %v3003 = vadd.f32 %v2935, %v2971
        %v3004 = vadd.f32 %v2936, %v2972
        %v3005 = vadd.f32 %v2937, %v2973
        %v3006 = vadd.f32 %v2938, %v2974
        %v3007 = vadd.f32 %v2939, %v2975
        %v3008 = vadd.f32 %v2940, %v2976
        %v3009 = vadd.f32 %v2941, %v2977
        %v3010 = vadd.f32 %v2942, %v2978
        %v3011 = vld [vmem:[%s410 + $0x5] sm:$0xff]
        %v3012 = vld [vmem:[%s410 + $0xd] sm:$0xff]
        %v3013 = vld [vmem:[%s410 + $0x1d] sm:$0xff]
        %v3014 = vld [vmem:[%s410 + $0x25] sm:$0xff]
        %v3015 = vld [vmem:[%s410 + $0x35] sm:$0xff]
        %v3016 = vld [vmem:[%s410 + $0x3d] sm:$0xff]
        %v3017 = vld [vmem:[%s410 + $0x4d] sm:$0xff]
        %v3018 = vld [vmem:[%s410 + $0x55] sm:$0xff]
        %v3019 = vld [vmem:[%s410 + $0x65] sm:$0xff]
        %v3020 = vld [vmem:[%s410 + $0x6d] sm:$0xff]
        %v3021 = vld [vmem:[%s410 + $0x7d] sm:$0xff]
        %v3022 = vld [vmem:[%s410 + $0x85] sm:$0xff]
        %v3023 = vld [vmem:[%s410 + $0x95] sm:$0xff]
        %v3024 = vld [vmem:[%s410 + $0x9d] sm:$0xff]
        %v3025 = vld [vmem:[%s410 + $0xad] sm:$0xff]
        %v3026 = vld [vmem:[%s410 + $0xb5] sm:$0xff]
        %v3027 = vld [vmem:[%s410 + $0xc5] sm:$0xff]
        %v3028 = vld [vmem:[%s410 + $0xcd] sm:$0xff]
        %v3029 = vld [vmem:[%s410 + $0xdd] sm:$0xff]
        %v3030 = vld [vmem:[%s410 + $0xe5] sm:$0xff]
        %v3031 = vld [vmem:[%s410 + $0xf5] sm:$0xff]
        %v3032 = vld [vmem:[%s410 + $0xfd] sm:$0xff]
        %v3033 = vld [vmem:[%s410 + $0x10d] sm:$0xff]
        %v3034 = vld [vmem:[%s410 + $0x115] sm:$0xff]
        %v3035 = vld [vmem:[%s410 + $0x125] sm:$0xff]
        %v3036 = vld [vmem:[%s410 + $0x12d] sm:$0xff]
        %v3037 = vld [vmem:[%s410 + $0x13d] sm:$0xff]
        %v3038 = vld [vmem:[%s410 + $0x145] sm:$0xff]
        %v3039 = vld [vmem:[%s410 + $0x155] sm:$0xff]
        %v3040 = vld [vmem:[%s410 + $0x15d] sm:$0xff]
        %v3041 = vld [vmem:[%s410 + $0x16d] sm:$0xff]
        %v3042 = vld [vmem:[%s410 + $0x175] sm:$0xff]
        %v3043 = vld [vmem:[%s410 + $0x185] sm:$0xff]
        %v3044 = vld [vmem:[%s410 + $0x18d] sm:$0xff]
        %v3045 = vld [vmem:[%s410 + $0x19d] sm:$0xff]
        %v3046 = vld [vmem:[%s410 + $0x1a5] sm:$0xff]
        %v3047 = vld [vmem:[%s410 + $0x1b5] sm:$0xff]
        %v3048 = vld [vmem:[%s410 + $0x1bd] sm:$0xff]
        %v3049 = vld [vmem:[%s410 + $0x1cd] sm:$0xff]
        %v3050 = vld [vmem:[%s410 + $0x1d5] sm:$0xff]
        %v3051 = vld [vmem:[%s410 + $0x1e5] sm:$0xff]
        %v3052 = vld [vmem:[%s410 + $0x1ed] sm:$0xff]
        %v3053 = vld [vmem:[%s410 + $0x1fd] sm:$0xff]
        %v3054 = vld [vmem:[%s410 + $0x205] sm:$0xff]
        %v3055 = vlaneseq
        %v3056 = vshrl.u32 %v3055, 7
        %v3057 = vsub.s32 5, %v3056
        %v3058 = vrot.slane %v402, %v3057
        %v3059 = vmul.f32 %v3011, %v3058
        %v3060 = vmul.f32 %v3012, %v3058
        %v3061 = vmul.f32 %v3013, %v3058
        %v3062 = vmul.f32 %v3014, %v3058
        %v3063 = vmul.f32 %v3015, %v3058
        %v3064 = vmul.f32 %v3016, %v3058
        %v3065 = vmul.f32 %v3017, %v3058
        %v3066 = vmul.f32 %v3018, %v3058
        %v3067 = vmul.f32 %v3019, %v3058
        %v3068 = vmul.f32 %v3020, %v3058
        %v3069 = vmul.f32 %v3021, %v3058
        %v3070 = vmul.f32 %v3022, %v3058
        %v3071 = vmul.f32 %v3023, %v3058
        %v3072 = vmul.f32 %v3024, %v3058
        %v3073 = vmul.f32 %v3025, %v3058
        %v3074 = vmul.f32 %v3026, %v3058
        %v3075 = vmul.f32 %v3027, %v3058
        %v3076 = vmul.f32 %v3028, %v3058
        %v3077 = vmul.f32 %v3029, %v3058
        %v3078 = vmul.f32 %v3030, %v3058
        %v3079 = vmul.f32 %v3031, %v3058
        %v3080 = vmul.f32 %v3032, %v3058
        %v3081 = vmul.f32 %v3033, %v3058
        %v3082 = vmul.f32 %v3034, %v3058
        %v3083 = vmul.f32 %v3035, %v3058
        %v3084 = vmul.f32 %v3036, %v3058
        %v3085 = vmul.f32 %v3037, %v3058
        %v3086 = vmul.f32 %v3038, %v3058
        %v3087 = vmul.f32 %v3039, %v3058
        %v3088 = vmul.f32 %v3040, %v3058
        %v3089 = vmul.f32 %v3041, %v3058
        %v3090 = vmul.f32 %v3042, %v3058
        %v3091 = vadd.f32 %v2979, %v3059
        %v3092 = vadd.f32 %v2980, %v3060
        %v3093 = vadd.f32 %v2981, %v3061
        %v3094 = vadd.f32 %v2982, %v3062
        %v3095 = vadd.f32 %v2983, %v3063
        %v3096 = vadd.f32 %v2984, %v3064
        %v3097 = vadd.f32 %v2985, %v3065
        %v3098 = vadd.f32 %v2986, %v3066
        %v3099 = vadd.f32 %v2987, %v3067
        %v3100 = vadd.f32 %v2988, %v3068
        %v3101 = vadd.f32 %v2989, %v3069
        %v3102 = vadd.f32 %v2990, %v3070
        %v3103 = vadd.f32 %v2991, %v3071
        %v3104 = vadd.f32 %v2992, %v3072
        %v3105 = vadd.f32 %v2993, %v3073
        %v3106 = vadd.f32 %v2994, %v3074
        %v3107 = vadd.f32 %v2995, %v3075
        %v3108 = vadd.f32 %v2996, %v3076
        %v3109 = vadd.f32 %v2997, %v3077
        %v3110 = vadd.f32 %v2998, %v3078
        %v3111 = vadd.f32 %v2999, %v3079
        %v3112 = vadd.f32 %v3000, %v3080
        %v3113 = vadd.f32 %v3001, %v3081
        %v3114 = vadd.f32 %v3002, %v3082
        %v3115 = vadd.f32 %v3003, %v3083
        %v3116 = vadd.f32 %v3004, %v3084
        %v3117 = vadd.f32 %v3005, %v3085
        %v3118 = vadd.f32 %v3006, %v3086
        %v3119 = vadd.f32 %v3007, %v3087
        %v3120 = vadd.f32 %v3008, %v3088
        %v3121 = vadd.f32 %v3009, %v3089
        %v3122 = vadd.f32 %v3010, %v3090
        %v3123 = vlaneseq
        %v3124 = vshrl.u32 %v3123, 7
        %v3125 = vsub.s32 4, %v3124
        %v3126 = vrot.slane %v403, %v3125
        %v3127 = vmul.f32 %v3013, %v3126
        %v3128 = vmul.f32 %v3014, %v3126
        %v3129 = vmul.f32 %v3015, %v3126
        %v3130 = vmul.f32 %v3016, %v3126
        %v3131 = vmul.f32 %v3017, %v3126
        %v3132 = vmul.f32 %v3018, %v3126
        %v3133 = vmul.f32 %v3019, %v3126
        %v3134 = vmul.f32 %v3020, %v3126
        %v3135 = vmul.f32 %v3021, %v3126
        %v3136 = vmul.f32 %v3022, %v3126
        %v3137 = vmul.f32 %v3023, %v3126
        %v3138 = vmul.f32 %v3024, %v3126
        %v3139 = vmul.f32 %v3025, %v3126
        %v3140 = vmul.f32 %v3026, %v3126
        %v3141 = vmul.f32 %v3027, %v3126
        %v3142 = vmul.f32 %v3028, %v3126
        %v3143 = vmul.f32 %v3029, %v3126
        %v3144 = vmul.f32 %v3030, %v3126
        %v3145 = vmul.f32 %v3031, %v3126
        %v3146 = vmul.f32 %v3032, %v3126
        %v3147 = vmul.f32 %v3033, %v3126
        %v3148 = vmul.f32 %v3034, %v3126
        %v3149 = vmul.f32 %v3035, %v3126
        %v3150 = vmul.f32 %v3036, %v3126
        %v3151 = vmul.f32 %v3037, %v3126
        %v3152 = vmul.f32 %v3038, %v3126
        %v3153 = vmul.f32 %v3039, %v3126
        %v3154 = vmul.f32 %v3040, %v3126
        %v3155 = vmul.f32 %v3041, %v3126
        %v3156 = vmul.f32 %v3042, %v3126
        %v3157 = vmul.f32 %v3043, %v3126
        %v3158 = vmul.f32 %v3044, %v3126
        %v3159 = vadd.f32 %v3091, %v3127
        %v3160 = vadd.f32 %v3092, %v3128
        %v3161 = vadd.f32 %v3093, %v3129
        %v3162 = vadd.f32 %v3094, %v3130
        %v3163 = vadd.f32 %v3095, %v3131
        %v3164 = vadd.f32 %v3096, %v3132
        %v3165 = vadd.f32 %v3097, %v3133
        %v3166 = vadd.f32 %v3098, %v3134
        %v3167 = vadd.f32 %v3099, %v3135
        %v3168 = vadd.f32 %v3100, %v3136
        %v3169 = vadd.f32 %v3101, %v3137
        %v3170 = vadd.f32 %v3102, %v3138
        %v3171 = vadd.f32 %v3103, %v3139
        %v3172 = vadd.f32 %v3104, %v3140
        %v3173 = vadd.f32 %v3105, %v3141
        %v3174 = vadd.f32 %v3106, %v3142
        %v3175 = vadd.f32 %v3107, %v3143
        %v3176 = vadd.f32 %v3108, %v3144
        %v3177 = vadd.f32 %v3109, %v3145
        %v3178 = vadd.f32 %v3110, %v3146
        %v3179 = vadd.f32 %v3111, %v3147
        %v3180 = vadd.f32 %v3112, %v3148
        %v3181 = vadd.f32 %v3113, %v3149
        %v3182 = vadd.f32 %v3114, %v3150
        %v3183 = vadd.f32 %v3115, %v3151
        %v3184 = vadd.f32 %v3116, %v3152
        %v3185 = vadd.f32 %v3117, %v3153
        %v3186 = vadd.f32 %v3118, %v3154
        %v3187 = vadd.f32 %v3119, %v3155
        %v3188 = vadd.f32 %v3120, %v3156
        %v3189 = vadd.f32 %v3121, %v3157
        %v3190 = vadd.f32 %v3122, %v3158
        %v3191 = vlaneseq
        %v3192 = vshrl.u32 %v3191, 7
        %v3193 = vsub.s32 3, %v3192
        %v3194 = vrot.slane %v404, %v3193
        %v3195 = vmul.f32 %v3015, %v3194
        %v3196 = vmul.f32 %v3016, %v3194
        %v3197 = vmul.f32 %v3017, %v3194
        %v3198 = vmul.f32 %v3018, %v3194
        %v3199 = vmul.f32 %v3019, %v3194
        %v3200 = vmul.f32 %v3020, %v3194
        %v3201 = vmul.f32 %v3021, %v3194
        %v3202 = vmul.f32 %v3022, %v3194
        %v3203 = vmul.f32 %v3023, %v3194
        %v3204 = vmul.f32 %v3024, %v3194
        %v3205 = vmul.f32 %v3025, %v3194
        %v3206 = vmul.f32 %v3026, %v3194
        %v3207 = vmul.f32 %v3027, %v3194
        %v3208 = vmul.f32 %v3028, %v3194
        %v3209 = vmul.f32 %v3029, %v3194
        %v3210 = vmul.f32 %v3030, %v3194
        %v3211 = vmul.f32 %v3031, %v3194
        %v3212 = vmul.f32 %v3032, %v3194
        %v3213 = vmul.f32 %v3033, %v3194
        %v3214 = vmul.f32 %v3034, %v3194
        %v3215 = vmul.f32 %v3035, %v3194
        %v3216 = vmul.f32 %v3036, %v3194
        %v3217 = vmul.f32 %v3037, %v3194
        %v3218 = vmul.f32 %v3038, %v3194
        %v3219 = vmul.f32 %v3039, %v3194
        %v3220 = vmul.f32 %v3040, %v3194
        %v3221 = vmul.f32 %v3041, %v3194
        %v3222 = vmul.f32 %v3042, %v3194
        %v3223 = vmul.f32 %v3043, %v3194
        %v3224 = vmul.f32 %v3044, %v3194
        %v3225 = vmul.f32 %v3045, %v3194
        %v3226 = vmul.f32 %v3046, %v3194
        %v3227 = vadd.f32 %v3159, %v3195
        %v3228 = vadd.f32 %v3160, %v3196
        %v3229 = vadd.f32 %v3161, %v3197
        %v3230 = vadd.f32 %v3162, %v3198
        %v3231 = vadd.f32 %v3163, %v3199
        %v3232 = vadd.f32 %v3164, %v3200
        %v3233 = vadd.f32 %v3165, %v3201
        %v3234 = vadd.f32 %v3166, %v3202
        %v3235 = vadd.f32 %v3167, %v3203
        %v3236 = vadd.f32 %v3168, %v3204
        %v3237 = vadd.f32 %v3169, %v3205
        %v3238 = vadd.f32 %v3170, %v3206
        %v3239 = vadd.f32 %v3171, %v3207
        %v3240 = vadd.f32 %v3172, %v3208
        %v3241 = vadd.f32 %v3173, %v3209
        %v3242 = vadd.f32 %v3174, %v3210
        %v3243 = vadd.f32 %v3175, %v3211
        %v3244 = vadd.f32 %v3176, %v3212
        %v3245 = vadd.f32 %v3177, %v3213
        %v3246 = vadd.f32 %v3178, %v3214
        %v3247 = vadd.f32 %v3179, %v3215
        %v3248 = vadd.f32 %v3180, %v3216
        %v3249 = vadd.f32 %v3181, %v3217
        %v3250 = vadd.f32 %v3182, %v3218
        %v3251 = vadd.f32 %v3183, %v3219
        %v3252 = vadd.f32 %v3184, %v3220
        %v3253 = vadd.f32 %v3185, %v3221
        %v3254 = vadd.f32 %v3186, %v3222
        %v3255 = vadd.f32 %v3187, %v3223
        %v3256 = vadd.f32 %v3188, %v3224
        %v3257 = vadd.f32 %v3189, %v3225
        %v3258 = vadd.f32 %v3190, %v3226
        %v3259 = vlaneseq
        %v3260 = vshrl.u32 %v3259, 7
        %v3261 = vsub.s32 2, %v3260
        %v3262 = vrot.slane %v405, %v3261
        %v3263 = vmul.f32 %v3017, %v3262
        %v3264 = vmul.f32 %v3018, %v3262
        %v3265 = vmul.f32 %v3019, %v3262
        %v3266 = vmul.f32 %v3020, %v3262
        %v3267 = vmul.f32 %v3021, %v3262
        %v3268 = vmul.f32 %v3022, %v3262
        %v3269 = vmul.f32 %v3023, %v3262
        %v3270 = vmul.f32 %v3024, %v3262
        %v3271 = vmul.f32 %v3025, %v3262
        %v3272 = vmul.f32 %v3026, %v3262
        %v3273 = vmul.f32 %v3027, %v3262
        %v3274 = vmul.f32 %v3028, %v3262
        %v3275 = vmul.f32 %v3029, %v3262
        %v3276 = vmul.f32 %v3030, %v3262
        %v3277 = vmul.f32 %v3031, %v3262
        %v3278 = vmul.f32 %v3032, %v3262
        %v3279 = vmul.f32 %v3033, %v3262
        %v3280 = vmul.f32 %v3034, %v3262
        %v3281 = vmul.f32 %v3035, %v3262
        %v3282 = vmul.f32 %v3036, %v3262
        %v3283 = vmul.f32 %v3037, %v3262
        %v3284 = vmul.f32 %v3038, %v3262
        %v3285 = vmul.f32 %v3039, %v3262
        %v3286 = vmul.f32 %v3040, %v3262
        %v3287 = vmul.f32 %v3041, %v3262
        %v3288 = vmul.f32 %v3042, %v3262
        %v3289 = vmul.f32 %v3043, %v3262
        %v3290 = vmul.f32 %v3044, %v3262
        %v3291 = vmul.f32 %v3045, %v3262
        %v3292 = vmul.f32 %v3046, %v3262
        %v3293 = vmul.f32 %v3047, %v3262
        %v3294 = vmul.f32 %v3048, %v3262
        %v3295 = vadd.f32 %v3227, %v3263
        %v3296 = vadd.f32 %v3228, %v3264
        %v3297 = vadd.f32 %v3229, %v3265
        %v3298 = vadd.f32 %v3230, %v3266
        %v3299 = vadd.f32 %v3231, %v3267
        %v3300 = vadd.f32 %v3232, %v3268
        %v3301 = vadd.f32 %v3233, %v3269
        %v3302 = vadd.f32 %v3234, %v3270
        %v3303 = vadd.f32 %v3235, %v3271
        %v3304 = vadd.f32 %v3236, %v3272
        %v3305 = vadd.f32 %v3237, %v3273
        %v3306 = vadd.f32 %v3238, %v3274
        %v3307 = vadd.f32 %v3239, %v3275
        %v3308 = vadd.f32 %v3240, %v3276
        %v3309 = vadd.f32 %v3241, %v3277
        %v3310 = vadd.f32 %v3242, %v3278
        %v3311 = vadd.f32 %v3243, %v3279
        %v3312 = vadd.f32 %v3244, %v3280
        %v3313 = vadd.f32 %v3245, %v3281
        %v3314 = vadd.f32 %v3246, %v3282
        %v3315 = vadd.f32 %v3247, %v3283
        %v3316 = vadd.f32 %v3248, %v3284
        %v3317 = vadd.f32 %v3249, %v3285
        %v3318 = vadd.f32 %v3250, %v3286
        %v3319 = vadd.f32 %v3251, %v3287
        %v3320 = vadd.f32 %v3252, %v3288
        %v3321 = vadd.f32 %v3253, %v3289
        %v3322 = vadd.f32 %v3254, %v3290
        %v3323 = vadd.f32 %v3255, %v3291
        %v3324 = vadd.f32 %v3256, %v3292
        %v3325 = vadd.f32 %v3257, %v3293
        %v3326 = vadd.f32 %v3258, %v3294
        %v3327 = vlaneseq
        %v3328 = vshrl.u32 %v3327, 7
        %v3329 = vsub.s32 1, %v3328
        %v3330 = vrot.slane %v406, %v3329
        %v3331 = vmul.f32 %v3019, %v3330
        %v3332 = vmul.f32 %v3020, %v3330
        %v3333 = vmul.f32 %v3021, %v3330
        %v3334 = vmul.f32 %v3022, %v3330
        %v3335 = vmul.f32 %v3023, %v3330
        %v3336 = vmul.f32 %v3024, %v3330
        %v3337 = vmul.f32 %v3025, %v3330
        %v3338 = vmul.f32 %v3026, %v3330
        %v3339 = vmul.f32 %v3027, %v3330
        %v3340 = vmul.f32 %v3028, %v3330
        %v3341 = vmul.f32 %v3029, %v3330
        %v3342 = vmul.f32 %v3030, %v3330
        %v3343 = vmul.f32 %v3031, %v3330
        %v3344 = vmul.f32 %v3032, %v3330
        %v3345 = vmul.f32 %v3033, %v3330
        %v3346 = vmul.f32 %v3034, %v3330
        %v3347 = vmul.f32 %v3035, %v3330
        %v3348 = vmul.f32 %v3036, %v3330
        %v3349 = vmul.f32 %v3037, %v3330
        %v3350 = vmul.f32 %v3038, %v3330
        %v3351 = vmul.f32 %v3039, %v3330
        %v3352 = vmul.f32 %v3040, %v3330
        %v3353 = vmul.f32 %v3041, %v3330
        %v3354 = vmul.f32 %v3042, %v3330
        %v3355 = vmul.f32 %v3043, %v3330
        %v3356 = vmul.f32 %v3044, %v3330
        %v3357 = vmul.f32 %v3045, %v3330
        %v3358 = vmul.f32 %v3046, %v3330
        %v3359 = vmul.f32 %v3047, %v3330
        %v3360 = vmul.f32 %v3048, %v3330
        %v3361 = vmul.f32 %v3049, %v3330
        %v3362 = vmul.f32 %v3050, %v3330
        %v3363 = vadd.f32 %v3295, %v3331
        %v3364 = vadd.f32 %v3296, %v3332
        %v3365 = vadd.f32 %v3297, %v3333
        %v3366 = vadd.f32 %v3298, %v3334
        %v3367 = vadd.f32 %v3299, %v3335
        %v3368 = vadd.f32 %v3300, %v3336
        %v3369 = vadd.f32 %v3301, %v3337
        %v3370 = vadd.f32 %v3302, %v3338
        %v3371 = vadd.f32 %v3303, %v3339
        %v3372 = vadd.f32 %v3304, %v3340
        %v3373 = vadd.f32 %v3305, %v3341
        %v3374 = vadd.f32 %v3306, %v3342
        %v3375 = vadd.f32 %v3307, %v3343
        %v3376 = vadd.f32 %v3308, %v3344
        %v3377 = vadd.f32 %v3309, %v3345
        %v3378 = vadd.f32 %v3310, %v3346
        %v3379 = vadd.f32 %v3311, %v3347
        %v3380 = vadd.f32 %v3312, %v3348
        %v3381 = vadd.f32 %v3313, %v3349
        %v3382 = vadd.f32 %v3314, %v3350
        %v3383 = vadd.f32 %v3315, %v3351
        %v3384 = vadd.f32 %v3316, %v3352
        %v3385 = vadd.f32 %v3317, %v3353
        %v3386 = vadd.f32 %v3318, %v3354
        %v3387 = vadd.f32 %v3319, %v3355
        %v3388 = vadd.f32 %v3320, %v3356
        %v3389 = vadd.f32 %v3321, %v3357
        %v3390 = vadd.f32 %v3322, %v3358
        %v3391 = vadd.f32 %v3323, %v3359
        %v3392 = vadd.f32 %v3324, %v3360
        %v3393 = vadd.f32 %v3325, %v3361
        %v3394 = vadd.f32 %v3326, %v3362
        %v3395 = vlaneseq
        %v3396 = vshrl.u32 %v3395, 7
        %v3397 = vsub.s32 0, %v3396
        %v3398 = vrot.slane %v407, %v3397
        %v3399 = vmul.f32 %v3021, %v3398
        %v3400 = vmul.f32 %v3022, %v3398
        %v3401 = vmul.f32 %v3023, %v3398
        %v3402 = vmul.f32 %v3024, %v3398
        %v3403 = vmul.f32 %v3025, %v3398
        %v3404 = vmul.f32 %v3026, %v3398
        %v3405 = vmul.f32 %v3027, %v3398
        %v3406 = vmul.f32 %v3028, %v3398
        %v3407 = vmul.f32 %v3029, %v3398
        %v3408 = vmul.f32 %v3030, %v3398
        %v3409 = vmul.f32 %v3031, %v3398
        %v3410 = vmul.f32 %v3032, %v3398
        %v3411 = vmul.f32 %v3033, %v3398
        %v3412 = vmul.f32 %v3034, %v3398
        %v3413 = vmul.f32 %v3035, %v3398
        %v3414 = vmul.f32 %v3036, %v3398
        %v3415 = vmul.f32 %v3037, %v3398
        %v3416 = vmul.f32 %v3038, %v3398
        %v3417 = vmul.f32 %v3039, %v3398
        %v3418 = vmul.f32 %v3040, %v3398
        %v3419 = vmul.f32 %v3041, %v3398
        %v3420 = vmul.f32 %v3042, %v3398
        %v3421 = vmul.f32 %v3043, %v3398
        %v3422 = vmul.f32 %v3044, %v3398
        %v3423 = vmul.f32 %v3045, %v3398
        %v3424 = vmul.f32 %v3046, %v3398
        %v3425 = vmul.f32 %v3047, %v3398
        %v3426 = vmul.f32 %v3048, %v3398
        %v3427 = vmul.f32 %v3049, %v3398
        %v3428 = vmul.f32 %v3050, %v3398
        %v3429 = vmul.f32 %v3051, %v3398
        %v3430 = vmul.f32 %v3052, %v3398
        %v3431 = vadd.f32 %v3363, %v3399
        %v3432 = vadd.f32 %v3364, %v3400
        %v3433 = vadd.f32 %v3365, %v3401
        %v3434 = vadd.f32 %v3366, %v3402
        %v3435 = vadd.f32 %v3367, %v3403
        %v3436 = vadd.f32 %v3368, %v3404
        %v3437 = vadd.f32 %v3369, %v3405
        %v3438 = vadd.f32 %v3370, %v3406
        %v3439 = vadd.f32 %v3371, %v3407
        %v3440 = vadd.f32 %v3372, %v3408
        %v3441 = vadd.f32 %v3373, %v3409
        %v3442 = vadd.f32 %v3374, %v3410
        %v3443 = vadd.f32 %v3375, %v3411
        %v3444 = vadd.f32 %v3376, %v3412
        %v3445 = vadd.f32 %v3377, %v3413
        %v3446 = vadd.f32 %v3378, %v3414
        %v3447 = vadd.f32 %v3379, %v3415
        %v3448 = vadd.f32 %v3380, %v3416
        %v3449 = vadd.f32 %v3381, %v3417
        %v3450 = vadd.f32 %v3382, %v3418
        %v3451 = vadd.f32 %v3383, %v3419
        %v3452 = vadd.f32 %v3384, %v3420
        %v3453 = vadd.f32 %v3385, %v3421
        %v3454 = vadd.f32 %v3386, %v3422
        %v3455 = vadd.f32 %v3387, %v3423
        %v3456 = vadd.f32 %v3388, %v3424
        %v3457 = vadd.f32 %v3389, %v3425
        %v3458 = vadd.f32 %v3390, %v3426
        %v3459 = vadd.f32 %v3391, %v3427
        %v3460 = vadd.f32 %v3392, %v3428
        %v3461 = vadd.f32 %v3393, %v3429
        %v3462 = vadd.f32 %v3394, %v3430
        %v3463 = vlaneseq
        %v3464 = vshrl.u32 %v3463, 7
        %v3465 = vsub.s32 7, %v3464
        %v3466 = vrot.slane %v407, %v3465
        %v3467 = vmul.f32 %v3023, %v3466
        %v3468 = vmul.f32 %v3024, %v3466
        %v3469 = vmul.f32 %v3025, %v3466
        %v3470 = vmul.f32 %v3026, %v3466
        %v3471 = vmul.f32 %v3027, %v3466
        %v3472 = vmul.f32 %v3028, %v3466
        %v3473 = vmul.f32 %v3029, %v3466
        %v3474 = vmul.f32 %v3030, %v3466
        %v3475 = vmul.f32 %v3031, %v3466
        %v3476 = vmul.f32 %v3032, %v3466
        %v3477 = vmul.f32 %v3033, %v3466
        %v3478 = vmul.f32 %v3034, %v3466
        %v3479 = vmul.f32 %v3035, %v3466
        %v3480 = vmul.f32 %v3036, %v3466
        %v3481 = vmul.f32 %v3037, %v3466
        %v3482 = vmul.f32 %v3038, %v3466
        %v3483 = vmul.f32 %v3039, %v3466
        %v3484 = vmul.f32 %v3040, %v3466
        %v3485 = vmul.f32 %v3041, %v3466
        %v3486 = vmul.f32 %v3042, %v3466
        %v3487 = vmul.f32 %v3043, %v3466
        %v3488 = vmul.f32 %v3044, %v3466
        %v3489 = vmul.f32 %v3045, %v3466
        %v3490 = vmul.f32 %v3046, %v3466
        %v3491 = vmul.f32 %v3047, %v3466
        %v3492 = vmul.f32 %v3048, %v3466
        %v3493 = vmul.f32 %v3049, %v3466
        %v3494 = vmul.f32 %v3050, %v3466
        %v3495 = vmul.f32 %v3051, %v3466
        %v3496 = vmul.f32 %v3052, %v3466
        %v3497 = vmul.f32 %v3053, %v3466
        %v3498 = vmul.f32 %v3054, %v3466
        %v3499 = vadd.f32 %v3431, %v3467
        %v3500 = vadd.f32 %v3432, %v3468
        %v3501 = vadd.f32 %v3433, %v3469
        %v3502 = vadd.f32 %v3434, %v3470
        %v3503 = vadd.f32 %v3435, %v3471
        %v3504 = vadd.f32 %v3436, %v3472
        %v3505 = vadd.f32 %v3437, %v3473
        %v3506 = vadd.f32 %v3438, %v3474
        %v3507 = vadd.f32 %v3439, %v3475
        %v3508 = vadd.f32 %v3440, %v3476
        %v3509 = vadd.f32 %v3441, %v3477
        %v3510 = vadd.f32 %v3442, %v3478
        %v3511 = vadd.f32 %v3443, %v3479
        %v3512 = vadd.f32 %v3444, %v3480
        %v3513 = vadd.f32 %v3445, %v3481
        %v3514 = vadd.f32 %v3446, %v3482
        %v3515 = vadd.f32 %v3447, %v3483
        %v3516 = vadd.f32 %v3448, %v3484
        %v3517 = vadd.f32 %v3449, %v3485
        %v3518 = vadd.f32 %v3450, %v3486
        %v3519 = vadd.f32 %v3451, %v3487
        %v3520 = vadd.f32 %v3452, %v3488
        %v3521 = vadd.f32 %v3453, %v3489
        %v3522 = vadd.f32 %v3454, %v3490
        %v3523 = vadd.f32 %v3455, %v3491
        %v3524 = vadd.f32 %v3456, %v3492
        %v3525 = vadd.f32 %v3457, %v3493
        %v3526 = vadd.f32 %v3458, %v3494
        %v3527 = vadd.f32 %v3459, %v3495
        %v3528 = vadd.f32 %v3460, %v3496
        %v3529 = vadd.f32 %v3461, %v3497
        %v3530 = vadd.f32 %v3462, %v3498
        %v3531 = vld [vmem:[%s410 + $0x6] sm:$0xff]
        %v3532 = vld [vmem:[%s410 + $0xe] sm:$0xff]
        %v3533 = vld [vmem:[%s410 + $0x1e] sm:$0xff]
        %v3534 = vld [vmem:[%s410 + $0x26] sm:$0xff]
        %v3535 = vld [vmem:[%s410 + $0x36] sm:$0xff]
        %v3536 = vld [vmem:[%s410 + $0x3e] sm:$0xff]
        %v3537 = vld [vmem:[%s410 + $0x4e] sm:$0xff]
        %v3538 = vld [vmem:[%s410 + $0x56] sm:$0xff]
        %v3539 = vld [vmem:[%s410 + $0x66] sm:$0xff]
        %v3540 = vld [vmem:[%s410 + $0x6e] sm:$0xff]
        %v3541 = vld [vmem:[%s410 + $0x7e] sm:$0xff]
        %v3542 = vld [vmem:[%s410 + $0x86] sm:$0xff]
        %v3543 = vld [vmem:[%s410 + $0x96] sm:$0xff]
        %v3544 = vld [vmem:[%s410 + $0x9e] sm:$0xff]
        %v3545 = vld [vmem:[%s410 + $0xae] sm:$0xff]
        %v3546 = vld [vmem:[%s410 + $0xb6] sm:$0xff]
        %v3547 = vld [vmem:[%s410 + $0xc6] sm:$0xff]
        %v3548 = vld [vmem:[%s410 + $0xce] sm:$0xff]
        %v3549 = vld [vmem:[%s410 + $0xde] sm:$0xff]
        %v3550 = vld [vmem:[%s410 + $0xe6] sm:$0xff]
        %v3551 = vld [vmem:[%s410 + $0xf6] sm:$0xff]
        %v3552 = vld [vmem:[%s410 + $0xfe] sm:$0xff]
        %v3553 = vld [vmem:[%s410 + $0x10e] sm:$0xff]
        %v3554 = vld [vmem:[%s410 + $0x116] sm:$0xff]
        %v3555 = vld [vmem:[%s410 + $0x126] sm:$0xff]
        %v3556 = vld [vmem:[%s410 + $0x12e] sm:$0xff]
        %v3557 = vld [vmem:[%s410 + $0x13e] sm:$0xff]
        %v3558 = vld [vmem:[%s410 + $0x146] sm:$0xff]
        %v3559 = vld [vmem:[%s410 + $0x156] sm:$0xff]
        %v3560 = vld [vmem:[%s410 + $0x15e] sm:$0xff]
        %v3561 = vld [vmem:[%s410 + $0x16e] sm:$0xff]
        %v3562 = vld [vmem:[%s410 + $0x176] sm:$0xff]
        %v3563 = vld [vmem:[%s410 + $0x186] sm:$0xff]
        %v3564 = vld [vmem:[%s410 + $0x18e] sm:$0xff]
        %v3565 = vld [vmem:[%s410 + $0x19e] sm:$0xff]
        %v3566 = vld [vmem:[%s410 + $0x1a6] sm:$0xff]
        %v3567 = vld [vmem:[%s410 + $0x1b6] sm:$0xff]
        %v3568 = vld [vmem:[%s410 + $0x1be] sm:$0xff]
        %v3569 = vld [vmem:[%s410 + $0x1ce] sm:$0xff]
        %v3570 = vld [vmem:[%s410 + $0x1d6] sm:$0xff]
        %v3571 = vld [vmem:[%s410 + $0x1e6] sm:$0xff]
        %v3572 = vld [vmem:[%s410 + $0x1ee] sm:$0xff]
        %v3573 = vld [vmem:[%s410 + $0x1fe] sm:$0xff]
        %v3574 = vld [vmem:[%s410 + $0x206] sm:$0xff]
        %v3575 = vlaneseq
        %v3576 = vshrl.u32 %v3575, 7
        %v3577 = vsub.s32 6, %v3576
        %v3578 = vrot.slane %v402, %v3577
        %v3579 = vmul.f32 %v3531, %v3578
        %v3580 = vmul.f32 %v3532, %v3578
        %v3581 = vmul.f32 %v3533, %v3578
        %v3582 = vmul.f32 %v3534, %v3578
        %v3583 = vmul.f32 %v3535, %v3578
        %v3584 = vmul.f32 %v3536, %v3578
        %v3585 = vmul.f32 %v3537, %v3578
        %v3586 = vmul.f32 %v3538, %v3578
        %v3587 = vmul.f32 %v3539, %v3578
        %v3588 = vmul.f32 %v3540, %v3578
        %v3589 = vmul.f32 %v3541, %v3578
        %v3590 = vmul.f32 %v3542, %v3578
        %v3591 = vmul.f32 %v3543, %v3578
        %v3592 = vmul.f32 %v3544, %v3578
        %v3593 = vmul.f32 %v3545, %v3578
        %v3594 = vmul.f32 %v3546, %v3578
        %v3595 = vmul.f32 %v3547, %v3578
        %v3596 = vmul.f32 %v3548, %v3578
        %v3597 = vmul.f32 %v3549, %v3578
        %v3598 = vmul.f32 %v3550, %v3578
        %v3599 = vmul.f32 %v3551, %v3578
        %v3600 = vmul.f32 %v3552, %v3578
        %v3601 = vmul.f32 %v3553, %v3578
        %v3602 = vmul.f32 %v3554, %v3578
        %v3603 = vmul.f32 %v3555, %v3578
        %v3604 = vmul.f32 %v3556, %v3578
        %v3605 = vmul.f32 %v3557, %v3578
        %v3606 = vmul.f32 %v3558, %v3578
        %v3607 = vmul.f32 %v3559, %v3578
        %v3608 = vmul.f32 %v3560, %v3578
        %v3609 = vmul.f32 %v3561, %v3578
        %v3610 = vmul.f32 %v3562, %v3578
        %v3611 = vadd.f32 %v3499, %v3579
        %v3612 = vadd.f32 %v3500, %v3580
        %v3613 = vadd.f32 %v3501, %v3581
        %v3614 = vadd.f32 %v3502, %v3582
        %v3615 = vadd.f32 %v3503, %v3583
        %v3616 = vadd.f32 %v3504, %v3584
        %v3617 = vadd.f32 %v3505, %v3585
        %v3618 = vadd.f32 %v3506, %v3586
        %v3619 = vadd.f32 %v3507, %v3587
        %v3620 = vadd.f32 %v3508, %v3588
        %v3621 = vadd.f32 %v3509, %v3589
        %v3622 = vadd.f32 %v3510, %v3590
        %v3623 = vadd.f32 %v3511, %v3591
        %v3624 = vadd.f32 %v3512, %v3592
        %v3625 = vadd.f32 %v3513, %v3593
        %v3626 = vadd.f32 %v3514, %v3594
        %v3627 = vadd.f32 %v3515, %v3595
        %v3628 = vadd.f32 %v3516, %v3596
        %v3629 = vadd.f32 %v3517, %v3597
        %v3630 = vadd.f32 %v3518, %v3598
        %v3631 = vadd.f32 %v3519, %v3599
        %v3632 = vadd.f32 %v3520, %v3600
        %v3633 = vadd.f32 %v3521, %v3601
        %v3634 = vadd.f32 %v3522, %v3602
        %v3635 = vadd.f32 %v3523, %v3603
        %v3636 = vadd.f32 %v3524, %v3604
        %v3637 = vadd.f32 %v3525, %v3605
        %v3638 = vadd.f32 %v3526, %v3606
        %v3639 = vadd.f32 %v3527, %v3607
        %v3640 = vadd.f32 %v3528, %v3608
        %v3641 = vadd.f32 %v3529, %v3609
        %v3642 = vadd.f32 %v3530, %v3610
        %v3643 = vlaneseq
        %v3644 = vshrl.u32 %v3643, 7
        %v3645 = vsub.s32 5, %v3644
        %v3646 = vrot.slane %v403, %v3645
        %v3647 = vmul.f32 %v3533, %v3646
        %v3648 = vmul.f32 %v3534, %v3646
        %v3649 = vmul.f32 %v3535, %v3646
        %v3650 = vmul.f32 %v3536, %v3646
        %v3651 = vmul.f32 %v3537, %v3646
        %v3652 = vmul.f32 %v3538, %v3646
        %v3653 = vmul.f32 %v3539, %v3646
        %v3654 = vmul.f32 %v3540, %v3646
        %v3655 = vmul.f32 %v3541, %v3646
        %v3656 = vmul.f32 %v3542, %v3646
        %v3657 = vmul.f32 %v3543, %v3646
        %v3658 = vmul.f32 %v3544, %v3646
        %v3659 = vmul.f32 %v3545, %v3646
        %v3660 = vmul.f32 %v3546, %v3646
        %v3661 = vmul.f32 %v3547, %v3646
        %v3662 = vmul.f32 %v3548, %v3646
        %v3663 = vmul.f32 %v3549, %v3646
        %v3664 = vmul.f32 %v3550, %v3646
        %v3665 = vmul.f32 %v3551, %v3646
        %v3666 = vmul.f32 %v3552, %v3646
        %v3667 = vmul.f32 %v3553, %v3646
        %v3668 = vmul.f32 %v3554, %v3646
        %v3669 = vmul.f32 %v3555, %v3646
        %v3670 = vmul.f32 %v3556, %v3646
        %v3671 = vmul.f32 %v3557, %v3646
        %v3672 = vmul.f32 %v3558, %v3646
        %v3673 = vmul.f32 %v3559, %v3646
        %v3674 = vmul.f32 %v3560, %v3646
        %v3675 = vmul.f32 %v3561, %v3646
        %v3676 = vmul.f32 %v3562, %v3646
        %v3677 = vmul.f32 %v3563, %v3646
        %v3678 = vmul.f32 %v3564, %v3646
        %v3679 = vadd.f32 %v3611, %v3647
        %v3680 = vadd.f32 %v3612, %v3648
        %v3681 = vadd.f32 %v3613, %v3649
        %v3682 = vadd.f32 %v3614, %v3650
        %v3683 = vadd.f32 %v3615, %v3651
        %v3684 = vadd.f32 %v3616, %v3652
        %v3685 = vadd.f32 %v3617, %v3653
        %v3686 = vadd.f32 %v3618, %v3654
        %v3687 = vadd.f32 %v3619, %v3655
        %v3688 = vadd.f32 %v3620, %v3656
        %v3689 = vadd.f32 %v3621, %v3657
        %v3690 = vadd.f32 %v3622, %v3658
        %v3691 = vadd.f32 %v3623, %v3659
        %v3692 = vadd.f32 %v3624, %v3660
        %v3693 = vadd.f32 %v3625, %v3661
        %v3694 = vadd.f32 %v3626, %v3662
        %v3695 = vadd.f32 %v3627, %v3663
        %v3696 = vadd.f32 %v3628, %v3664
        %v3697 = vadd.f32 %v3629, %v3665
        %v3698 = vadd.f32 %v3630, %v3666
        %v3699 = vadd.f32 %v3631, %v3667
        %v3700 = vadd.f32 %v3632, %v3668
        %v3701 = vadd.f32 %v3633, %v3669
        %v3702 = vadd.f32 %v3634, %v3670
        %v3703 = vadd.f32 %v3635, %v3671
        %v3704 = vadd.f32 %v3636, %v3672
        %v3705 = vadd.f32 %v3637, %v3673
        %v3706 = vadd.f32 %v3638, %v3674
        %v3707 = vadd.f32 %v3639, %v3675
        %v3708 = vadd.f32 %v3640, %v3676
        %v3709 = vadd.f32 %v3641, %v3677
        %v3710 = vadd.f32 %v3642, %v3678
        %v3711 = vlaneseq
        %v3712 = vshrl.u32 %v3711, 7
        %v3713 = vsub.s32 4, %v3712
        %v3714 = vrot.slane %v404, %v3713
        %v3715 = vmul.f32 %v3535, %v3714
        %v3716 = vmul.f32 %v3536, %v3714
        %v3717 = vmul.f32 %v3537, %v3714
        %v3718 = vmul.f32 %v3538, %v3714
        %v3719 = vmul.f32 %v3539, %v3714
        %v3720 = vmul.f32 %v3540, %v3714
        %v3721 = vmul.f32 %v3541, %v3714
        %v3722 = vmul.f32 %v3542, %v3714
        %v3723 = vmul.f32 %v3543, %v3714
        %v3724 = vmul.f32 %v3544, %v3714
        %v3725 = vmul.f32 %v3545, %v3714
        %v3726 = vmul.f32 %v3546, %v3714
        %v3727 = vmul.f32 %v3547, %v3714
        %v3728 = vmul.f32 %v3548, %v3714
        %v3729 = vmul.f32 %v3549, %v3714
        %v3730 = vmul.f32 %v3550, %v3714
        %v3731 = vmul.f32 %v3551, %v3714
        %v3732 = vmul.f32 %v3552, %v3714
        %v3733 = vmul.f32 %v3553, %v3714
        %v3734 = vmul.f32 %v3554, %v3714
        %v3735 = vmul.f32 %v3555, %v3714
        %v3736 = vmul.f32 %v3556, %v3714
        %v3737 = vmul.f32 %v3557, %v3714
        %v3738 = vmul.f32 %v3558, %v3714
        %v3739 = vmul.f32 %v3559, %v3714
        %v3740 = vmul.f32 %v3560, %v3714
        %v3741 = vmul.f32 %v3561, %v3714
        %v3742 = vmul.f32 %v3562, %v3714
        %v3743 = vmul.f32 %v3563, %v3714
        %v3744 = vmul.f32 %v3564, %v3714
        %v3745 = vmul.f32 %v3565, %v3714
        %v3746 = vmul.f32 %v3566, %v3714
        %v3747 = vadd.f32 %v3679, %v3715
        %v3748 = vadd.f32 %v3680, %v3716
        %v3749 = vadd.f32 %v3681, %v3717
        %v3750 = vadd.f32 %v3682, %v3718
        %v3751 = vadd.f32 %v3683, %v3719
        %v3752 = vadd.f32 %v3684, %v3720
        %v3753 = vadd.f32 %v3685, %v3721
        %v3754 = vadd.f32 %v3686, %v3722
        %v3755 = vadd.f32 %v3687, %v3723
        %v3756 = vadd.f32 %v3688, %v3724
        %v3757 = vadd.f32 %v3689, %v3725
        %v3758 = vadd.f32 %v3690, %v3726
        %v3759 = vadd.f32 %v3691, %v3727
        %v3760 = vadd.f32 %v3692, %v3728
        %v3761 = vadd.f32 %v3693, %v3729
        %v3762 = vadd.f32 %v3694, %v3730
        %v3763 = vadd.f32 %v3695, %v3731
        %v3764 = vadd.f32 %v3696, %v3732
        %v3765 = vadd.f32 %v3697, %v3733
        %v3766 = vadd.f32 %v3698, %v3734
        %v3767 = vadd.f32 %v3699, %v3735
        %v3768 = vadd.f32 %v3700, %v3736
        %v3769 = vadd.f32 %v3701, %v3737
        %v3770 = vadd.f32 %v3702, %v3738
        %v3771 = vadd.f32 %v3703, %v3739
        %v3772 = vadd.f32 %v3704, %v3740
        %v3773 = vadd.f32 %v3705, %v3741
        %v3774 = vadd.f32 %v3706, %v3742
        %v3775 = vadd.f32 %v3707, %v3743
        %v3776 = vadd.f32 %v3708, %v3744
        %v3777 = vadd.f32 %v3709, %v3745
        %v3778 = vadd.f32 %v3710, %v3746
        %v3779 = vlaneseq
        %v3780 = vshrl.u32 %v3779, 7
        %v3781 = vsub.s32 3, %v3780
        %v3782 = vrot.slane %v405, %v3781
        %v3783 = vmul.f32 %v3537, %v3782
        %v3784 = vmul.f32 %v3538, %v3782
        %v3785 = vmul.f32 %v3539, %v3782
        %v3786 = vmul.f32 %v3540, %v3782
        %v3787 = vmul.f32 %v3541, %v3782
        %v3788 = vmul.f32 %v3542, %v3782
        %v3789 = vmul.f32 %v3543, %v3782
        %v3790 = vmul.f32 %v3544, %v3782
        %v3791 = vmul.f32 %v3545, %v3782
        %v3792 = vmul.f32 %v3546, %v3782
        %v3793 = vmul.f32 %v3547, %v3782
        %v3794 = vmul.f32 %v3548, %v3782
        %v3795 = vmul.f32 %v3549, %v3782
        %v3796 = vmul.f32 %v3550, %v3782
        %v3797 = vmul.f32 %v3551, %v3782
        %v3798 = vmul.f32 %v3552, %v3782
        %v3799 = vmul.f32 %v3553, %v3782
        %v3800 = vmul.f32 %v3554, %v3782
        %v3801 = vmul.f32 %v3555, %v3782
        %v3802 = vmul.f32 %v3556, %v3782
        %v3803 = vmul.f32 %v3557, %v3782
        %v3804 = vmul.f32 %v3558, %v3782
        %v3805 = vmul.f32 %v3559, %v3782
        %v3806 = vmul.f32 %v3560, %v3782
        %v3807 = vmul.f32 %v3561, %v3782
        %v3808 = vmul.f32 %v3562, %v3782
        %v3809 = vmul.f32 %v3563, %v3782
        %v3810 = vmul.f32 %v3564, %v3782
        %v3811 = vmul.f32 %v3565, %v3782
        %v3812 = vmul.f32 %v3566, %v3782
        %v3813 = vmul.f32 %v3567, %v3782
        %v3814 = vmul.f32 %v3568, %v3782
        %v3815 = vadd.f32 %v3747, %v3783
        %v3816 = vadd.f32 %v3748, %v3784
        %v3817 = vadd.f32 %v3749, %v3785
        %v3818 = vadd.f32 %v3750, %v3786
        %v3819 = vadd.f32 %v3751, %v3787
        %v3820 = vadd.f32 %v3752, %v3788
        %v3821 = vadd.f32 %v3753, %v3789
        %v3822 = vadd.f32 %v3754, %v3790
        %v3823 = vadd.f32 %v3755, %v3791
        %v3824 = vadd.f32 %v3756, %v3792
        %v3825 = vadd.f32 %v3757, %v3793
        %v3826 = vadd.f32 %v3758, %v3794
        %v3827 = vadd.f32 %v3759, %v3795
        %v3828 = vadd.f32 %v3760, %v3796
        %v3829 = vadd.f32 %v3761, %v3797
        %v3830 = vadd.f32 %v3762, %v3798
        %v3831 = vadd.f32 %v3763, %v3799
        %v3832 = vadd.f32 %v3764, %v3800
        %v3833 = vadd.f32 %v3765, %v3801
        %v3834 = vadd.f32 %v3766, %v3802
        %v3835 = vadd.f32 %v3767, %v3803
        %v3836 = vadd.f32 %v3768, %v3804
        %v3837 = vadd.f32 %v3769, %v3805
        %v3838 = vadd.f32 %v3770, %v3806
        %v3839 = vadd.f32 %v3771, %v3807
        %v3840 = vadd.f32 %v3772, %v3808
        %v3841 = vadd.f32 %v3773, %v3809
        %v3842 = vadd.f32 %v3774, %v3810
        %v3843 = vadd.f32 %v3775, %v3811
        %v3844 = vadd.f32 %v3776, %v3812
        %v3845 = vadd.f32 %v3777, %v3813
        %v3846 = vadd.f32 %v3778, %v3814
        %v3847 = vlaneseq
        %v3848 = vshrl.u32 %v3847, 7
        %v3849 = vsub.s32 2, %v3848
        %v3850 = vrot.slane %v406, %v3849
        %v3851 = vmul.f32 %v3539, %v3850
        %v3852 = vmul.f32 %v3540, %v3850
        %v3853 = vmul.f32 %v3541, %v3850
        %v3854 = vmul.f32 %v3542, %v3850
        %v3855 = vmul.f32 %v3543, %v3850
        %v3856 = vmul.f32 %v3544, %v3850
        %v3857 = vmul.f32 %v3545, %v3850
        %v3858 = vmul.f32 %v3546, %v3850
        %v3859 = vmul.f32 %v3547, %v3850
        %v3860 = vmul.f32 %v3548, %v3850
        %v3861 = vmul.f32 %v3549, %v3850
        %v3862 = vmul.f32 %v3550, %v3850
        %v3863 = vmul.f32 %v3551, %v3850
        %v3864 = vmul.f32 %v3552, %v3850
        %v3865 = vmul.f32 %v3553, %v3850
        %v3866 = vmul.f32 %v3554, %v3850
        %v3867 = vmul.f32 %v3555, %v3850
        %v3868 = vmul.f32 %v3556, %v3850
        %v3869 = vmul.f32 %v3557, %v3850
        %v3870 = vmul.f32 %v3558, %v3850
        %v3871 = vmul.f32 %v3559, %v3850
        %v3872 = vmul.f32 %v3560, %v3850
        %v3873 = vmul.f32 %v3561, %v3850
        %v3874 = vmul.f32 %v3562, %v3850
        %v3875 = vmul.f32 %v3563, %v3850
        %v3876 = vmul.f32 %v3564, %v3850
        %v3877 = vmul.f32 %v3565, %v3850
        %v3878 = vmul.f32 %v3566, %v3850
        %v3879 = vmul.f32 %v3567, %v3850
        %v3880 = vmul.f32 %v3568, %v3850
        %v3881 = vmul.f32 %v3569, %v3850
        %v3882 = vmul.f32 %v3570, %v3850
        %v3883 = vadd.f32 %v3815, %v3851
        %v3884 = vadd.f32 %v3816, %v3852
        %v3885 = vadd.f32 %v3817, %v3853
        %v3886 = vadd.f32 %v3818, %v3854
        %v3887 = vadd.f32 %v3819, %v3855
        %v3888 = vadd.f32 %v3820, %v3856
        %v3889 = vadd.f32 %v3821, %v3857
        %v3890 = vadd.f32 %v3822, %v3858
        %v3891 = vadd.f32 %v3823, %v3859
        %v3892 = vadd.f32 %v3824, %v3860
        %v3893 = vadd.f32 %v3825, %v3861
        %v3894 = vadd.f32 %v3826, %v3862
        %v3895 = vadd.f32 %v3827, %v3863
        %v3896 = vadd.f32 %v3828, %v3864
        %v3897 = vadd.f32 %v3829, %v3865
        %v3898 = vadd.f32 %v3830, %v3866
        %v3899 = vadd.f32 %v3831, %v3867
        %v3900 = vadd.f32 %v3832, %v3868
        %v3901 = vadd.f32 %v3833, %v3869
        %v3902 = vadd.f32 %v3834, %v3870
        %v3903 = vadd.f32 %v3835, %v3871
        %v3904 = vadd.f32 %v3836, %v3872
        %v3905 = vadd.f32 %v3837, %v3873
        %v3906 = vadd.f32 %v3838, %v3874
        %v3907 = vadd.f32 %v3839, %v3875
        %v3908 = vadd.f32 %v3840, %v3876
        %v3909 = vadd.f32 %v3841, %v3877
        %v3910 = vadd.f32 %v3842, %v3878
        %v3911 = vadd.f32 %v3843, %v3879
        %v3912 = vadd.f32 %v3844, %v3880
        %v3913 = vadd.f32 %v3845, %v3881
        %v3914 = vadd.f32 %v3846, %v3882
        %v3915 = vlaneseq
        %v3916 = vshrl.u32 %v3915, 7
        %v3917 = vsub.s32 1, %v3916
        %v3918 = vrot.slane %v407, %v3917
        %v3919 = vmul.f32 %v3541, %v3918
        %v3920 = vmul.f32 %v3542, %v3918
        %v3921 = vmul.f32 %v3543, %v3918
        %v3922 = vmul.f32 %v3544, %v3918
        %v3923 = vmul.f32 %v3545, %v3918
        %v3924 = vmul.f32 %v3546, %v3918
        %v3925 = vmul.f32 %v3547, %v3918
        %v3926 = vmul.f32 %v3548, %v3918
        %v3927 = vmul.f32 %v3549, %v3918
        %v3928 = vmul.f32 %v3550, %v3918
        %v3929 = vmul.f32 %v3551, %v3918
        %v3930 = vmul.f32 %v3552, %v3918
        %v3931 = vmul.f32 %v3553, %v3918
        %v3932 = vmul.f32 %v3554, %v3918
        %v3933 = vmul.f32 %v3555, %v3918
        %v3934 = vmul.f32 %v3556, %v3918
        %v3935 = vmul.f32 %v3557, %v3918
        %v3936 = vmul.f32 %v3558, %v3918
        %v3937 = vmul.f32 %v3559, %v3918
        %v3938 = vmul.f32 %v3560, %v3918
        %v3939 = vmul.f32 %v3561, %v3918
        %v3940 = vmul.f32 %v3562, %v3918
        %v3941 = vmul.f32 %v3563, %v3918
        %v3942 = vmul.f32 %v3564, %v3918
        %v3943 = vmul.f32 %v3565, %v3918
        %v3944 = vmul.f32 %v3566, %v3918
        %v3945 = vmul.f32 %v3567, %v3918
        %v3946 = vmul.f32 %v3568, %v3918
        %v3947 = vmul.f32 %v3569, %v3918
        %v3948 = vmul.f32 %v3570, %v3918
        %v3949 = vmul.f32 %v3571, %v3918
        %v3950 = vmul.f32 %v3572, %v3918
        %v3951 = vadd.f32 %v3883, %v3919
        %v3952 = vadd.f32 %v3884, %v3920
        %v3953 = vadd.f32 %v3885, %v3921
        %v3954 = vadd.f32 %v3886, %v3922
        %v3955 = vadd.f32 %v3887, %v3923
        %v3956 = vadd.f32 %v3888, %v3924
        %v3957 = vadd.f32 %v3889, %v3925
        %v3958 = vadd.f32 %v3890, %v3926
        %v3959 = vadd.f32 %v3891, %v3927
        %v3960 = vadd.f32 %v3892, %v3928
        %v3961 = vadd.f32 %v3893, %v3929
        %v3962 = vadd.f32 %v3894, %v3930
        %v3963 = vadd.f32 %v3895, %v3931
        %v3964 = vadd.f32 %v3896, %v3932
        %v3965 = vadd.f32 %v3897, %v3933
        %v3966 = vadd.f32 %v3898, %v3934
        %v3967 = vadd.f32 %v3899, %v3935
        %v3968 = vadd.f32 %v3900, %v3936
        %v3969 = vadd.f32 %v3901, %v3937
        %v3970 = vadd.f32 %v3902, %v3938
        %v3971 = vadd.f32 %v3903, %v3939
        %v3972 = vadd.f32 %v3904, %v3940
        %v3973 = vadd.f32 %v3905, %v3941
        %v3974 = vadd.f32 %v3906, %v3942
        %v3975 = vadd.f32 %v3907, %v3943
        %v3976 = vadd.f32 %v3908, %v3944
        %v3977 = vadd.f32 %v3909, %v3945
        %v3978 = vadd.f32 %v3910, %v3946
        %v3979 = vadd.f32 %v3911, %v3947
        %v3980 = vadd.f32 %v3912, %v3948
        %v3981 = vadd.f32 %v3913, %v3949
        %v3982 = vadd.f32 %v3914, %v3950
        %v3983 = vlaneseq
        %v3984 = vshrl.u32 %v3983, 7
        %v3985 = vsub.s32 0, %v3984
        %v3986 = vrot.slane %v408, %v3985
        %v3987 = vmul.f32 %v3543, %v3986
        %v3988 = vmul.f32 %v3544, %v3986
        %v3989 = vmul.f32 %v3545, %v3986
        %v3990 = vmul.f32 %v3546, %v3986
        %v3991 = vmul.f32 %v3547, %v3986
        %v3992 = vmul.f32 %v3548, %v3986
        %v3993 = vmul.f32 %v3549, %v3986
        %v3994 = vmul.f32 %v3550, %v3986
        %v3995 = vmul.f32 %v3551, %v3986
        %v3996 = vmul.f32 %v3552, %v3986
        %v3997 = vmul.f32 %v3553, %v3986
        %v3998 = vmul.f32 %v3554, %v3986
        %v3999 = vmul.f32 %v3555, %v3986
        %v4000 = vmul.f32 %v3556, %v3986
        %v4001 = vmul.f32 %v3557, %v3986
        %v4002 = vmul.f32 %v3558, %v3986
        %v4003 = vmul.f32 %v3559, %v3986
        %v4004 = vmul.f32 %v3560, %v3986
        %v4005 = vmul.f32 %v3561, %v3986
        %v4006 = vmul.f32 %v3562, %v3986
        %v4007 = vmul.f32 %v3563, %v3986
        %v4008 = vmul.f32 %v3564, %v3986
        %v4009 = vmul.f32 %v3565, %v3986
        %v4010 = vmul.f32 %v3566, %v3986
        %v4011 = vmul.f32 %v3567, %v3986
        %v4012 = vmul.f32 %v3568, %v3986
        %v4013 = vmul.f32 %v3569, %v3986
        %v4014 = vmul.f32 %v3570, %v3986
        %v4015 = vmul.f32 %v3571, %v3986
        %v4016 = vmul.f32 %v3572, %v3986
        %v4017 = vmul.f32 %v3573, %v3986
        %v4018 = vmul.f32 %v3574, %v3986
        %v4019 = vadd.f32 %v3951, %v3987
        %v4020 = vadd.f32 %v3952, %v3988
        %v4021 = vadd.f32 %v3953, %v3989
        %v4022 = vadd.f32 %v3954, %v3990
        %v4023 = vadd.f32 %v3955, %v3991
        %v4024 = vadd.f32 %v3956, %v3992
        %v4025 = vadd.f32 %v3957, %v3993
        %v4026 = vadd.f32 %v3958, %v3994
        %v4027 = vadd.f32 %v3959, %v3995
        %v4028 = vadd.f32 %v3960, %v3996
        %v4029 = vadd.f32 %v3961, %v3997
        %v4030 = vadd.f32 %v3962, %v3998
        %v4031 = vadd.f32 %v3963, %v3999
        %v4032 = vadd.f32 %v3964, %v4000
        %v4033 = vadd.f32 %v3965, %v4001
        %v4034 = vadd.f32 %v3966, %v4002
        %v4035 = vadd.f32 %v3967, %v4003
        %v4036 = vadd.f32 %v3968, %v4004
        %v4037 = vadd.f32 %v3969, %v4005
        %v4038 = vadd.f32 %v3970, %v4006
        %v4039 = vadd.f32 %v3971, %v4007
        %v4040 = vadd.f32 %v3972, %v4008
        %v4041 = vadd.f32 %v3973, %v4009
        %v4042 = vadd.f32 %v3974, %v4010
        %v4043 = vadd.f32 %v3975, %v4011
        %v4044 = vadd.f32 %v3976, %v4012
        %v4045 = vadd.f32 %v3977, %v4013
        %v4046 = vadd.f32 %v3978, %v4014
        %v4047 = vadd.f32 %v3979, %v4015
        %v4048 = vadd.f32 %v3980, %v4016
        %v4049 = vadd.f32 %v3981, %v4017
        %v4050 = vadd.f32 %v3982, %v4018
        %vm4051 = vcmask 31744
        %4052 = vst.msk [vmem:[%s255] sm:$0xff] %vm4051, %v4019
        %4053 = vst.msk [vmem:[%s255 + $0x8] sm:$0xff] %vm4051, %v4020
        %4054 = vst.msk [vmem:[%s255 + $0x10] sm:$0xff] %vm4051, %v4021
        %4055 = vst.msk [vmem:[%s255 + $0x18] sm:$0xff] %vm4051, %v4022
        %4056 = vst.msk [vmem:[%s255 + $0x20] sm:$0xff] %vm4051, %v4023
        %4057 = vst.msk [vmem:[%s255 + $0x28] sm:$0xff] %vm4051, %v4024
        %4058 = vst.msk [vmem:[%s255 + $0x30] sm:$0xff] %vm4051, %v4025
        %4059 = vst.msk [vmem:[%s255 + $0x38] sm:$0xff] %vm4051, %v4026
        %4060 = vst.msk [vmem:[%s255 + $0x40] sm:$0xff] %vm4051, %v4027
        %4061 = vst.msk [vmem:[%s255 + $0x48] sm:$0xff] %vm4051, %v4028
        %4062 = vst.msk [vmem:[%s255 + $0x50] sm:$0xff] %vm4051, %v4029
        %4063 = vst.msk [vmem:[%s255 + $0x58] sm:$0xff] %vm4051, %v4030
        %4064 = vst.msk [vmem:[%s255 + $0x60] sm:$0xff] %vm4051, %v4031
        %4065 = vst.msk [vmem:[%s255 + $0x68] sm:$0xff] %vm4051, %v4032
        %4066 = vst.msk [vmem:[%s255 + $0x70] sm:$0xff] %vm4051, %v4033
        %4067 = vst.msk [vmem:[%s255 + $0x78] sm:$0xff] %vm4051, %v4034
        %4068 = vst.msk [vmem:[%s255 + $0x80] sm:$0xff] %vm4051, %v4035
        %4069 = vst.msk [vmem:[%s255 + $0x88] sm:$0xff] %vm4051, %v4036
        %4070 = vst.msk [vmem:[%s255 + $0x90] sm:$0xff] %vm4051, %v4037
        %4071 = vst.msk [vmem:[%s255 + $0x98] sm:$0xff] %vm4051, %v4038
        %4072 = vst.msk [vmem:[%s255 + $0xa0] sm:$0xff] %vm4051, %v4039
        %4073 = vst.msk [vmem:[%s255 + $0xa8] sm:$0xff] %vm4051, %v4040
        %4074 = vst.msk [vmem:[%s255 + $0xb0] sm:$0xff] %vm4051, %v4041
        %4075 = vst.msk [vmem:[%s255 + $0xb8] sm:$0xff] %vm4051, %v4042
        %4076 = vst.msk [vmem:[%s255 + $0xc0] sm:$0xff] %vm4051, %v4043
        %4077 = vst.msk [vmem:[%s255 + $0xc8] sm:$0xff] %vm4051, %v4044
        %4078 = vst.msk [vmem:[%s255 + $0xd0] sm:$0xff] %vm4051, %v4045
        %4079 = vst.msk [vmem:[%s255 + $0xd8] sm:$0xff] %vm4051, %v4046
        %4080 = vst.msk [vmem:[%s255 + $0xe0] sm:$0xff] %vm4051, %v4047
        %4081 = vst.msk [vmem:[%s255 + $0xe8] sm:$0xff] %vm4051, %v4048
        %4082 = vst.msk [vmem:[%s255 + $0xf0] sm:$0xff] %vm4051, %v4049
        %4083 = vst.msk [vmem:[%s255 + $0xf8] sm:$0xff] %vm4051, %v4050
        %s4084 = sand.u32 %s132, 1
        %s4085 = scalar_lea.sflag [#allocation5], %s4084
        %s4086 = sand.u32 %s132, 1
        %s4087 = smul.addr %s4086, 256
        %s4088 = scalar_lea.vmem [#allocation9], %s4087
        // Predicated region
        $region49: #{tpu_custom_call.1} parent=31 // pred_check
          %p4089 = pneg %p142
        $region50: #{tpu_custom_call.1} parent=31 // pred_check_branch
          %4091 = sbr.rel (%p4089) target = $region52
        $region51: #{tpu_custom_call.1} parent=31 // pred_region
          %s4092 = smul.u32 16, %s28
          %s4094 = ssub.s32 4096, 4096
          %4095 = vsyncadd %s4085, %s4094
          %s4096 = smul.addr %s4092, 2
          %s4097 = sadd.s32 %s27, %s4096
          %s4098 = smul.addr %s26, 32
          %s4099 = sadd.s32 %s4097, %s4098
          %s4100 = smul.addr %s4099, 128
          %s4101 = scalar_lea.hbm %s3, %s4100
          %s4102 = sshll.u32 %s4088, 4
          %s4103 = int_to_ptr.vmem [resolvable:$true] %s4102
          %4108 = dma.vmem_to_hbm [thread:$0]  %s4103, 4096, %s4101, %s4085, 128, 128, 8
        $region52: #{tpu_custom_call.1} parent=31 // pred_fallthru
          _
      $region32: #{tpu_custom_call.1} parent=5 // pred_fallthru
        _
      %p4109 = scmp.le.s32.totalorder 2, %s16
      // Predicated region
      $region53: #{tpu_custom_call.1} parent=5 // pred_check
        %p4110 = pneg %p4109
      $region54: #{tpu_custom_call.1} parent=5 // pred_check_branch
        %4112 = sbr.rel (%p4110) target = $region56
      $region55: #{tpu_custom_call.1} parent=5 // pred_region
        %s4113 = ssub.s32 %s16, 2
        // Predicated region
        $region57: #{tpu_custom_call.1} parent=55 // pred_check
          %p4114 = pneg %p148
        $region58: #{tpu_custom_call.1} parent=55 // pred_check_branch
          %4116 = sbr.rel (%p4114) target = $region60
        $region59: #{tpu_custom_call.1} parent=55 // pred_region
          %s4117 = sand.u32 %s133, 1
          %s4118 = scalar_lea.sflag [#allocation5], %s4117
          %s4119 = sand.u32 %s133, 1
          %s4120 = smul.addr %s4119, 256
          %s4121 = scalar_lea.vmem [#allocation9], %s4120
          %4122 = dma.done %s4118, 4096
        $region60: #{tpu_custom_call.1} parent=55 // pred_fallthru
          _
      $region56: #{tpu_custom_call.1} parent=5 // pred_fallthru
        _
    $region6: #{tpu_custom_call.1} parent=1 // loop_footer
      %s20 = sadd.s32 1, %s16
    $region7: #{tpu_custom_call.1} parent=1 // loop_footer_branch
      %15 = sbr.rel target = $region3
    $region8: #{tpu_custom_call.1} parent=1 // loop_exit
      _
    %4123 = vsyncpa [#allocation4], 1
    %s4124 = scalar_lea.sflag [#allocation4], 1
    %4125 = vsyncpa %s4124, 1
    %4126 = vsyncpa [#allocation7], 1
    %4127 = vsyncpa [#allocation5], 1
    %s4128 = scalar_lea.sflag [#allocation5], 1
    %4129 = vsyncpa %s4128, 1

</llo_original>
